<compile_context>
chip_gen: v5e
topology: v5e:2x2
jax: 0.10.0
libtpu: 0.0.40
codegen_flags: <defaults>
</compile_context>

<pallas_src>
import itertools
import numpy as np
import jax
import jax.numpy as jnp
from jax.experimental import pallas as pl
from jax.experimental.pallas import tpu as pltpu

# openmx radii (Bohr) for the atomic numbers used in this synthetic script.
RADII_BY_Z = {1: 6.0, 6: 6.0, 7: 6.0, 8: 6.0, 14: 7.0}
DEFAULT_RADIUS = 10.0

# TODO(synk): ASE enumerates an unbounded set of periodic images; here the
# image range is truncated to S in {-1,0,1}^3 (valid when cutoff < cell edge).
SHIFT_IMAGES = np.array(list(itertools.product((-1, 0, 1), repeat=3)), dtype=np.int32)
NUM_IMAGES = SHIFT_IMAGES.shape[0]                                       # 27
CENTER_IDX = int(np.nonzero(np.all(SHIFT_IMAGES == 0, axis=1))[0][0])    # 13

_NO_MATCH = 2 ** 30   # sentinel ("no match found") in the matching kernel


def _round_up(x, m):
    return ((x + m - 1) // m) * m


# --------------------------------------------------------------------------
# Kernel 1: batched PBC neighbor mask, bit-packed over the 27 periodic images.
# grid = (struct-blocks, i-blocks, j-blocks); each step produces one
# (b_blk, ti, tj) int32 block: bit s of element (bb, i, j) is set iff atoms
# (i, j) of structure (b0*b_blk+bb) are neighbors under periodic image s.
# --------------------------------------------------------------------------
def _neighbor_bits_kernel(counts_ref, shifts_ref, sn2_ref, col_ref, row_ref, o_ref):
    b0 = pl.program_id(0)
    i_blk = pl.program_id(1)
    j_blk = pl.program_id(2)
    b_blk, ti, _ = col_ref.shape
    tj = row_ref.shape[2]

    # global (i, j) atom indices of this pair tile (structure-invariant, hoisted)
    i_idx = jax.lax.broadcasted_iota(jnp.int32, (ti, tj), 0) + i_blk * ti
    j_idx = jax.lax.broadcasted_iota(jnp.int32, (ti, tj), 1) + j_blk * tj
    not_self = i_idx != j_idx

    for bb in range(b_blk):                          # unrolled over structures
        b = b0 * b_blk + bb
        col = col_ref[bb]                            # (ti, 4)  = [pos_i | r_i]
        row = row_ref[bb]                            # (4, tj)  = [pos_j ; r_j]

        # image-invariant pair math, hoisted out of the 27-image loop
        dx = row[0:1, :] - col[:, 0:1]               # (ti, tj)
        dy = row[1:2, :] - col[:, 1:2]
        dz = row[2:3, :] - col[:, 2:3]
        cut = col[:, 3:4] + row[3:4, :]              # r_i + r_j
        base = dx * dx + dy * dy + dz * dz - cut * cut   # d2(S=0) - cutoff^2
        dx2 = dx + dx                                # 2*diff (cross term)
        dy2 = dy + dy
        dz2 = dz + dz

        acc = jnp.zeros((ti, tj), jnp.int32)
        for s in range(NUM_IMAGES):                  # unrolled: ~7 VPU ops / image
            # cartesian shift S@cell and |S@cell|^2 precomputed on host (SMEM)
            o = b * (NUM_IMAGES * 3) + s * 3
            sx = shifts_ref[o + 0]
            sy = shifts_ref[o + 1]
            sz = shifts_ref[o + 2]
            sn2 = sn2_ref[b * NUM_IMAGES + s]
            # |pos_j + S@cell - pos_i|^2 < cut^2  <=>  base + 2*diff.shift < -|shift|^2
            hit = (base + (dx2 * sx + dy2 * sy + dz2 * sz)) < -sn2
            if s == CENTER_IDX:                      # exclude i==j only for S==0
                hit = jnp.logical_and(hit, not_self)
            acc = acc | (hit.astype(jnp.int32) << s)

        count = counts_ref[b]
        valid = jnp.logical_and(i_idx < count, j_idx < count)
        o_ref[bb] = jnp.where(valid, acc, jnp.int32(0))


def neighbor_bits(counts, shifts_flat, sn2_flat, col_slab, row_slab, b_blk, ti, tj):
    """One launch for the whole batch. Returns (n_struct_pad, n_sub, n_lane) int32."""
    n_struct_pad, n_sub, _ = col_slab.shape
    n_lane = row_slab.shape[2]
    grid = (n_struct_pad // b_blk, n_sub // ti, n_lane // tj)
    # Per-block VMEM is bounded by construction (<= ~b_blk*ti*tj*4 B), so the
    # default scoped VMEM limit is fine on v5e/v6e/v7x.
    return pl.pallas_call(
        _neighbor_bits_kernel,
        out_shape=jax.ShapeDtypeStruct((n_struct_pad, n_sub, n_lane), jnp.int32),
        grid=grid,
        in_specs=[pl.BlockSpec(memory_space=pltpu.MemorySpace.SMEM),   # counts
                  pl.BlockSpec(memory_space=pltpu.MemorySpace.SMEM),   # S@cell (flat)
                  pl.BlockSpec(memory_space=pltpu.MemorySpace.SMEM),   # |S@cell|^2
                  pl.BlockSpec((b_blk, ti, 4), lambda b, i, j: (b, i, 0)),
                  pl.BlockSpec((b_blk, 4, tj), lambda b, i, j: (b, 0, j))],
        out_specs=pl.BlockSpec((b_blk, ti, tj), lambda b, i, j: (b, i, j)),
        compiler_params=pltpu.CompilerParams(
            dimension_semantics=("parallel", "parallel", "parallel")),
    )(counts, shifts_flat, sn2_flat, col_slab, row_slab)


# --------------------------------------------------------------------------
# Kernel 2: find_matching_columns_of_A_in_B on packed integer keys.
# A/B columns (i, j, sx, sy, sz) are packed into 2 int32 keys on the host.
# grid = (Ea tiles [parallel], Eb tiles [arbitrary/reduction]); a running-min
# accumulator over Eb lives in the lane-dense (1, tile_ea) output block.
# TODO(synk): for very large Eb, restrict the Eb scan per A tile via scalar
# prefetch of per-structure offsets, or use a host-side sort/searchsorted.
# --------------------------------------------------------------------------
def _matching_kernel(a_ref, b_ref, o_ref):
    kb = pl.program_id(1)
    tile_eb = b_ref.shape[0]
    tile_ea = a_ref.shape[1]

    @pl.when(kb == 0)
    def _():
        o_ref[...] = jnp.full((1, tile_ea), _NO_MATCH, jnp.int32)

    match = jnp.logical_and(b_ref[:, 0:1] == a_ref[0:1, :],
                            b_ref[:, 1:2] == a_ref[1:2, :])      # (tile_eb, tile_ea)
    row = (jax.lax.broadcasted_iota(jnp.int32, (tile_eb, tile_ea), 0)
           + kb * tile_eb)
    cand = jnp.where(match, row, jnp.int32(_NO_MATCH))
    o_ref[...] = jnp.minimum(o_ref[...], jnp.min(cand, axis=0, keepdims=True))


def _pack_edge_keys(m5):
    """m5: (5, E) int array with rows [i, j, sx, sy, sz]; shifts in {-1,0,1}."""
    m5 = np.asarray(m5, np.int64)
    assert np.all(np.abs(m5[2:]) <= 1), "cell shifts outside {-1,0,1} unsupported"
    k0 = m5[0]
    k1 = m5[1] * 27 + (m5[2] + 1) * 9 + (m5[3] + 1) * 3 + (m5[4] + 1)
    assert np.all(k0 < 2 ** 31) and np.all(k1 < 2 ** 31), "edge key overflows int32"
    return np.stack([k0, k1], axis=0).astype(np.int32)           # (2, E)


def find_matching_columns(A, B, tile_ea=512, tile_eb=512):
    """Index in B of the matching column for each column of A (5-row int cols)."""
    ea, eb = A.shape[1], B.shape[1]
    a_keys = _pack_edge_keys(A)                                  # (2, Ea)
    b_keys = _pack_edge_keys(B)                                  # (2, Eb)
    ea_pad = _round_up(max(ea, 1), tile_ea)
    eb_pad = _round_up(max(eb, 1), tile_eb)
    a_pad = np.full((2, ea_pad), -2, np.int32)                   # -2 never matches
    a_pad[:, :ea] = a_keys
    b_pad = np.full((eb_pad, 2), -1, np.int32)                   # -1 never matches
    b_pad[:eb, :] = b_keys.T

    out = pl.pallas_call(
        _matching_kernel,
        out_shape=jax.ShapeDtypeStruct((1, ea_pad), jnp.int32),
        grid=(ea_pad // tile_ea, eb_pad // tile_eb),
        in_specs=[pl.BlockSpec((2, tile_ea), lambda ia, kb: (0, ia)),
                  pl.BlockSpec((tile_eb, 2), lambda ia, kb: (kb, 0))],
        out_specs=pl.BlockSpec((1, tile_ea), lambda ia, kb: (0, ia)),
        compiler_params=pltpu.CompilerParams(
            dimension_semantics=("parallel", "arbitrary")),
    )(jnp.asarray(a_pad), jnp.asarray(b_pad))
    return out[0, :ea]


# --------------------------------------------------------------------------
# BaseModel (JAX / Pallas version)
# --------------------------------------------------------------------------
class BaseModelPallas:
    def __init__(self, radius_type: str = 'openmx', radius_scale: float = 1.5):
        self.radius_type = radius_type
        self.radius_scale = radius_scale

    def forward(self, data):
        raise NotImplementedError  # as in the PyTorch base class

    @property
    def num_params(self) -> int:
        return 0  # BaseModel has no trainable parameters

    def get_radii(self, z):
        return np.array([self.radius_scale * RADII_BY_Z.get(int(zi), DEFAULT_RADIUS)
                         for zi in np.asarray(z)], dtype=np.float32)

    def build_edges(self, pos, z, cells, batch):
        pos = np.asarray(pos, np.float32)
        z = np.asarray(z)
        cells = np.asarray(cells, np.float32).reshape(-1, 3, 3)
        batch = np.asarray(batch)
        node_counts = np.bincount(batch)
        n_struct = len(node_counts)
        offsets = np.concatenate([[0], np.cumsum(node_counts)])
        n_max = int(node_counts.max())

        # pair-matrix tiling: large structures are tiled over (i, j) blocks so
        # per-block VMEM is bounded on every chip (incl. v7x's 64 MiB physical)
        ti = min(128, _round_up(max(n_max, 8), 8))       # source atoms i (sublanes)
        tj = min(512, _round_up(max(n_max, 128), 128))   # target atoms j (lanes)
        n_sub = _round_up(max(n_max, 8), ti)
        n_lane = _round_up(max(n_max, 128), tj)
        # batch several small structures per grid step (amortize per-step cost)
        b_blk = max(1, min(n_struct, (1 << 16) // (ti * tj), 8))
        n_struct_pad = _round_up(n_struct, b_blk)

        # host-side packing of the whole batch into two fused padded slabs
        col_slab = np.zeros((n_struct_pad, n_sub, 4), np.float32)   # [pos_i | r_i]
        row_slab = np.zeros((n_struct_pad, 4, n_lane), np.float32)  # [pos_j ; r_j]
        shifts_cart = np.zeros((n_struct_pad, NUM_IMAGES, 3), np.float32)
        sn2 = np.zeros((n_struct_pad, NUM_IMAGES), np.float32)
        counts = np.zeros((n_struct_pad,), np.int32)
        for b in range(n_struct):
            sl = slice(int(offsets[b]), int(offsets[b + 1]))
            p, r, c = pos[sl], self.get_radii(z[sl]), int(node_counts[b])
            col_slab[b, :c, :3] = p
            col_slab[b, :c, 3] = r
            row_slab[b, :3, :c] = p.T
            row_slab[b, 3, :c] = r
            sc = SHIFT_IMAGES.astype(np.float32) @ cells[b]   # S @ cell on host
            shifts_cart[b] = sc
            sn2[b] = np.sum(sc * sc, axis=1)
            counts[b] = c
        # TODO(synk): for very large batches, move shifts/sn2 out of 1-D SMEM
        # (SMEM is small); per-structure they are only 108 floats.

        # ONE kernel launch + ONE device->host transfer for the whole batch.
        bits = neighbor_bits(jnp.asarray(counts),
                             jnp.asarray(shifts_cart.reshape(-1)),
                             jnp.asarray(sn2.reshape(-1)),
                             jnp.asarray(col_slab), jnp.asarray(row_slab),
                             b_blk, ti, tj)
        mask_np = np.asarray(jax.device_get(bits))[:n_struct]   # (n_struct, n_sub, n_lane)

        # dynamic-size extraction is host-side glue; decode bits only for the
        # nonzero packed words (no 27x expanded array).
        # TODO(synk): edge ordering differs from ASE primitive_neighbor_list ordering
        nz_b, nz_i, nz_j = np.nonzero(mask_np)
        words = mask_np[nz_b, nz_i, nz_j]
        bit_hits = (words[:, None] >> np.arange(NUM_IMAGES, dtype=np.int32)[None, :]) & 1
        pair_sel, s_idx = np.nonzero(bit_hits)
        b_idx = nz_b[pair_sel]
        i_idx = nz_i[pair_sel]
        j_idx = nz_j[pair_sel]
        shifts = SHIFT_IMAGES[s_idx].astype(np.int32)                         # (E, 3)

        # mirrors the PyTorch reference exactly: structures b >= 1 are offset
        # by the PREVIOUS structure's count only (NOT a cumulative sum).
        off = np.zeros(n_struct, np.int64)
        off[1:] = node_counts[:-1]
        eoff = off[b_idx]
        edge_index = np.stack([i_idx + eoff, j_idx + eoff], axis=0).astype(np.int32)

        # nbr_shift = einsum('ni,ij->nj', cell_shift, cell); a (E,3)@(3,3)
        # GEMV-broadcast is launch-cost dominated, so plain numpy here.
        nbr_shift = np.einsum('ei,eij->ej', shifts.astype(np.float32),
                              cells[b_idx]).astype(np.float32)
        return edge_index, shifts, nbr_shift

    def generate_graph(self, data):
        edge_index, cell_shift, nbr_shift = self.build_edges(
            data['pos'], data['z'], data['cell'], data['batch'])
        A = np.concatenate([np.asarray(data['edge_index'], np.int64),
                            np.asarray(data['cell_shift'], np.int64).T], axis=0)  # (5, Ea)
        B = np.concatenate([edge_index.astype(np.int64),
                            cell_shift.T.astype(np.int64)], axis=0)               # (5, Eb)
        assert A.shape[0] == B.shape[0], 'A and B must have the same number of rows.'
        assert A.shape[-1] <= B.shape[-1], 'Increase the radius_scale factor!'
        matching_edges = find_matching_columns(A, B)
        return {
            'z': jnp.asarray(data['z']),
            'pos': jnp.asarray(data['pos'], jnp.float32),
            'edge_index': jnp.asarray(edge_index),
            'cell_shift': jnp.asarray(cell_shift),
            'nbr_shift': jnp.asarray(nbr_shift),
            'batch': jnp.asarray(data['batch']),
            'matching_edges': matching_edges,
        }


# --------------------------------------------------------------------------
if __name__ == "__main__":
    key = jax.random.PRNGKey(0)
    n_per, n_struct = 8, 2
    cell = np.diag([4.2, 4.0, 3.9]).astype(np.float32)
    cells = np.stack([cell, cell], axis=0)                       # (2, 3, 3)

    kp, kz = jax.random.split(key)
    frac = np.asarray(jax.random.uniform(kp, (n_struct * n_per, 3), dtype=jnp.float32))
    pos = frac @ cell                                            # cartesian positions
    z_choices = np.array([1, 6, 8, 14], dtype=np.int32)
    z = z_choices[np.asarray(jax.random.randint(kz, (n_struct * n_per,), 0, 4))]
    batch = np.repeat(np.arange(n_struct), n_per).astype(np.int32)

    # "original" graph stored in data: built with a smaller radius scale so it
    # is a strict subset of the regenerated graph (required by the matching).
    builder = BaseModelPallas(radius_scale=0.20)
    ei0, cs0, ns0 = builder.build_edges(pos, z, cells, batch)

    data = {'z': z, 'pos': pos, 'cell': cells, 'batch': batch,
            'edge_index': ei0, 'cell_shift': cs0, 'nbr_shift': ns0}

    model = BaseModelPallas(radius_type='openmx', radius_scale=0.25)
    graph = model.generate_graph(data)
    jax.block_until_ready(graph['matching_edges'])

    # -------- consistency checks (pure numpy, using kernel outputs) --------
    ei = np.asarray(graph['edge_index'])
    cs = np.asarray(graph['cell_shift'])
    ns = np.asarray(graph['nbr_shift'])
    m = np.asarray(graph['matching_edges'])
    A = np.concatenate([np.asarray(ei0, np.int64), np.asarray(cs0, np.int64).T], axis=0)
    B = np.concatenate([ei.astype(np.int64), cs.T.astype(np.int64)], axis=0)
    assert A.shape[1] > 0 and B.shape[1] >= A.shape[1]
    assert np.all(m < B.shape[1]), "some original edges had no match"
    assert np.array_equal(B[:, m], A), "matching_edges mismatch"
    assert np.allclose(ns, cs.astype(np.float32) @ cell, atol=1e-5), "nbr_shift mismatch"

    # spot-check a few regenerated edges against the geometric definition
    radii = model.get_radii(z)
    for e in range(min(16, ei.shape[1])):
        i_g, j_g = int(ei[0, e]), int(ei[1, e])
        d = pos[j_g] + ns[e] - pos[i_g]
        assert np.linalg.norm(d) < radii[i_g] + radii[j_g] + 1e-4, "edge violates cutoff"

    print("KERNEL_OK")
</pallas_src>

<mosaic_0001>
module attributes {stable_mosaic.version = 11 : i64} {
  func.func @_neighbor_bits_kernel(%arg0: i32, %arg1: i32, %arg2: i32, %arg3: memref<2xi32, #tpu.memory_space<smem>>, %arg4: memref<162xf32, #tpu.memory_space<smem>>, %arg5: memref<54xf32, #tpu.memory_space<smem>>, %arg6: memref<2x8x4xf32, #tpu.memory_space<vmem>>, %arg7: memref<2x4x128xf32, #tpu.memory_space<vmem>>, %arg8: memref<2x8x128xi32, #tpu.memory_space<vmem>>) attributes {dimension_semantics = [#tpu.dimension_semantics<parallel>, #tpu.dimension_semantics<parallel>, #tpu.dimension_semantics<parallel>], iteration_bounds = array<i64: 1, 1, 1>, scalar_prefetch = 0 : i64, scratch_operands = 0 : i64, tpu.core_type = #tpu.core_type<tc>, window_params = [{transform_indices = @transform_0, window_bounds = array<i64: 2>}, {transform_indices = @transform_1, window_bounds = array<i64: 162>}, {transform_indices = @transform_2, window_bounds = array<i64: 54>}, {transform_indices = @transform_3, window_bounds = array<i64: 2, 8, 4>}, {transform_indices = @transform_4, window_bounds = array<i64: 2, 4, 128>}, {transform_indices = @transform_5, window_bounds = array<i64: 2, 8, 128>}]} {
    %0 = tpu.iota {dimensions = array<i32: 0>} : vector<8x128xi32>
    %c8_i32 = arith.constant 8 : i32
    %1 = arith.muli %arg1, %c8_i32 : i32
    %2 = vector.broadcast %1 : i32 to vector<8x128xi32>
    %3 = arith.addi %0, %2 : vector<8x128xi32>
    %4 = tpu.iota {dimensions = array<i32: 1>} : vector<8x128xi32>
    %c128_i32 = arith.constant 128 : i32
    %5 = arith.muli %arg2, %c128_i32 : i32
    %6 = vector.broadcast %5 : i32 to vector<8x128xi32>
    %7 = arith.addi %4, %6 : vector<8x128xi32>
    %8 = arith.cmpi ne, %3, %7 : vector<8x128xi32>
    %c2_i32 = arith.constant 2 : i32
    %9 = arith.muli %arg0, %c2_i32 : i32
    %c0_i32 = arith.constant 0 : i32
    %10 = arith.addi %9, %c0_i32 : i32
    %c0 = arith.constant 0 : index
    %c0_0 = arith.constant 0 : index
    %c0_1 = arith.constant 0 : index
    %11 = vector.load %arg6[%c0, %c0_0, %c0_1] : memref<2x8x4xf32, #tpu.memory_space<vmem>>, vector<1x8x4xf32>
    %12 = vector.shape_cast %11 : vector<1x8x4xf32> to vector<8x4xf32>
    %c0_2 = arith.constant 0 : index
    %c0_3 = arith.constant 0 : index
    %c0_4 = arith.constant 0 : index
    %13 = vector.load %arg7[%c0_2, %c0_3, %c0_4] : memref<2x4x128xf32, #tpu.memory_space<vmem>>, vector<1x4x128xf32>
    %14 = vector.shape_cast %13 : vector<1x4x128xf32> to vector<4x128xf32>
    %15 = vector.extract_strided_slice %14 {offsets = [0, 0], sizes = [1, 128], strides = [1, 1]} : vector<4x128xf32> to vector<1x128xf32>
    %16 = vector.extract_strided_slice %12 {offsets = [0, 0], sizes = [8, 1], strides = [1, 1]} : vector<8x4xf32> to vector<8x1xf32>
    %17 = vector.broadcast %15 : vector<1x128xf32> to vector<8x128xf32>
    %18 = vector.broadcast %16 : vector<8x1xf32> to vector<8x128xf32>
    %19 = arith.subf %17, %18 : vector<8x128xf32>
    %20 = vector.extract_strided_slice %14 {offsets = [1, 0], sizes = [1, 128], strides = [1, 1]} : vector<4x128xf32> to vector<1x128xf32>
    %21 = vector.extract_strided_slice %12 {offsets = [0, 1], sizes = [8, 1], strides = [1, 1]} : vector<8x4xf32> to vector<8x1xf32>
    %22 = vector.broadcast %20 : vector<1x128xf32> to vector<8x128xf32>
    %23 = vector.broadcast %21 : vector<8x1xf32> to vector<8x128xf32>
    %24 = arith.subf %22, %23 : vector<8x128xf32>
    %25 = vector.extract_strided_slice %14 {offsets = [2, 0], sizes = [1, 128], strides = [1, 1]} : vector<4x128xf32> to vector<1x128xf32>
    %26 = vector.extract_strided_slice %12 {offsets = [0, 2], sizes = [8, 1], strides = [1, 1]} : vector<8x4xf32> to vector<8x1xf32>
    %27 = vector.broadcast %25 : vector<1x128xf32> to vector<8x128xf32>
    %28 = vector.broadcast %26 : vector<8x1xf32> to vector<8x128xf32>
    %29 = arith.subf %27, %28 : vector<8x128xf32>
    %30 = vector.extract_strided_slice %12 {offsets = [0, 3], sizes = [8, 1], strides = [1, 1]} : vector<8x4xf32> to vector<8x1xf32>
    %31 = vector.extract_strided_slice %14 {offsets = [3, 0], sizes = [1, 128], strides = [1, 1]} : vector<4x128xf32> to vector<1x128xf32>
    %32 = vector.broadcast %30 : vector<8x1xf32> to vector<8x128xf32>
    %33 = vector.broadcast %31 : vector<1x128xf32> to vector<8x128xf32>
    %34 = arith.addf %32, %33 : vector<8x128xf32>
    %35 = arith.mulf %19, %19 : vector<8x128xf32>
    %36 = arith.mulf %24, %24 : vector<8x128xf32>
    %37 = arith.addf %35, %36 : vector<8x128xf32>
    %38 = arith.mulf %29, %29 : vector<8x128xf32>
    %39 = arith.addf %37, %38 : vector<8x128xf32>
    %40 = arith.mulf %34, %34 : vector<8x128xf32>
    %41 = arith.subf %39, %40 : vector<8x128xf32>
    %42 = arith.addf %19, %19 : vector<8x128xf32>
    %43 = arith.addf %24, %24 : vector<8x128xf32>
    %44 = arith.addf %29, %29 : vector<8x128xf32>
    %c0_i32_5 = arith.constant 0 : i32
    %45 = vector.broadcast %c0_i32_5 : i32 to vector<8x128xi32>
    %c81_i32 = arith.constant 81 : i32
    %46 = arith.muli %10, %c81_i32 : i32
    %c0_i32_6 = arith.constant 0 : i32
    %47 = arith.addi %46, %c0_i32_6 : i32
    %c0_i32_7 = arith.constant 0 : i32
    %48 = arith.addi %47, %c0_i32_7 : i32
    %49 = arith.index_cast %48 : i32 to index
    %50 = memref.load %arg4[%49] : memref<162xf32, #tpu.memory_space<smem>>
    %c1_i32 = arith.constant 1 : i32
    %51 = arith.addi %47, %c1_i32 : i32
    %52 = arith.index_cast %51 : i32 to index
    %53 = memref.load %arg4[%52] : memref<162xf32, #tpu.memory_space<smem>>
    %c2_i32_8 = arith.constant 2 : i32
    %54 = arith.addi %47, %c2_i32_8 : i32
    %55 = arith.index_cast %54 : i32 to index
    %56 = memref.load %arg4[%55] : memref<162xf32, #tpu.memory_space<smem>>
    %c27_i32 = arith.constant 27 : i32
    %57 = arith.muli %10, %c27_i32 : i32
    %c0_i32_9 = arith.constant 0 : i32
    %58 = arith.addi %57, %c0_i32_9 : i32
    %59 = arith.index_cast %58 : i32 to index
    %60 = memref.load %arg5[%59] : memref<54xf32, #tpu.memory_space<smem>>
    %61 = vector.broadcast %50 : f32 to vector<8x128xf32>
    %62 = arith.mulf %42, %61 : vector<8x128xf32>
    %63 = vector.broadcast %53 : f32 to vector<8x128xf32>
    %64 = arith.mulf %43, %63 : vector<8x128xf32>
    %65 = arith.addf %62, %64 : vector<8x128xf32>
    %66 = vector.broadcast %56 : f32 to vector<8x128xf32>
    %67 = arith.mulf %44, %66 : vector<8x128xf32>
    %68 = arith.addf %65, %67 : vector<8x128xf32>
    %69 = arith.addf %41, %68 : vector<8x128xf32>
    %cst = arith.constant 0.000000e+00 : f32
    %70 = arith.subf %cst, %60 : f32
    %71 = vector.broadcast %70 : f32 to vector<8x128xf32>
    %72 = arith.cmpf olt, %69, %71 : vector<8x128xf32>
    %73 = arith.extui %72 : vector<8x128xi1> to vector<8x128xi32>
    %c0_i32_10 = arith.constant 0 : i32
    %74 = vector.broadcast %c0_i32_10 : i32 to vector<8x128xi32>
    %75 = arith.shli %73, %74 : vector<8x128xi32>
    %76 = arith.ori %45, %75 : vector<8x128xi32>
    %c81_i32_11 = arith.constant 81 : i32
    %77 = arith.muli %10, %c81_i32_11 : i32
    %c3_i32 = arith.constant 3 : i32
    %78 = arith.addi %77, %c3_i32 : i32
    %c0_i32_12 = arith.constant 0 : i32
    %79 = arith.addi %78, %c0_i32_12 : i32
    %80 = arith.index_cast %79 : i32 to index
    %81 = memref.load %arg4[%80] : memref<162xf32, #tpu.memory_space<smem>>
    %c1_i32_13 = arith.constant 1 : i32
    %82 = arith.addi %78, %c1_i32_13 : i32
    %83 = arith.index_cast %82 : i32 to index
    %84 = memref.load %arg4[%83] : memref<162xf32, #tpu.memory_space<smem>>
    %c2_i32_14 = arith.constant 2 : i32
    %85 = arith.addi %78, %c2_i32_14 : i32
    %86 = arith.index_cast %85 : i32 to index
    %87 = memref.load %arg4[%86] : memref<162xf32, #tpu.memory_space<smem>>
    %c27_i32_15 = arith.constant 27 : i32
    %88 = arith.muli %10, %c27_i32_15 : i32
    %c1_i32_16 = arith.constant 1 : i32
    %89 = arith.addi %88, %c1_i32_16 : i32
    %90 = arith.index_cast %89 : i32 to index
    %91 = memref.load %arg5[%90] : memref<54xf32, #tpu.memory_space<smem>>
    %92 = vector.broadcast %81 : f32 to vector<8x128xf32>
    %93 = arith.mulf %42, %92 : vector<8x128xf32>
    %94 = vector.broadcast %84 : f32 to vector<8x128xf32>
    %95 = arith.mulf %43, %94 : vector<8x128xf32>
    %96 = arith.addf %93, %95 : vector<8x128xf32>
    %97 = vector.broadcast %87 : f32 to vector<8x128xf32>
    %98 = arith.mulf %44, %97 : vector<8x128xf32>
    %99 = arith.addf %96, %98 : vector<8x128xf32>
    %100 = arith.addf %41, %99 : vector<8x128xf32>
    %cst_17 = arith.constant 0.000000e+00 : f32
    %101 = arith.subf %cst_17, %91 : f32
    %102 = vector.broadcast %101 : f32 to vector<8x128xf32>
    %103 = arith.cmpf olt, %100, %102 : vector<8x128xf32>
    %104 = arith.extui %103 : vector<8x128xi1> to vector<8x128xi32>
    %c1_i32_18 = arith.constant 1 : i32
    %105 = vector.broadcast %c1_i32_18 : i32 to vector<8x128xi32>
    %106 = arith.shli %104, %105 : vector<8x128xi32>
    %107 = arith.ori %76, %106 : vector<8x128xi32>
    %c81_i32_19 = arith.constant 81 : i32
    %108 = arith.muli %10, %c81_i32_19 : i32
    %c6_i32 = arith.constant 6 : i32
    %109 = arith.addi %108, %c6_i32 : i32
    %c0_i32_20 = arith.constant 0 : i32
    %110 = arith.addi %109, %c0_i32_20 : i32
    %111 = arith.index_cast %110 : i32 to index
    %112 = memref.load %arg4[%111] : memref<162xf32, #tpu.memory_space<smem>>
    %c1_i32_21 = arith.constant 1 : i32
    %113 = arith.addi %109, %c1_i32_21 : i32
    %114 = arith.index_cast %113 : i32 to index
    %115 = memref.load %arg4[%114] : memref<162xf32, #tpu.memory_space<smem>>
    %c2_i32_22 = arith.constant 2 : i32
    %116 = arith.addi %109, %c2_i32_22 : i32
    %117 = arith.index_cast %116 : i32 to index
    %118 = memref.load %arg4[%117] : memref<162xf32, #tpu.memory_space<smem>>
    %c27_i32_23 = arith.constant 27 : i32
    %119 = arith.muli %10, %c27_i32_23 : i32
    %c2_i32_24 = arith.constant 2 : i32
    %120 = arith.addi %119, %c2_i32_24 : i32
    %121 = arith.index_cast %120 : i32 to index
    %122 = memref.load %arg5[%121] : memref<54xf32, #tpu.memory_space<smem>>
    %123 = vector.broadcast %112 : f32 to vector<8x128xf32>
    %124 = arith.mulf %42, %123 : vector<8x128xf32>
    %125 = vector.broadcast %115 : f32 to vector<8x128xf32>
    %126 = arith.mulf %43, %125 : vector<8x128xf32>
    %127 = arith.addf %124, %126 : vector<8x128xf32>
    %128 = vector.broadcast %118 : f32 to vector<8x128xf32>
    %129 = arith.mulf %44, %128 : vector<8x128xf32>
    %130 = arith.addf %127, %129 : vector<8x128xf32>
    %131 = arith.addf %41, %130 : vector<8x128xf32>
    %cst_25 = arith.constant 0.000000e+00 : f32
    %132 = arith.subf %cst_25, %122 : f32
    %133 = vector.broadcast %132 : f32 to vector<8x128xf32>
    %134 = arith.cmpf olt, %131, %133 : vector<8x128xf32>
    %135 = arith.extui %134 : vector<8x128xi1> to vector<8x128xi32>
    %c2_i32_26 = arith.constant 2 : i32
    %136 = vector.broadcast %c2_i32_26 : i32 to vector<8x128xi32>
    %137 = arith.shli %135, %136 : vector<8x128xi32>
    %138 = arith.ori %107, %137 : vector<8x128xi32>
    %c81_i32_27 = arith.constant 81 : i32
    %139 = arith.muli %10, %c81_i32_27 : i32
    %c9_i32 = arith.constant 9 : i32
    %140 = arith.addi %139, %c9_i32 : i32
    %c0_i32_28 = arith.constant 0 : i32
    %141 = arith.addi %140, %c0_i32_28 : i32
    %142 = arith.index_cast %141 : i32 to index
    %143 = memref.load %arg4[%142] : memref<162xf32, #tpu.memory_space<smem>>
    %c1_i32_29 = arith.constant 1 : i32
    %144 = arith.addi %140, %c1_i32_29 : i32
    %145 = arith.index_cast %144 : i32 to index
    %146 = memref.load %arg4[%145] : memref<162xf32, #tpu.memory_space<smem>>
    %c2_i32_30 = arith.constant 2 : i32
    %147 = arith.addi %140, %c2_i32_30 : i32
    %148 = arith.index_cast %147 : i32 to index
    %149 = memref.load %arg4[%148] : memref<162xf32, #tpu.memory_space<smem>>
    %c27_i32_31 = arith.constant 27 : i32
    %150 = arith.muli %10, %c27_i32_31 : i32
    %c3_i32_32 = arith.constant 3 : i32
    %151 = arith.addi %150, %c3_i32_32 : i32
    %152 = arith.index_cast %151 : i32 to index
    %153 = memref.load %arg5[%152] : memref<54xf32, #tpu.memory_space<smem>>
    %154 = vector.broadcast %143 : f32 to vector<8x128xf32>
    %155 = arith.mulf %42, %154 : vector<8x128xf32>
    %156 = vector.broadcast %146 : f32 to vector<8x128xf32>
    %157 = arith.mulf %43, %156 : vector<8x128xf32>
    %158 = arith.addf %155, %157 : vector<8x128xf32>
    %159 = vector.broadcast %149 : f32 to vector<8x128xf32>
    %160 = arith.mulf %44, %159 : vector<8x128xf32>
    %161 = arith.addf %158, %160 : vector<8x128xf32>
    %162 = arith.addf %41, %161 : vector<8x128xf32>
    %cst_33 = arith.constant 0.000000e+00 : f32
    %163 = arith.subf %cst_33, %153 : f32
    %164 = vector.broadcast %163 : f32 to vector<8x128xf32>
    %165 = arith.cmpf olt, %162, %164 : vector<8x128xf32>
    %166 = arith.extui %165 : vector<8x128xi1> to vector<8x128xi32>
    %c3_i32_34 = arith.constant 3 : i32
    %167 = vector.broadcast %c3_i32_34 : i32 to vector<8x128xi32>
    %168 = arith.shli %166, %167 : vector<8x128xi32>
    %169 = arith.ori %138, %168 : vector<8x128xi32>
    %c81_i32_35 = arith.constant 81 : i32
    %170 = arith.muli %10, %c81_i32_35 : i32
    %c12_i32 = arith.constant 12 : i32
    %171 = arith.addi %170, %c12_i32 : i32
    %c0_i32_36 = arith.constant 0 : i32
    %172 = arith.addi %171, %c0_i32_36 : i32
    %173 = arith.index_cast %172 : i32 to index
    %174 = memref.load %arg4[%173] : memref<162xf32, #tpu.memory_space<smem>>
    %c1_i32_37 = arith.constant 1 : i32
    %175 = arith.addi %171, %c1_i32_37 : i32
    %176 = arith.index_cast %175 : i32 to index
    %177 = memref.load %arg4[%176] : memref<162xf32, #tpu.memory_space<smem>>
    %c2_i32_38 = arith.constant 2 : i32
    %178 = arith.addi %171, %c2_i32_38 : i32
    %179 = arith.index_cast %178 : i32 to index
    %180 = memref.load %arg4[%179] : memref<162xf32, #tpu.memory_space<smem>>
    %c27_i32_39 = arith.constant 27 : i32
    %181 = arith.muli %10, %c27_i32_39 : i32
    %c4_i32 = arith.constant 4 : i32
    %182 = arith.addi %181, %c4_i32 : i32
    %183 = arith.index_cast %182 : i32 to index
    %184 = memref.load %arg5[%183] : memref<54xf32, #tpu.memory_space<smem>>
    %185 = vector.broadcast %174 : f32 to vector<8x128xf32>
    %186 = arith.mulf %42, %185 : vector<8x128xf32>
    %187 = vector.broadcast %177 : f32 to vector<8x128xf32>
    %188 = arith.mulf %43, %187 : vector<8x128xf32>
    %189 = arith.addf %186, %188 : vector<8x128xf32>
    %190 = vector.broadcast %180 : f32 to vector<8x128xf32>
    %191 = arith.mulf %44, %190 : vector<8x128xf32>
    %192 = arith.addf %189, %191 : vector<8x128xf32>
    %193 = arith.addf %41, %192 : vector<8x128xf32>
    %cst_40 = arith.constant 0.000000e+00 : f32
    %194 = arith.subf %cst_40, %184 : f32
    %195 = vector.broadcast %194 : f32 to vector<8x128xf32>
    %196 = arith.cmpf olt, %193, %195 : vector<8x128xf32>
    %197 = arith.extui %196 : vector<8x128xi1> to vector<8x128xi32>
    %c4_i32_41 = arith.constant 4 : i32
    %198 = vector.broadcast %c4_i32_41 : i32 to vector<8x128xi32>
    %199 = arith.shli %197, %198 : vector<8x128xi32>
    %200 = arith.ori %169, %199 : vector<8x128xi32>
    %c81_i32_42 = arith.constant 81 : i32
    %201 = arith.muli %10, %c81_i32_42 : i32
    %c15_i32 = arith.constant 15 : i32
    %202 = arith.addi %201, %c15_i32 : i32
    %c0_i32_43 = arith.constant 0 : i32
    %203 = arith.addi %202, %c0_i32_43 : i32
    %204 = arith.index_cast %203 : i32 to index
    %205 = memref.load %arg4[%204] : memref<162xf32, #tpu.memory_space<smem>>
    %c1_i32_44 = arith.constant 1 : i32
    %206 = arith.addi %202, %c1_i32_44 : i32
    %207 = arith.index_cast %206 : i32 to index
    %208 = memref.load %arg4[%207] : memref<162xf32, #tpu.memory_space<smem>>
    %c2_i32_45 = arith.constant 2 : i32
    %209 = arith.addi %202, %c2_i32_45 : i32
    %210 = arith.index_cast %209 : i32 to index
    %211 = memref.load %arg4[%210] : memref<162xf32, #tpu.memory_space<smem>>
    %c27_i32_46 = arith.constant 27 : i32
    %212 = arith.muli %10, %c27_i32_46 : i32
    %c5_i32 = arith.constant 5 : i32
    %213 = arith.addi %212, %c5_i32 : i32
    %214 = arith.index_cast %213 : i32 to index
    %215 = memref.load %arg5[%214] : memref<54xf32, #tpu.memory_space<smem>>
    %216 = vector.broadcast %205 : f32 to vector<8x128xf32>
    %217 = arith.mulf %42, %216 : vector<8x128xf32>
    %218 = vector.broadcast %208 : f32 to vector<8x128xf32>
    %219 = arith.mulf %43, %218 : vector<8x128xf32>
    %220 = arith.addf %217, %219 : vector<8x128xf32>
    %221 = vector.broadcast %211 : f32 to vector<8x128xf32>
    %222 = arith.mulf %44, %221 : vector<8x128xf32>
    %223 = arith.addf %220, %222 : vector<8x128xf32>
    %224 = arith.addf %41, %223 : vector<8x128xf32>
    %cst_47 = arith.constant 0.000000e+00 : f32
    %225 = arith.subf %cst_47, %215 : f32
    %226 = vector.broadcast %225 : f32 to vector<8x128xf32>
    %227 = arith.cmpf olt, %224, %226 : vector<8x128xf32>
    %228 = arith.extui %227 : vector<8x128xi1> to vector<8x128xi32>
    %c5_i32_48 = arith.constant 5 : i32
    %229 = vector.broadcast %c5_i32_48 : i32 to vector<8x128xi32>
    %230 = arith.shli %228, %229 : vector<8x128xi32>
    %231 = arith.ori %200, %230 : vector<8x128xi32>
    %c81_i32_49 = arith.constant 81 : i32
    %232 = arith.muli %10, %c81_i32_49 : i32
    %c18_i32 = arith.constant 18 : i32
    %233 = arith.addi %232, %c18_i32 : i32
    %c0_i32_50 = arith.constant 0 : i32
    %234 = arith.addi %233, %c0_i32_50 : i32
    %235 = arith.index_cast %234 : i32 to index
    %236 = memref.load %arg4[%235] : memref<162xf32, #tpu.memory_space<smem>>
    %c1_i32_51 = arith.constant 1 : i32
    %237 = arith.addi %233, %c1_i32_51 : i32
    %238 = arith.index_cast %237 : i32 to index
    %239 = memref.load %arg4[%238] : memref<162xf32, #tpu.memory_space<smem>>
    %c2_i32_52 = arith.constant 2 : i32
    %240 = arith.addi %233, %c2_i32_52 : i32
    %241 = arith.index_cast %240 : i32 to index
    %242 = memref.load %arg4[%241] : memref<162xf32, #tpu.memory_space<smem>>
    %c27_i32_53 = arith.constant 27 : i32
    %243 = arith.muli %10, %c27_i32_53 : i32
    %c6_i32_54 = arith.constant 6 : i32
    %244 = arith.addi %243, %c6_i32_54 : i32
    %245 = arith.index_cast %244 : i32 to index
    %246 = memref.load %arg5[%245] : memref<54xf32, #tpu.memory_space<smem>>
    %247 = vector.broadcast %236 : f32 to vector<8x128xf32>
    %248 = arith.mulf %42, %247 : vector<8x128xf32>
    %249 = vector.broadcast %239 : f32 to vector<8x128xf32>
    %250 = arith.mulf %43, %249 : vector<8x128xf32>
    %251 = arith.addf %248, %250 : vector<8x128xf32>
    %252 = vector.broadcast %242 : f32 to vector<8x128xf32>
    %253 = arith.mulf %44, %252 : vector<8x128xf32>
    %254 = arith.addf %251, %253 : vector<8x128xf32>
    %255 = arith.addf %41, %254 : vector<8x128xf32>
    %cst_55 = arith.constant 0.000000e+00 : f32
    %256 = arith.subf %cst_55, %246 : f32
    %257 = vector.broadcast %256 : f32 to vector<8x128xf32>
    %258 = arith.cmpf olt, %255, %257 : vector<8x128xf32>
    %259 = arith.extui %258 : vector<8x128xi1> to vector<8x128xi32>
    %c6_i32_56 = arith.constant 6 : i32
    %260 = vector.broadcast %c6_i32_56 : i32 to vector<8x128xi32>
    %261 = arith.shli %259, %260 : vector<8x128xi32>
    %262 = arith.ori %231, %261 : vector<8x128xi32>
    %c81_i32_57 = arith.constant 81 : i32
    %263 = arith.muli %10, %c81_i32_57 : i32
    %c21_i32 = arith.constant 21 : i32
    %264 = arith.addi %263, %c21_i32 : i32
    %c0_i32_58 = arith.constant 0 : i32
    %265 = arith.addi %264, %c0_i32_58 : i32
    %266 = arith.index_cast %265 : i32 to index
    %267 = memref.load %arg4[%266] : memref<162xf32, #tpu.memory_space<smem>>
    %c1_i32_59 = arith.constant 1 : i32
    %268 = arith.addi %264, %c1_i32_59 : i32
    %269 = arith.index_cast %268 : i32 to index
    %270 = memref.load %arg4[%269] : memref<162xf32, #tpu.memory_space<smem>>
    %c2_i32_60 = arith.constant 2 : i32
    %271 = arith.addi %264, %c2_i32_60 : i32
    %272 = arith.index_cast %271 : i32 to index
    %273 = memref.load %arg4[%272] : memref<162xf32, #tpu.memory_space<smem>>
    %c27_i32_61 = arith.constant 27 : i32
    %274 = arith.muli %10, %c27_i32_61 : i32
    %c7_i32 = arith.constant 7 : i32
    %275 = arith.addi %274, %c7_i32 : i32
    %276 = arith.index_cast %275 : i32 to index
    %277 = memref.load %arg5[%276] : memref<54xf32, #tpu.memory_space<smem>>
    %278 = vector.broadcast %267 : f32 to vector<8x128xf32>
    %279 = arith.mulf %42, %278 : vector<8x128xf32>
    %280 = vector.broadcast %270 : f32 to vector<8x128xf32>
    %281 = arith.mulf %43, %280 : vector<8x128xf32>
    %282 = arith.addf %279, %281 : vector<8x128xf32>
    %283 = vector.broadcast %273 : f32 to vector<8x128xf32>
    %284 = arith.mulf %44, %283 : vector<8x128xf32>
    %285 = arith.addf %282, %284 : vector<8x128xf32>
    %286 = arith.addf %41, %285 : vector<8x128xf32>
    %cst_62 = arith.constant 0.000000e+00 : f32
    %287 = arith.subf %cst_62, %277 : f32
    %288 = vector.broadcast %287 : f32 to vector<8x128xf32>
    %289 = arith.cmpf olt, %286, %288 : vector<8x128xf32>
    %290 = arith.extui %289 : vector<8x128xi1> to vector<8x128xi32>
    %c7_i32_63 = arith.constant 7 : i32
    %291 = vector.broadcast %c7_i32_63 : i32 to vector<8x128xi32>
    %292 = arith.shli %290, %291 : vector<8x128xi32>
    %293 = arith.ori %262, %292 : vector<8x128xi32>
    %c81_i32_64 = arith.constant 81 : i32
    %294 = arith.muli %10, %c81_i32_64 : i32
    %c24_i32 = arith.constant 24 : i32
    %295 = arith.addi %294, %c24_i32 : i32
    %c0_i32_65 = arith.constant 0 : i32
    %296 = arith.addi %295, %c0_i32_65 : i32
    %297 = arith.index_cast %296 : i32 to index
    %298 = memref.load %arg4[%297] : memref<162xf32, #tpu.memory_space<smem>>
    %c1_i32_66 = arith.constant 1 : i32
    %299 = arith.addi %295, %c1_i32_66 : i32
    %300 = arith.index_cast %299 : i32 to index
    %301 = memref.load %arg4[%300] : memref<162xf32, #tpu.memory_space<smem>>
    %c2_i32_67 = arith.constant 2 : i32
    %302 = arith.addi %295, %c2_i32_67 : i32
    %303 = arith.index_cast %302 : i32 to index
    %304 = memref.load %arg4[%303] : memref<162xf32, #tpu.memory_space<smem>>
    %c27_i32_68 = arith.constant 27 : i32
    %305 = arith.muli %10, %c27_i32_68 : i32
    %c8_i32_69 = arith.constant 8 : i32
    %306 = arith.addi %305, %c8_i32_69 : i32
    %307 = arith.index_cast %306 : i32 to index
    %308 = memref.load %arg5[%307] : memref<54xf32, #tpu.memory_space<smem>>
    %309 = vector.broadcast %298 : f32 to vector<8x128xf32>
    %310 = arith.mulf %42, %309 : vector<8x128xf32>
    %311 = vector.broadcast %301 : f32 to vector<8x128xf32>
    %312 = arith.mulf %43, %311 : vector<8x128xf32>
    %313 = arith.addf %310, %312 : vector<8x128xf32>
    %314 = vector.broadcast %304 : f32 to vector<8x128xf32>
    %315 = arith.mulf %44, %314 : vector<8x128xf32>
    %316 = arith.addf %313, %315 : vector<8x128xf32>
    %317 = arith.addf %41, %316 : vector<8x128xf32>
    %cst_70 = arith.constant 0.000000e+00 : f32
    %318 = arith.subf %cst_70, %308 : f32
    %319 = vector.broadcast %318 : f32 to vector<8x128xf32>
    %320 = arith.cmpf olt, %317, %319 : vector<8x128xf32>
    %321 = arith.extui %320 : vector<8x128xi1> to vector<8x128xi32>
    %c8_i32_71 = arith.constant 8 : i32
    %322 = vector.broadcast %c8_i32_71 : i32 to vector<8x128xi32>
    %323 = arith.shli %321, %322 : vector<8x128xi32>
    %324 = arith.ori %293, %323 : vector<8x128xi32>
    %c81_i32_72 = arith.constant 81 : i32
    %325 = arith.muli %10, %c81_i32_72 : i32
    %c27_i32_73 = arith.constant 27 : i32
    %326 = arith.addi %325, %c27_i32_73 : i32
    %c0_i32_74 = arith.constant 0 : i32
    %327 = arith.addi %326, %c0_i32_74 : i32
    %328 = arith.index_cast %327 : i32 to index
    %329 = memref.load %arg4[%328] : memref<162xf32, #tpu.memory_space<smem>>
    %c1_i32_75 = arith.constant 1 : i32
    %330 = arith.addi %326, %c1_i32_75 : i32
    %331 = arith.index_cast %330 : i32 to index
    %332 = memref.load %arg4[%331] : memref<162xf32, #tpu.memory_space<smem>>
    %c2_i32_76 = arith.constant 2 : i32
    %333 = arith.addi %326, %c2_i32_76 : i32
    %334 = arith.index_cast %333 : i32 to index
    %335 = memref.load %arg4[%334] : memref<162xf32, #tpu.memory_space<smem>>
    %c27_i32_77 = arith.constant 27 : i32
    %336 = arith.muli %10, %c27_i32_77 : i32
    %c9_i32_78 = arith.constant 9 : i32
    %337 = arith.addi %336, %c9_i32_78 : i32
    %338 = arith.index_cast %337 : i32 to index
    %339 = memref.load %arg5[%338] : memref<54xf32, #tpu.memory_space<smem>>
    %340 = vector.broadcast %329 : f32 to vector<8x128xf32>
    %341 = arith.mulf %42, %340 : vector<8x128xf32>
    %342 = vector.broadcast %332 : f32 to vector<8x128xf32>
    %343 = arith.mulf %43, %342 : vector<8x128xf32>
    %344 = arith.addf %341, %343 : vector<8x128xf32>
    %345 = vector.broadcast %335 : f32 to vector<8x128xf32>
    %346 = arith.mulf %44, %345 : vector<8x128xf32>
    %347 = arith.addf %344, %346 : vector<8x128xf32>
    %348 = arith.addf %41, %347 : vector<8x128xf32>
    %cst_79 = arith.constant 0.000000e+00 : f32
    %349 = arith.subf %cst_79, %339 : f32
    %350 = vector.broadcast %349 : f32 to vector<8x128xf32>
    %351 = arith.cmpf olt, %348, %350 : vector<8x128xf32>
    %352 = arith.extui %351 : vector<8x128xi1> to vector<8x128xi32>
    %c9_i32_80 = arith.constant 9 : i32
    %353 = vector.broadcast %c9_i32_80 : i32 to vector<8x128xi32>
    %354 = arith.shli %352, %353 : vector<8x128xi32>
    %355 = arith.ori %324, %354 : vector<8x128xi32>
    %c81_i32_81 = arith.constant 81 : i32
    %356 = arith.muli %10, %c81_i32_81 : i32
    %c30_i32 = arith.constant 30 : i32
    %357 = arith.addi %356, %c30_i32 : i32
    %c0_i32_82 = arith.constant 0 : i32
    %358 = arith.addi %357, %c0_i32_82 : i32
    %359 = arith.index_cast %358 : i32 to index
    %360 = memref.load %arg4[%359] : memref<162xf32, #tpu.memory_space<smem>>
    %c1_i32_83 = arith.constant 1 : i32
    %361 = arith.addi %357, %c1_i32_83 : i32
    %362 = arith.index_cast %361 : i32 to index
    %363 = memref.load %arg4[%362] : memref<162xf32, #tpu.memory_space<smem>>
    %c2_i32_84 = arith.constant 2 : i32
    %364 = arith.addi %357, %c2_i32_84 : i32
    %365 = arith.index_cast %364 : i32 to index
    %366 = memref.load %arg4[%365] : memref<162xf32, #tpu.memory_space<smem>>
    %c27_i32_85 = arith.constant 27 : i32
    %367 = arith.muli %10, %c27_i32_85 : i32
    %c10_i32 = arith.constant 10 : i32
    %368 = arith.addi %367, %c10_i32 : i32
    %369 = arith.index_cast %368 : i32 to index
    %370 = memref.load %arg5[%369] : memref<54xf32, #tpu.memory_space<smem>>
    %371 = vector.broadcast %360 : f32 to vector<8x128xf32>
    %372 = arith.mulf %42, %371 : vector<8x128xf32>
    %373 = vector.broadcast %363 : f32 to vector<8x128xf32>
    %374 = arith.mulf %43, %373 : vector<8x128xf32>
    %375 = arith.addf %372, %374 : vector<8x128xf32>
    %376 = vector.broadcast %366 : f32 to vector<8x128xf32>
    %377 = arith.mulf %44, %376 : vector<8x128xf32>
    %378 = arith.addf %375, %377 : vector<8x128xf32>
    %379 = arith.addf %41, %378 : vector<8x128xf32>
    %cst_86 = arith.constant 0.000000e+00 : f32
    %380 = arith.subf %cst_86, %370 : f32
    %381 = vector.broadcast %380 : f32 to vector<8x128xf32>
    %382 = arith.cmpf olt, %379, %381 : vector<8x128xf32>
    %383 = arith.extui %382 : vector<8x128xi1> to vector<8x128xi32>
    %c10_i32_87 = arith.constant 10 : i32
    %384 = vector.broadcast %c10_i32_87 : i32 to vector<8x128xi32>
    %385 = arith.shli %383, %384 : vector<8x128xi32>
    %386 = arith.ori %355, %385 : vector<8x128xi32>
    %c81_i32_88 = arith.constant 81 : i32
    %387 = arith.muli %10, %c81_i32_88 : i32
    %c33_i32 = arith.constant 33 : i32
    %388 = arith.addi %387, %c33_i32 : i32
    %c0_i32_89 = arith.constant 0 : i32
    %389 = arith.addi %388, %c0_i32_89 : i32
    %390 = arith.index_cast %389 : i32 to index
    %391 = memref.load %arg4[%390] : memref<162xf32, #tpu.memory_space<smem>>
    %c1_i32_90 = arith.constant 1 : i32
    %392 = arith.addi %388, %c1_i32_90 : i32
    %393 = arith.index_cast %392 : i32 to index
    %394 = memref.load %arg4[%393] : memref<162xf32, #tpu.memory_space<smem>>
    %c2_i32_91 = arith.constant 2 : i32
    %395 = arith.addi %388, %c2_i32_91 : i32
    %396 = arith.index_cast %395 : i32 to index
    %397 = memref.load %arg4[%396] : memref<162xf32, #tpu.memory_space<smem>>
    %c27_i32_92 = arith.constant 27 : i32
    %398 = arith.muli %10, %c27_i32_92 : i32
    %c11_i32 = arith.constant 11 : i32
    %399 = arith.addi %398, %c11_i32 : i32
    %400 = arith.index_cast %399 : i32 to index
    %401 = memref.load %arg5[%400] : memref<54xf32, #tpu.memory_space<smem>>
    %402 = vector.broadcast %391 : f32 to vector<8x128xf32>
    %403 = arith.mulf %42, %402 : vector<8x128xf32>
    %404 = vector.broadcast %394 : f32 to vector<8x128xf32>
    %405 = arith.mulf %43, %404 : vector<8x128xf32>
    %406 = arith.addf %403, %405 : vector<8x128xf32>
    %407 = vector.broadcast %397 : f32 to vector<8x128xf32>
    %408 = arith.mulf %44, %407 : vector<8x128xf32>
    %409 = arith.addf %406, %408 : vector<8x128xf32>
    %410 = arith.addf %41, %409 : vector<8x128xf32>
    %cst_93 = arith.constant 0.000000e+00 : f32
    %411 = arith.subf %cst_93, %401 : f32
    %412 = vector.broadcast %411 : f32 to vector<8x128xf32>
    %413 = arith.cmpf olt, %410, %412 : vector<8x128xf32>
    %414 = arith.extui %413 : vector<8x128xi1> to vector<8x128xi32>
    %c11_i32_94 = arith.constant 11 : i32
    %415 = vector.broadcast %c11_i32_94 : i32 to vector<8x128xi32>
    %416 = arith.shli %414, %415 : vector<8x128xi32>
    %417 = arith.ori %386, %416 : vector<8x128xi32>
    %c81_i32_95 = arith.constant 81 : i32
    %418 = arith.muli %10, %c81_i32_95 : i32
    %c36_i32 = arith.constant 36 : i32
    %419 = arith.addi %418, %c36_i32 : i32
    %c0_i32_96 = arith.constant 0 : i32
    %420 = arith.addi %419, %c0_i32_96 : i32
    %421 = arith.index_cast %420 : i32 to index
    %422 = memref.load %arg4[%421] : memref<162xf32, #tpu.memory_space<smem>>
    %c1_i32_97 = arith.constant 1 : i32
    %423 = arith.addi %419, %c1_i32_97 : i32
    %424 = arith.index_cast %423 : i32 to index
    %425 = memref.load %arg4[%424] : memref<162xf32, #tpu.memory_space<smem>>
    %c2_i32_98 = arith.constant 2 : i32
    %426 = arith.addi %419, %c2_i32_98 : i32
    %427 = arith.index_cast %426 : i32 to index
    %428 = memref.load %arg4[%427] : memref<162xf32, #tpu.memory_space<smem>>
    %c27_i32_99 = arith.constant 27 : i32
    %429 = arith.muli %10, %c27_i32_99 : i32
    %c12_i32_100 = arith.constant 12 : i32
    %430 = arith.addi %429, %c12_i32_100 : i32
    %431 = arith.index_cast %430 : i32 to index
    %432 = memref.load %arg5[%431] : memref<54xf32, #tpu.memory_space<smem>>
    %433 = vector.broadcast %422 : f32 to vector<8x128xf32>
    %434 = arith.mulf %42, %433 : vector<8x128xf32>
    %435 = vector.broadcast %425 : f32 to vector<8x128xf32>
    %436 = arith.mulf %43, %435 : vector<8x128xf32>
    %437 = arith.addf %434, %436 : vector<8x128xf32>
    %438 = vector.broadcast %428 : f32 to vector<8x128xf32>
    %439 = arith.mulf %44, %438 : vector<8x128xf32>
    %440 = arith.addf %437, %439 : vector<8x128xf32>
    %441 = arith.addf %41, %440 : vector<8x128xf32>
    %cst_101 = arith.constant 0.000000e+00 : f32
    %442 = arith.subf %cst_101, %432 : f32
    %443 = vector.broadcast %442 : f32 to vector<8x128xf32>
    %444 = arith.cmpf olt, %441, %443 : vector<8x128xf32>
    %445 = arith.extui %444 : vector<8x128xi1> to vector<8x128xi32>
    %c12_i32_102 = arith.constant 12 : i32
    %446 = vector.broadcast %c12_i32_102 : i32 to vector<8x128xi32>
    %447 = arith.shli %445, %446 : vector<8x128xi32>
    %448 = arith.ori %417, %447 : vector<8x128xi32>
    %c81_i32_103 = arith.constant 81 : i32
    %449 = arith.muli %10, %c81_i32_103 : i32
    %c39_i32 = arith.constant 39 : i32
    %450 = arith.addi %449, %c39_i32 : i32
    %c0_i32_104 = arith.constant 0 : i32
    %451 = arith.addi %450, %c0_i32_104 : i32
    %452 = arith.index_cast %451 : i32 to index
    %453 = memref.load %arg4[%452] : memref<162xf32, #tpu.memory_space<smem>>
    %c1_i32_105 = arith.constant 1 : i32
    %454 = arith.addi %450, %c1_i32_105 : i32
    %455 = arith.index_cast %454 : i32 to index
    %456 = memref.load %arg4[%455] : memref<162xf32, #tpu.memory_space<smem>>
    %c2_i32_106 = arith.constant 2 : i32
    %457 = arith.addi %450, %c2_i32_106 : i32
    %458 = arith.index_cast %457 : i32 to index
    %459 = memref.load %arg4[%458] : memref<162xf32, #tpu.memory_space<smem>>
    %c27_i32_107 = arith.constant 27 : i32
    %460 = arith.muli %10, %c27_i32_107 : i32
    %c13_i32 = arith.constant 13 : i32
    %461 = arith.addi %460, %c13_i32 : i32
    %462 = arith.index_cast %461 : i32 to index
    %463 = memref.load %arg5[%462] : memref<54xf32, #tpu.memory_space<smem>>
    %464 = vector.broadcast %453 : f32 to vector<8x128xf32>
    %465 = arith.mulf %42, %464 : vector<8x128xf32>
    %466 = vector.broadcast %456 : f32 to vector<8x128xf32>
    %467 = arith.mulf %43, %466 : vector<8x128xf32>
    %468 = arith.addf %465, %467 : vector<8x128xf32>
    %469 = vector.broadcast %459 : f32 to vector<8x128xf32>
    %470 = arith.mulf %44, %469 : vector<8x128xf32>
    %471 = arith.addf %468, %470 : vector<8x128xf32>
    %472 = arith.addf %41, %471 : vector<8x128xf32>
    %cst_108 = arith.constant 0.000000e+00 : f32
    %473 = arith.subf %cst_108, %463 : f32
    %474 = vector.broadcast %473 : f32 to vector<8x128xf32>
    %475 = arith.cmpf olt, %472, %474 : vector<8x128xf32>
    %476 = arith.andi %475, %8 : vector<8x128xi1>
    %477 = arith.extui %476 : vector<8x128xi1> to vector<8x128xi32>
    %c13_i32_109 = arith.constant 13 : i32
    %478 = vector.broadcast %c13_i32_109 : i32 to vector<8x128xi32>
    %479 = arith.shli %477, %478 : vector<8x128xi32>
    %480 = arith.ori %448, %479 : vector<8x128xi32>
    %c81_i32_110 = arith.constant 81 : i32
    %481 = arith.muli %10, %c81_i32_110 : i32
    %c42_i32 = arith.constant 42 : i32
    %482 = arith.addi %481, %c42_i32 : i32
    %c0_i32_111 = arith.constant 0 : i32
    %483 = arith.addi %482, %c0_i32_111 : i32
    %484 = arith.index_cast %483 : i32 to index
    %485 = memref.load %arg4[%484] : memref<162xf32, #tpu.memory_space<smem>>
    %c1_i32_112 = arith.constant 1 : i32
    %486 = arith.addi %482, %c1_i32_112 : i32
    %487 = arith.index_cast %486 : i32 to index
    %488 = memref.load %arg4[%487] : memref<162xf32, #tpu.memory_space<smem>>
    %c2_i32_113 = arith.constant 2 : i32
    %489 = arith.addi %482, %c2_i32_113 : i32
    %490 = arith.index_cast %489 : i32 to index
    %491 = memref.load %arg4[%490] : memref<162xf32, #tpu.memory_space<smem>>
    %c27_i32_114 = arith.constant 27 : i32
    %492 = arith.muli %10, %c27_i32_114 : i32
    %c14_i32 = arith.constant 14 : i32
    %493 = arith.addi %492, %c14_i32 : i32
    %494 = arith.index_cast %493 : i32 to index
    %495 = memref.load %arg5[%494] : memref<54xf32, #tpu.memory_space<smem>>
    %496 = vector.broadcast %485 : f32 to vector<8x128xf32>
    %497 = arith.mulf %42, %496 : vector<8x128xf32>
    %498 = vector.broadcast %488 : f32 to vector<8x128xf32>
    %499 = arith.mulf %43, %498 : vector<8x128xf32>
    %500 = arith.addf %497, %499 : vector<8x128xf32>
    %501 = vector.broadcast %491 : f32 to vector<8x128xf32>
    %502 = arith.mulf %44, %501 : vector<8x128xf32>
    %503 = arith.addf %500, %502 : vector<8x128xf32>
    %504 = arith.addf %41, %503 : vector<8x128xf32>
    %cst_115 = arith.constant 0.000000e+00 : f32
    %505 = arith.subf %cst_115, %495 : f32
    %506 = vector.broadcast %505 : f32 to vector<8x128xf32>
    %507 = arith.cmpf olt, %504, %506 : vector<8x128xf32>
    %508 = arith.extui %507 : vector<8x128xi1> to vector<8x128xi32>
    %c14_i32_116 = arith.constant 14 : i32
    %509 = vector.broadcast %c14_i32_116 : i32 to vector<8x128xi32>
    %510 = arith.shli %508, %509 : vector<8x128xi32>
    %511 = arith.ori %480, %510 : vector<8x128xi32>
    %c81_i32_117 = arith.constant 81 : i32
    %512 = arith.muli %10, %c81_i32_117 : i32
    %c45_i32 = arith.constant 45 : i32
    %513 = arith.addi %512, %c45_i32 : i32
    %c0_i32_118 = arith.constant 0 : i32
    %514 = arith.addi %513, %c0_i32_118 : i32
    %515 = arith.index_cast %514 : i32 to index
    %516 = memref.load %arg4[%515] : memref<162xf32, #tpu.memory_space<smem>>
    %c1_i32_119 = arith.constant 1 : i32
    %517 = arith.addi %513, %c1_i32_119 : i32
    %518 = arith.index_cast %517 : i32 to index
    %519 = memref.load %arg4[%518] : memref<162xf32, #tpu.memory_space<smem>>
    %c2_i32_120 = arith.constant 2 : i32
    %520 = arith.addi %513, %c2_i32_120 : i32
    %521 = arith.index_cast %520 : i32 to index
    %522 = memref.load %arg4[%521] : memref<162xf32, #tpu.memory_space<smem>>
    %c27_i32_121 = arith.constant 27 : i32
    %523 = arith.muli %10, %c27_i32_121 : i32
    %c15_i32_122 = arith.constant 15 : i32
    %524 = arith.addi %523, %c15_i32_122 : i32
    %525 = arith.index_cast %524 : i32 to index
    %526 = memref.load %arg5[%525] : memref<54xf32, #tpu.memory_space<smem>>
    %527 = vector.broadcast %516 : f32 to vector<8x128xf32>
    %528 = arith.mulf %42, %527 : vector<8x128xf32>
    %529 = vector.broadcast %519 : f32 to vector<8x128xf32>
    %530 = arith.mulf %43, %529 : vector<8x128xf32>
    %531 = arith.addf %528, %530 : vector<8x128xf32>
    %532 = vector.broadcast %522 : f32 to vector<8x128xf32>
    %533 = arith.mulf %44, %532 : vector<8x128xf32>
    %534 = arith.addf %531, %533 : vector<8x128xf32>
    %535 = arith.addf %41, %534 : vector<8x128xf32>
    %cst_123 = arith.constant 0.000000e+00 : f32
    %536 = arith.subf %cst_123, %526 : f32
    %537 = vector.broadcast %536 : f32 to vector<8x128xf32>
    %538 = arith.cmpf olt, %535, %537 : vector<8x128xf32>
    %539 = arith.extui %538 : vector<8x128xi1> to vector<8x128xi32>
    %c15_i32_124 = arith.constant 15 : i32
    %540 = vector.broadcast %c15_i32_124 : i32 to vector<8x128xi32>
    %541 = arith.shli %539, %540 : vector<8x128xi32>
    %542 = arith.ori %511, %541 : vector<8x128xi32>
    %c81_i32_125 = arith.constant 81 : i32
    %543 = arith.muli %10, %c81_i32_125 : i32
    %c48_i32 = arith.constant 48 : i32
    %544 = arith.addi %543, %c48_i32 : i32
    %c0_i32_126 = arith.constant 0 : i32
    %545 = arith.addi %544, %c0_i32_126 : i32
    %546 = arith.index_cast %545 : i32 to index
    %547 = memref.load %arg4[%546] : memref<162xf32, #tpu.memory_space<smem>>
    %c1_i32_127 = arith.constant 1 : i32
    %548 = arith.addi %544, %c1_i32_127 : i32
    %549 = arith.index_cast %548 : i32 to index
    %550 = memref.load %arg4[%549] : memref<162xf32, #tpu.memory_space<smem>>
    %c2_i32_128 = arith.constant 2 : i32
    %551 = arith.addi %544, %c2_i32_128 : i32
    %552 = arith.index_cast %551 : i32 to index
    %553 = memref.load %arg4[%552] : memref<162xf32, #tpu.memory_space<smem>>
    %c27_i32_129 = arith.constant 27 : i32
    %554 = arith.muli %10, %c27_i32_129 : i32
    %c16_i32 = arith.constant 16 : i32
    %555 = arith.addi %554, %c16_i32 : i32
    %556 = arith.index_cast %555 : i32 to index
    %557 = memref.load %arg5[%556] : memref<54xf32, #tpu.memory_space<smem>>
    %558 = vector.broadcast %547 : f32 to vector<8x128xf32>
    %559 = arith.mulf %42, %558 : vector<8x128xf32>
    %560 = vector.broadcast %550 : f32 to vector<8x128xf32>
    %561 = arith.mulf %43, %560 : vector<8x128xf32>
    %562 = arith.addf %559, %561 : vector<8x128xf32>
    %563 = vector.broadcast %553 : f32 to vector<8x128xf32>
    %564 = arith.mulf %44, %563 : vector<8x128xf32>
    %565 = arith.addf %562, %564 : vector<8x128xf32>
    %566 = arith.addf %41, %565 : vector<8x128xf32>
    %cst_130 = arith.constant 0.000000e+00 : f32
    %567 = arith.subf %cst_130, %557 : f32
    %568 = vector.broadcast %567 : f32 to vector<8x128xf32>
    %569 = arith.cmpf olt, %566, %568 : vector<8x128xf32>
    %570 = arith.extui %569 : vector<8x128xi1> to vector<8x128xi32>
    %c16_i32_131 = arith.constant 16 : i32
    %571 = vector.broadcast %c16_i32_131 : i32 to vector<8x128xi32>
    %572 = arith.shli %570, %571 : vector<8x128xi32>
    %573 = arith.ori %542, %572 : vector<8x128xi32>
    %c81_i32_132 = arith.constant 81 : i32
    %574 = arith.muli %10, %c81_i32_132 : i32
    %c51_i32 = arith.constant 51 : i32
    %575 = arith.addi %574, %c51_i32 : i32
    %c0_i32_133 = arith.constant 0 : i32
    %576 = arith.addi %575, %c0_i32_133 : i32
    %577 = arith.index_cast %576 : i32 to index
    %578 = memref.load %arg4[%577] : memref<162xf32, #tpu.memory_space<smem>>
    %c1_i32_134 = arith.constant 1 : i32
    %579 = arith.addi %575, %c1_i32_134 : i32
    %580 = arith.index_cast %579 : i32 to index
    %581 = memref.load %arg4[%580] : memref<162xf32, #tpu.memory_space<smem>>
    %c2_i32_135 = arith.constant 2 : i32
    %582 = arith.addi %575, %c2_i32_135 : i32
    %583 = arith.index_cast %582 : i32 to index
    %584 = memref.load %arg4[%583] : memref<162xf32, #tpu.memory_space<smem>>
    %c27_i32_136 = arith.constant 27 : i32
    %585 = arith.muli %10, %c27_i32_136 : i32
    %c17_i32 = arith.constant 17 : i32
    %586 = arith.addi %585, %c17_i32 : i32
    %587 = arith.index_cast %586 : i32 to index
    %588 = memref.load %arg5[%587] : memref<54xf32, #tpu.memory_space<smem>>
    %589 = vector.broadcast %578 : f32 to vector<8x128xf32>
    %590 = arith.mulf %42, %589 : vector<8x128xf32>
    %591 = vector.broadcast %581 : f32 to vector<8x128xf32>
    %592 = arith.mulf %43, %591 : vector<8x128xf32>
    %593 = arith.addf %590, %592 : vector<8x128xf32>
    %594 = vector.broadcast %584 : f32 to vector<8x128xf32>
    %595 = arith.mulf %44, %594 : vector<8x128xf32>
    %596 = arith.addf %593, %595 : vector<8x128xf32>
    %597 = arith.addf %41, %596 : vector<8x128xf32>
    %cst_137 = arith.constant 0.000000e+00 : f32
    %598 = arith.subf %cst_137, %588 : f32
    %599 = vector.broadcast %598 : f32 to vector<8x128xf32>
    %600 = arith.cmpf olt, %597, %599 : vector<8x128xf32>
    %601 = arith.extui %600 : vector<8x128xi1> to vector<8x128xi32>
    %c17_i32_138 = arith.constant 17 : i32
    %602 = vector.broadcast %c17_i32_138 : i32 to vector<8x128xi32>
    %603 = arith.shli %601, %602 : vector<8x128xi32>
    %604 = arith.ori %573, %603 : vector<8x128xi32>
    %c81_i32_139 = arith.constant 81 : i32
    %605 = arith.muli %10, %c81_i32_139 : i32
    %c54_i32 = arith.constant 54 : i32
    %606 = arith.addi %605, %c54_i32 : i32
    %c0_i32_140 = arith.constant 0 : i32
    %607 = arith.addi %606, %c0_i32_140 : i32
    %608 = arith.index_cast %607 : i32 to index
    %609 = memref.load %arg4[%608] : memref<162xf32, #tpu.memory_space<smem>>
    %c1_i32_141 = arith.constant 1 : i32
    %610 = arith.addi %606, %c1_i32_141 : i32
    %611 = arith.index_cast %610 : i32 to index
    %612 = memref.load %arg4[%611] : memref<162xf32, #tpu.memory_space<smem>>
    %c2_i32_142 = arith.constant 2 : i32
    %613 = arith.addi %606, %c2_i32_142 : i32
    %614 = arith.index_cast %613 : i32 to index
    %615 = memref.load %arg4[%614] : memref<162xf32, #tpu.memory_space<smem>>
    %c27_i32_143 = arith.constant 27 : i32
    %616 = arith.muli %10, %c27_i32_143 : i32
    %c18_i32_144 = arith.constant 18 : i32
    %617 = arith.addi %616, %c18_i32_144 : i32
    %618 = arith.index_cast %617 : i32 to index
    %619 = memref.load %arg5[%618] : memref<54xf32, #tpu.memory_space<smem>>
    %620 = vector.broadcast %609 : f32 to vector<8x128xf32>
    %621 = arith.mulf %42, %620 : vector<8x128xf32>
    %622 = vector.broadcast %612 : f32 to vector<8x128xf32>
    %623 = arith.mulf %43, %622 : vector<8x128xf32>
    %624 = arith.addf %621, %623 : vector<8x128xf32>
    %625 = vector.broadcast %615 : f32 to vector<8x128xf32>
    %626 = arith.mulf %44, %625 : vector<8x128xf32>
    %627 = arith.addf %624, %626 : vector<8x128xf32>
    %628 = arith.addf %41, %627 : vector<8x128xf32>
    %cst_145 = arith.constant 0.000000e+00 : f32
    %629 = arith.subf %cst_145, %619 : f32
    %630 = vector.broadcast %629 : f32 to vector<8x128xf32>
    %631 = arith.cmpf olt, %628, %630 : vector<8x128xf32>
    %632 = arith.extui %631 : vector<8x128xi1> to vector<8x128xi32>
    %c18_i32_146 = arith.constant 18 : i32
    %633 = vector.broadcast %c18_i32_146 : i32 to vector<8x128xi32>
    %634 = arith.shli %632, %633 : vector<8x128xi32>
    %635 = arith.ori %604, %634 : vector<8x128xi32>
    %c81_i32_147 = arith.constant 81 : i32
    %636 = arith.muli %10, %c81_i32_147 : i32
    %c57_i32 = arith.constant 57 : i32
    %637 = arith.addi %636, %c57_i32 : i32
    %c0_i32_148 = arith.constant 0 : i32
    %638 = arith.addi %637, %c0_i32_148 : i32
    %639 = arith.index_cast %638 : i32 to index
    %640 = memref.load %arg4[%639] : memref<162xf32, #tpu.memory_space<smem>>
    %c1_i32_149 = arith.constant 1 : i32
    %641 = arith.addi %637, %c1_i32_149 : i32
    %642 = arith.index_cast %641 : i32 to index
    %643 = memref.load %arg4[%642] : memref<162xf32, #tpu.memory_space<smem>>
    %c2_i32_150 = arith.constant 2 : i32
    %644 = arith.addi %637, %c2_i32_150 : i32
    %645 = arith.index_cast %644 : i32 to index
    %646 = memref.load %arg4[%645] : memref<162xf32, #tpu.memory_space<smem>>
    %c27_i32_151 = arith.constant 27 : i32
    %647 = arith.muli %10, %c27_i32_151 : i32
    %c19_i32 = arith.constant 19 : i32
    %648 = arith.addi %647, %c19_i32 : i32
    %649 = arith.index_cast %648 : i32 to index
    %650 = memref.load %arg5[%649] : memref<54xf32, #tpu.memory_space<smem>>
    %651 = vector.broadcast %640 : f32 to vector<8x128xf32>
    %652 = arith.mulf %42, %651 : vector<8x128xf32>
    %653 = vector.broadcast %643 : f32 to vector<8x128xf32>
    %654 = arith.mulf %43, %653 : vector<8x128xf32>
    %655 = arith.addf %652, %654 : vector<8x128xf32>
    %656 = vector.broadcast %646 : f32 to vector<8x128xf32>
    %657 = arith.mulf %44, %656 : vector<8x128xf32>
    %658 = arith.addf %655, %657 : vector<8x128xf32>
    %659 = arith.addf %41, %658 : vector<8x128xf32>
    %cst_152 = arith.constant 0.000000e+00 : f32
    %660 = arith.subf %cst_152, %650 : f32
    %661 = vector.broadcast %660 : f32 to vector<8x128xf32>
    %662 = arith.cmpf olt, %659, %661 : vector<8x128xf32>
    %663 = arith.extui %662 : vector<8x128xi1> to vector<8x128xi32>
    %c19_i32_153 = arith.constant 19 : i32
    %664 = vector.broadcast %c19_i32_153 : i32 to vector<8x128xi32>
    %665 = arith.shli %663, %664 : vector<8x128xi32>
    %666 = arith.ori %635, %665 : vector<8x128xi32>
    %c81_i32_154 = arith.constant 81 : i32
    %667 = arith.muli %10, %c81_i32_154 : i32
    %c60_i32 = arith.constant 60 : i32
    %668 = arith.addi %667, %c60_i32 : i32
    %c0_i32_155 = arith.constant 0 : i32
    %669 = arith.addi %668, %c0_i32_155 : i32
    %670 = arith.index_cast %669 : i32 to index
    %671 = memref.load %arg4[%670] : memref<162xf32, #tpu.memory_space<smem>>
    %c1_i32_156 = arith.constant 1 : i32
    %672 = arith.addi %668, %c1_i32_156 : i32
    %673 = arith.index_cast %672 : i32 to index
    %674 = memref.load %arg4[%673] : memref<162xf32, #tpu.memory_space<smem>>
    %c2_i32_157 = arith.constant 2 : i32
    %675 = arith.addi %668, %c2_i32_157 : i32
    %676 = arith.index_cast %675 : i32 to index
    %677 = memref.load %arg4[%676] : memref<162xf32, #tpu.memory_space<smem>>
    %c27_i32_158 = arith.constant 27 : i32
    %678 = arith.muli %10, %c27_i32_158 : i32
    %c20_i32 = arith.constant 20 : i32
    %679 = arith.addi %678, %c20_i32 : i32
    %680 = arith.index_cast %679 : i32 to index
    %681 = memref.load %arg5[%680] : memref<54xf32, #tpu.memory_space<smem>>
    %682 = vector.broadcast %671 : f32 to vector<8x128xf32>
    %683 = arith.mulf %42, %682 : vector<8x128xf32>
    %684 = vector.broadcast %674 : f32 to vector<8x128xf32>
    %685 = arith.mulf %43, %684 : vector<8x128xf32>
    %686 = arith.addf %683, %685 : vector<8x128xf32>
    %687 = vector.broadcast %677 : f32 to vector<8x128xf32>
    %688 = arith.mulf %44, %687 : vector<8x128xf32>
    %689 = arith.addf %686, %688 : vector<8x128xf32>
    %690 = arith.addf %41, %689 : vector<8x128xf32>
    %cst_159 = arith.constant 0.000000e+00 : f32
    %691 = arith.subf %cst_159, %681 : f32
    %692 = vector.broadcast %691 : f32 to vector<8x128xf32>
    %693 = arith.cmpf olt, %690, %692 : vector<8x128xf32>
    %694 = arith.extui %693 : vector<8x128xi1> to vector<8x128xi32>
    %c20_i32_160 = arith.constant 20 : i32
    %695 = vector.broadcast %c20_i32_160 : i32 to vector<8x128xi32>
    %696 = arith.shli %694, %695 : vector<8x128xi32>
    %697 = arith.ori %666, %696 : vector<8x128xi32>
    %c81_i32_161 = arith.constant 81 : i32
    %698 = arith.muli %10, %c81_i32_161 : i32
    %c63_i32 = arith.constant 63 : i32
    %699 = arith.addi %698, %c63_i32 : i32
    %c0_i32_162 = arith.constant 0 : i32
    %700 = arith.addi %699, %c0_i32_162 : i32
    %701 = arith.index_cast %700 : i32 to index
    %702 = memref.load %arg4[%701] : memref<162xf32, #tpu.memory_space<smem>>
    %c1_i32_163 = arith.constant 1 : i32
    %703 = arith.addi %699, %c1_i32_163 : i32
    %704 = arith.index_cast %703 : i32 to index
    %705 = memref.load %arg4[%704] : memref<162xf32, #tpu.memory_space<smem>>
    %c2_i32_164 = arith.constant 2 : i32
    %706 = arith.addi %699, %c2_i32_164 : i32
    %707 = arith.index_cast %706 : i32 to index
    %708 = memref.load %arg4[%707] : memref<162xf32, #tpu.memory_space<smem>>
    %c27_i32_165 = arith.constant 27 : i32
    %709 = arith.muli %10, %c27_i32_165 : i32
    %c21_i32_166 = arith.constant 21 : i32
    %710 = arith.addi %709, %c21_i32_166 : i32
    %711 = arith.index_cast %710 : i32 to index
    %712 = memref.load %arg5[%711] : memref<54xf32, #tpu.memory_space<smem>>
    %713 = vector.broadcast %702 : f32 to vector<8x128xf32>
    %714 = arith.mulf %42, %713 : vector<8x128xf32>
    %715 = vector.broadcast %705 : f32 to vector<8x128xf32>
    %716 = arith.mulf %43, %715 : vector<8x128xf32>
    %717 = arith.addf %714, %716 : vector<8x128xf32>
    %718 = vector.broadcast %708 : f32 to vector<8x128xf32>
    %719 = arith.mulf %44, %718 : vector<8x128xf32>
    %720 = arith.addf %717, %719 : vector<8x128xf32>
    %721 = arith.addf %41, %720 : vector<8x128xf32>
    %cst_167 = arith.constant 0.000000e+00 : f32
    %722 = arith.subf %cst_167, %712 : f32
    %723 = vector.broadcast %722 : f32 to vector<8x128xf32>
    %724 = arith.cmpf olt, %721, %723 : vector<8x128xf32>
    %725 = arith.extui %724 : vector<8x128xi1> to vector<8x128xi32>
    %c21_i32_168 = arith.constant 21 : i32
    %726 = vector.broadcast %c21_i32_168 : i32 to vector<8x128xi32>
    %727 = arith.shli %725, %726 : vector<8x128xi32>
    %728 = arith.ori %697, %727 : vector<8x128xi32>
    %c81_i32_169 = arith.constant 81 : i32
    %729 = arith.muli %10, %c81_i32_169 : i32
    %c66_i32 = arith.constant 66 : i32
    %730 = arith.addi %729, %c66_i32 : i32
    %c0_i32_170 = arith.constant 0 : i32
    %731 = arith.addi %730, %c0_i32_170 : i32
    %732 = arith.index_cast %731 : i32 to index
    %733 = memref.load %arg4[%732] : memref<162xf32, #tpu.memory_space<smem>>
    %c1_i32_171 = arith.constant 1 : i32
    %734 = arith.addi %730, %c1_i32_171 : i32
    %735 = arith.index_cast %734 : i32 to index
    %736 = memref.load %arg4[%735] : memref<162xf32, #tpu.memory_space<smem>>
    %c2_i32_172 = arith.constant 2 : i32
    %737 = arith.addi %730, %c2_i32_172 : i32
    %738 = arith.index_cast %737 : i32 to index
    %739 = memref.load %arg4[%738] : memref<162xf32, #tpu.memory_space<smem>>
    %c27_i32_173 = arith.constant 27 : i32
    %740 = arith.muli %10, %c27_i32_173 : i32
    %c22_i32 = arith.constant 22 : i32
    %741 = arith.addi %740, %c22_i32 : i32
    %742 = arith.index_cast %741 : i32 to index
    %743 = memref.load %arg5[%742] : memref<54xf32, #tpu.memory_space<smem>>
    %744 = vector.broadcast %733 : f32 to vector<8x128xf32>
    %745 = arith.mulf %42, %744 : vector<8x128xf32>
    %746 = vector.broadcast %736 : f32 to vector<8x128xf32>
    %747 = arith.mulf %43, %746 : vector<8x128xf32>
    %748 = arith.addf %745, %747 : vector<8x128xf32>
    %749 = vector.broadcast %739 : f32 to vector<8x128xf32>
    %750 = arith.mulf %44, %749 : vector<8x128xf32>
    %751 = arith.addf %748, %750 : vector<8x128xf32>
    %752 = arith.addf %41, %751 : vector<8x128xf32>
    %cst_174 = arith.constant 0.000000e+00 : f32
    %753 = arith.subf %cst_174, %743 : f32
    %754 = vector.broadcast %753 : f32 to vector<8x128xf32>
    %755 = arith.cmpf olt, %752, %754 : vector<8x128xf32>
    %756 = arith.extui %755 : vector<8x128xi1> to vector<8x128xi32>
    %c22_i32_175 = arith.constant 22 : i32
    %757 = vector.broadcast %c22_i32_175 : i32 to vector<8x128xi32>
    %758 = arith.shli %756, %757 : vector<8x128xi32>
    %759 = arith.ori %728, %758 : vector<8x128xi32>
    %c81_i32_176 = arith.constant 81 : i32
    %760 = arith.muli %10, %c81_i32_176 : i32
    %c69_i32 = arith.constant 69 : i32
    %761 = arith.addi %760, %c69_i32 : i32
    %c0_i32_177 = arith.constant 0 : i32
    %762 = arith.addi %761, %c0_i32_177 : i32
    %763 = arith.index_cast %762 : i32 to index
    %764 = memref.load %arg4[%763] : memref<162xf32, #tpu.memory_space<smem>>
    %c1_i32_178 = arith.constant 1 : i32
    %765 = arith.addi %761, %c1_i32_178 : i32
    %766 = arith.index_cast %765 : i32 to index
    %767 = memref.load %arg4[%766] : memref<162xf32, #tpu.memory_space<smem>>
    %c2_i32_179 = arith.constant 2 : i32
    %768 = arith.addi %761, %c2_i32_179 : i32
    %769 = arith.index_cast %768 : i32 to index
    %770 = memref.load %arg4[%769] : memref<162xf32, #tpu.memory_space<smem>>
    %c27_i32_180 = arith.constant 27 : i32
    %771 = arith.muli %10, %c27_i32_180 : i32
    %c23_i32 = arith.constant 23 : i32
    %772 = arith.addi %771, %c23_i32 : i32
    %773 = arith.index_cast %772 : i32 to index
    %774 = memref.load %arg5[%773] : memref<54xf32, #tpu.memory_space<smem>>
    %775 = vector.broadcast %764 : f32 to vector<8x128xf32>
    %776 = arith.mulf %42, %775 : vector<8x128xf32>
    %777 = vector.broadcast %767 : f32 to vector<8x128xf32>
    %778 = arith.mulf %43, %777 : vector<8x128xf32>
    %779 = arith.addf %776, %778 : vector<8x128xf32>
    %780 = vector.broadcast %770 : f32 to vector<8x128xf32>
    %781 = arith.mulf %44, %780 : vector<8x128xf32>
    %782 = arith.addf %779, %781 : vector<8x128xf32>
    %783 = arith.addf %41, %782 : vector<8x128xf32>
    %cst_181 = arith.constant 0.000000e+00 : f32
    %784 = arith.subf %cst_181, %774 : f32
    %785 = vector.broadcast %784 : f32 to vector<8x128xf32>
    %786 = arith.cmpf olt, %783, %785 : vector<8x128xf32>
    %787 = arith.extui %786 : vector<8x128xi1> to vector<8x128xi32>
    %c23_i32_182 = arith.constant 23 : i32
    %788 = vector.broadcast %c23_i32_182 : i32 to vector<8x128xi32>
    %789 = arith.shli %787, %788 : vector<8x128xi32>
    %790 = arith.ori %759, %789 : vector<8x128xi32>
    %c81_i32_183 = arith.constant 81 : i32
    %791 = arith.muli %10, %c81_i32_183 : i32
    %c72_i32 = arith.constant 72 : i32
    %792 = arith.addi %791, %c72_i32 : i32
    %c0_i32_184 = arith.constant 0 : i32
    %793 = arith.addi %792, %c0_i32_184 : i32
    %794 = arith.index_cast %793 : i32 to index
    %795 = memref.load %arg4[%794] : memref<162xf32, #tpu.memory_space<smem>>
    %c1_i32_185 = arith.constant 1 : i32
    %796 = arith.addi %792, %c1_i32_185 : i32
    %797 = arith.index_cast %796 : i32 to index
    %798 = memref.load %arg4[%797] : memref<162xf32, #tpu.memory_space<smem>>
    %c2_i32_186 = arith.constant 2 : i32
    %799 = arith.addi %792, %c2_i32_186 : i32
    %800 = arith.index_cast %799 : i32 to index
    %801 = memref.load %arg4[%800] : memref<162xf32, #tpu.memory_space<smem>>
    %c27_i32_187 = arith.constant 27 : i32
    %802 = arith.muli %10, %c27_i32_187 : i32
    %c24_i32_188 = arith.constant 24 : i32
    %803 = arith.addi %802, %c24_i32_188 : i32
    %804 = arith.index_cast %803 : i32 to index
    %805 = memref.load %arg5[%804] : memref<54xf32, #tpu.memory_space<smem>>
    %806 = vector.broadcast %795 : f32 to vector<8x128xf32>
    %807 = arith.mulf %42, %806 : vector<8x128xf32>
    %808 = vector.broadcast %798 : f32 to vector<8x128xf32>
    %809 = arith.mulf %43, %808 : vector<8x128xf32>
    %810 = arith.addf %807, %809 : vector<8x128xf32>
    %811 = vector.broadcast %801 : f32 to vector<8x128xf32>
    %812 = arith.mulf %44, %811 : vector<8x128xf32>
    %813 = arith.addf %810, %812 : vector<8x128xf32>
    %814 = arith.addf %41, %813 : vector<8x128xf32>
    %cst_189 = arith.constant 0.000000e+00 : f32
    %815 = arith.subf %cst_189, %805 : f32
    %816 = vector.broadcast %815 : f32 to vector<8x128xf32>
    %817 = arith.cmpf olt, %814, %816 : vector<8x128xf32>
    %818 = arith.extui %817 : vector<8x128xi1> to vector<8x128xi32>
    %c24_i32_190 = arith.constant 24 : i32
    %819 = vector.broadcast %c24_i32_190 : i32 to vector<8x128xi32>
    %820 = arith.shli %818, %819 : vector<8x128xi32>
    %821 = arith.ori %790, %820 : vector<8x128xi32>
    %c81_i32_191 = arith.constant 81 : i32
    %822 = arith.muli %10, %c81_i32_191 : i32
    %c75_i32 = arith.constant 75 : i32
    %823 = arith.addi %822, %c75_i32 : i32
    %c0_i32_192 = arith.constant 0 : i32
    %824 = arith.addi %823, %c0_i32_192 : i32
    %825 = arith.index_cast %824 : i32 to index
    %826 = memref.load %arg4[%825] : memref<162xf32, #tpu.memory_space<smem>>
    %c1_i32_193 = arith.constant 1 : i32
    %827 = arith.addi %823, %c1_i32_193 : i32
    %828 = arith.index_cast %827 : i32 to index
    %829 = memref.load %arg4[%828] : memref<162xf32, #tpu.memory_space<smem>>
    %c2_i32_194 = arith.constant 2 : i32
    %830 = arith.addi %823, %c2_i32_194 : i32
    %831 = arith.index_cast %830 : i32 to index
    %832 = memref.load %arg4[%831] : memref<162xf32, #tpu.memory_space<smem>>
    %c27_i32_195 = arith.constant 27 : i32
    %833 = arith.muli %10, %c27_i32_195 : i32
    %c25_i32 = arith.constant 25 : i32
    %834 = arith.addi %833, %c25_i32 : i32
    %835 = arith.index_cast %834 : i32 to index
    %836 = memref.load %arg5[%835] : memref<54xf32, #tpu.memory_space<smem>>
    %837 = vector.broadcast %826 : f32 to vector<8x128xf32>
    %838 = arith.mulf %42, %837 : vector<8x128xf32>
    %839 = vector.broadcast %829 : f32 to vector<8x128xf32>
    %840 = arith.mulf %43, %839 : vector<8x128xf32>
    %841 = arith.addf %838, %840 : vector<8x128xf32>
    %842 = vector.broadcast %832 : f32 to vector<8x128xf32>
    %843 = arith.mulf %44, %842 : vector<8x128xf32>
    %844 = arith.addf %841, %843 : vector<8x128xf32>
    %845 = arith.addf %41, %844 : vector<8x128xf32>
    %cst_196 = arith.constant 0.000000e+00 : f32
    %846 = arith.subf %cst_196, %836 : f32
    %847 = vector.broadcast %846 : f32 to vector<8x128xf32>
    %848 = arith.cmpf olt, %845, %847 : vector<8x128xf32>
    %849 = arith.extui %848 : vector<8x128xi1> to vector<8x128xi32>
    %c25_i32_197 = arith.constant 25 : i32
    %850 = vector.broadcast %c25_i32_197 : i32 to vector<8x128xi32>
    %851 = arith.shli %849, %850 : vector<8x128xi32>
    %852 = arith.ori %821, %851 : vector<8x128xi32>
    %c81_i32_198 = arith.constant 81 : i32
    %853 = arith.muli %10, %c81_i32_198 : i32
    %c78_i32 = arith.constant 78 : i32
    %854 = arith.addi %853, %c78_i32 : i32
    %c0_i32_199 = arith.constant 0 : i32
    %855 = arith.addi %854, %c0_i32_199 : i32
    %856 = arith.index_cast %855 : i32 to index
    %857 = memref.load %arg4[%856] : memref<162xf32, #tpu.memory_space<smem>>
    %c1_i32_200 = arith.constant 1 : i32
    %858 = arith.addi %854, %c1_i32_200 : i32
    %859 = arith.index_cast %858 : i32 to index
    %860 = memref.load %arg4[%859] : memref<162xf32, #tpu.memory_space<smem>>
    %c2_i32_201 = arith.constant 2 : i32
    %861 = arith.addi %854, %c2_i32_201 : i32
    %862 = arith.index_cast %861 : i32 to index
    %863 = memref.load %arg4[%862] : memref<162xf32, #tpu.memory_space<smem>>
    %c27_i32_202 = arith.constant 27 : i32
    %864 = arith.muli %10, %c27_i32_202 : i32
    %c26_i32 = arith.constant 26 : i32
    %865 = arith.addi %864, %c26_i32 : i32
    %866 = arith.index_cast %865 : i32 to index
    %867 = memref.load %arg5[%866] : memref<54xf32, #tpu.memory_space<smem>>
    %868 = vector.broadcast %857 : f32 to vector<8x128xf32>
    %869 = arith.mulf %42, %868 : vector<8x128xf32>
    %870 = vector.broadcast %860 : f32 to vector<8x128xf32>
    %871 = arith.mulf %43, %870 : vector<8x128xf32>
    %872 = arith.addf %869, %871 : vector<8x128xf32>
    %873 = vector.broadcast %863 : f32 to vector<8x128xf32>
    %874 = arith.mulf %44, %873 : vector<8x128xf32>
    %875 = arith.addf %872, %874 : vector<8x128xf32>
    %876 = arith.addf %41, %875 : vector<8x128xf32>
    %cst_203 = arith.constant 0.000000e+00 : f32
    %877 = arith.subf %cst_203, %867 : f32
    %878 = vector.broadcast %877 : f32 to vector<8x128xf32>
    %879 = arith.cmpf olt, %876, %878 : vector<8x128xf32>
    %880 = arith.extui %879 : vector<8x128xi1> to vector<8x128xi32>
    %c26_i32_204 = arith.constant 26 : i32
    %881 = vector.broadcast %c26_i32_204 : i32 to vector<8x128xi32>
    %882 = arith.shli %880, %881 : vector<8x128xi32>
    %883 = arith.ori %852, %882 : vector<8x128xi32>
    %884 = arith.index_cast %10 : i32 to index
    %885 = memref.load %arg3[%884] : memref<2xi32, #tpu.memory_space<smem>>
    %886 = vector.broadcast %885 : i32 to vector<8x128xi32>
    %887 = arith.cmpi slt, %3, %886 : vector<8x128xi32>
    %888 = vector.broadcast %885 : i32 to vector<8x128xi32>
    %889 = arith.cmpi slt, %7, %888 : vector<8x128xi32>
    %890 = arith.andi %887, %889 : vector<8x128xi1>
    %c0_i32_205 = arith.constant 0 : i32
    %891 = vector.broadcast %c0_i32_205 : i32 to vector<8x128xi32>
    %892 = arith.select %890, %883, %891 : vector<8x128xi1>, vector<8x128xi32>
    %c0_206 = arith.constant 0 : index
    %c0_207 = arith.constant 0 : index
    %c0_208 = arith.constant 0 : index
    %893 = vector.load %arg8[%c0_206, %c0_207, %c0_208] : memref<2x8x128xi32, #tpu.memory_space<vmem>>, vector<1x8x128xi32>
    %894 = vector.shape_cast %893 : vector<1x8x128xi32> to vector<8x128xi32>
    %895 = vector.shape_cast %892 : vector<8x128xi32> to vector<1x8x128xi32>
    tpu.vector_store %arg8[%c0_206, %c0_207, %c0_208], %895 {strides = array<i32>} : memref<2x8x128xi32, #tpu.memory_space<vmem>>, vector<1x8x128xi32>,
    %c2_i32_209 = arith.constant 2 : i32
    %896 = arith.muli %arg0, %c2_i32_209 : i32
    %c1_i32_210 = arith.constant 1 : i32
    %897 = arith.addi %896, %c1_i32_210 : i32
    %c1 = arith.constant 1 : index
    %c0_211 = arith.constant 0 : index
    %c0_212 = arith.constant 0 : index
    %898 = vector.load %arg6[%c1, %c0_211, %c0_212] : memref<2x8x4xf32, #tpu.memory_space<vmem>>, vector<1x8x4xf32>
    %899 = vector.shape_cast %898 : vector<1x8x4xf32> to vector<8x4xf32>
    %c1_213 = arith.constant 1 : index
    %c0_214 = arith.constant 0 : index
    %c0_215 = arith.constant 0 : index
    %900 = vector.load %arg7[%c1_213, %c0_214, %c0_215] : memref<2x4x128xf32, #tpu.memory_space<vmem>>, vector<1x4x128xf32>
    %901 = vector.shape_cast %900 : vector<1x4x128xf32> to vector<4x128xf32>
    %902 = vector.extract_strided_slice %901 {offsets = [0, 0], sizes = [1, 128], strides = [1, 1]} : vector<4x128xf32> to vector<1x128xf32>
    %903 = vector.extract_strided_slice %899 {offsets = [0, 0], sizes = [8, 1], strides = [1, 1]} : vector<8x4xf32> to vector<8x1xf32>
    %904 = vector.broadcast %902 : vector<1x128xf32> to vector<8x128xf32>
    %905 = vector.broadcast %903 : vector<8x1xf32> to vector<8x128xf32>
    %906 = arith.subf %904, %905 : vector<8x128xf32>
    %907 = vector.extract_strided_slice %901 {offsets = [1, 0], sizes = [1, 128], strides = [1, 1]} : vector<4x128xf32> to vector<1x128xf32>
    %908 = vector.extract_strided_slice %899 {offsets = [0, 1], sizes = [8, 1], strides = [1, 1]} : vector<8x4xf32> to vector<8x1xf32>
    %909 = vector.broadcast %907 : vector<1x128xf32> to vector<8x128xf32>
    %910 = vector.broadcast %908 : vector<8x1xf32> to vector<8x128xf32>
    %911 = arith.subf %909, %910 : vector<8x128xf32>
    %912 = vector.extract_strided_slice %901 {offsets = [2, 0], sizes = [1, 128], strides = [1, 1]} : vector<4x128xf32> to vector<1x128xf32>
    %913 = vector.extract_strided_slice %899 {offsets = [0, 2], sizes = [8, 1], strides = [1, 1]} : vector<8x4xf32> to vector<8x1xf32>
    %914 = vector.broadcast %912 : vector<1x128xf32> to vector<8x128xf32>
    %915 = vector.broadcast %913 : vector<8x1xf32> to vector<8x128xf32>
    %916 = arith.subf %914, %915 : vector<8x128xf32>
    %917 = vector.extract_strided_slice %899 {offsets = [0, 3], sizes = [8, 1], strides = [1, 1]} : vector<8x4xf32> to vector<8x1xf32>
    %918 = vector.extract_strided_slice %901 {offsets = [3, 0], sizes = [1, 128], strides = [1, 1]} : vector<4x128xf32> to vector<1x128xf32>
    %919 = vector.broadcast %917 : vector<8x1xf32> to vector<8x128xf32>
    %920 = vector.broadcast %918 : vector<1x128xf32> to vector<8x128xf32>
    %921 = arith.addf %919, %920 : vector<8x128xf32>
    %922 = arith.mulf %906, %906 : vector<8x128xf32>
    %923 = arith.mulf %911, %911 : vector<8x128xf32>
    %924 = arith.addf %922, %923 : vector<8x128xf32>
    %925 = arith.mulf %916, %916 : vector<8x128xf32>
    %926 = arith.addf %924, %925 : vector<8x128xf32>
    %927 = arith.mulf %921, %921 : vector<8x128xf32>
    %928 = arith.subf %926, %927 : vector<8x128xf32>
    %929 = arith.addf %906, %906 : vector<8x128xf32>
    %930 = arith.addf %911, %911 : vector<8x128xf32>
    %931 = arith.addf %916, %916 : vector<8x128xf32>
    %c0_i32_216 = arith.constant 0 : i32
    %932 = vector.broadcast %c0_i32_216 : i32 to vector<8x128xi32>
    %c81_i32_217 = arith.constant 81 : i32
    %933 = arith.muli %897, %c81_i32_217 : i32
    %c0_i32_218 = arith.constant 0 : i32
    %934 = arith.addi %933, %c0_i32_218 : i32
    %c0_i32_219 = arith.constant 0 : i32
    %935 = arith.addi %934, %c0_i32_219 : i32
    %936 = arith.index_cast %935 : i32 to index
    %937 = memref.load %arg4[%936] : memref<162xf32, #tpu.memory_space<smem>>
    %c1_i32_220 = arith.constant 1 : i32
    %938 = arith.addi %934, %c1_i32_220 : i32
    %939 = arith.index_cast %938 : i32 to index
    %940 = memref.load %arg4[%939] : memref<162xf32, #tpu.memory_space<smem>>
    %c2_i32_221 = arith.constant 2 : i32
    %941 = arith.addi %934, %c2_i32_221 : i32
    %942 = arith.index_cast %941 : i32 to index
    %943 = memref.load %arg4[%942] : memref<162xf32, #tpu.memory_space<smem>>
    %c27_i32_222 = arith.constant 27 : i32
    %944 = arith.muli %897, %c27_i32_222 : i32
    %c0_i32_223 = arith.constant 0 : i32
    %945 = arith.addi %944, %c0_i32_223 : i32
    %946 = arith.index_cast %945 : i32 to index
    %947 = memref.load %arg5[%946] : memref<54xf32, #tpu.memory_space<smem>>
    %948 = vector.broadcast %937 : f32 to vector<8x128xf32>
    %949 = arith.mulf %929, %948 : vector<8x128xf32>
    %950 = vector.broadcast %940 : f32 to vector<8x128xf32>
    %951 = arith.mulf %930, %950 : vector<8x128xf32>
    %952 = arith.addf %949, %951 : vector<8x128xf32>
    %953 = vector.broadcast %943 : f32 to vector<8x128xf32>
    %954 = arith.mulf %931, %953 : vector<8x128xf32>
    %955 = arith.addf %952, %954 : vector<8x128xf32>
    %956 = arith.addf %928, %955 : vector<8x128xf32>
    %cst_224 = arith.constant 0.000000e+00 : f32
    %957 = arith.subf %cst_224, %947 : f32
    %958 = vector.broadcast %957 : f32 to vector<8x128xf32>
    %959 = arith.cmpf olt, %956, %958 : vector<8x128xf32>
    %960 = arith.extui %959 : vector<8x128xi1> to vector<8x128xi32>
    %c0_i32_225 = arith.constant 0 : i32
    %961 = vector.broadcast %c0_i32_225 : i32 to vector<8x128xi32>
    %962 = arith.shli %960, %961 : vector<8x128xi32>
    %963 = arith.ori %932, %962 : vector<8x128xi32>
    %c81_i32_226 = arith.constant 81 : i32
    %964 = arith.muli %897, %c81_i32_226 : i32
    %c3_i32_227 = arith.constant 3 : i32
    %965 = arith.addi %964, %c3_i32_227 : i32
    %c0_i32_228 = arith.constant 0 : i32
    %966 = arith.addi %965, %c0_i32_228 : i32
    %967 = arith.index_cast %966 : i32 to index
    %968 = memref.load %arg4[%967] : memref<162xf32, #tpu.memory_space<smem>>
    %c1_i32_229 = arith.constant 1 : i32
    %969 = arith.addi %965, %c1_i32_229 : i32
    %970 = arith.index_cast %969 : i32 to index
    %971 = memref.load %arg4[%970] : memref<162xf32, #tpu.memory_space<smem>>
    %c2_i32_230 = arith.constant 2 : i32
    %972 = arith.addi %965, %c2_i32_230 : i32
    %973 = arith.index_cast %972 : i32 to index
    %974 = memref.load %arg4[%973] : memref<162xf32, #tpu.memory_space<smem>>
    %c27_i32_231 = arith.constant 27 : i32
    %975 = arith.muli %897, %c27_i32_231 : i32
    %c1_i32_232 = arith.constant 1 : i32
    %976 = arith.addi %975, %c1_i32_232 : i32
    %977 = arith.index_cast %976 : i32 to index
    %978 = memref.load %arg5[%977] : memref<54xf32, #tpu.memory_space<smem>>
    %979 = vector.broadcast %968 : f32 to vector<8x128xf32>
    %980 = arith.mulf %929, %979 : vector<8x128xf32>
    %981 = vector.broadcast %971 : f32 to vector<8x128xf32>
    %982 = arith.mulf %930, %981 : vector<8x128xf32>
    %983 = arith.addf %980, %982 : vector<8x128xf32>
    %984 = vector.broadcast %974 : f32 to vector<8x128xf32>
    %985 = arith.mulf %931, %984 : vector<8x128xf32>
    %986 = arith.addf %983, %985 : vector<8x128xf32>
    %987 = arith.addf %928, %986 : vector<8x128xf32>
    %cst_233 = arith.constant 0.000000e+00 : f32
    %988 = arith.subf %cst_233, %978 : f32
    %989 = vector.broadcast %988 : f32 to vector<8x128xf32>
    %990 = arith.cmpf olt, %987, %989 : vector<8x128xf32>
    %991 = arith.extui %990 : vector<8x128xi1> to vector<8x128xi32>
    %c1_i32_234 = arith.constant 1 : i32
    %992 = vector.broadcast %c1_i32_234 : i32 to vector<8x128xi32>
    %993 = arith.shli %991, %992 : vector<8x128xi32>
    %994 = arith.ori %963, %993 : vector<8x128xi32>
    %c81_i32_235 = arith.constant 81 : i32
    %995 = arith.muli %897, %c81_i32_235 : i32
    %c6_i32_236 = arith.constant 6 : i32
    %996 = arith.addi %995, %c6_i32_236 : i32
    %c0_i32_237 = arith.constant 0 : i32
    %997 = arith.addi %996, %c0_i32_237 : i32
    %998 = arith.index_cast %997 : i32 to index
    %999 = memref.load %arg4[%998] : memref<162xf32, #tpu.memory_space<smem>>
    %c1_i32_238 = arith.constant 1 : i32
    %1000 = arith.addi %996, %c1_i32_238 : i32
    %1001 = arith.index_cast %1000 : i32 to index
    %1002 = memref.load %arg4[%1001] : memref<162xf32, #tpu.memory_space<smem>>
    %c2_i32_239 = arith.constant 2 : i32
    %1003 = arith.addi %996, %c2_i32_239 : i32
    %1004 = arith.index_cast %1003 : i32 to index
    %1005 = memref.load %arg4[%1004] : memref<162xf32, #tpu.memory_space<smem>>
    %c27_i32_240 = arith.constant 27 : i32
    %1006 = arith.muli %897, %c27_i32_240 : i32
    %c2_i32_241 = arith.constant 2 : i32
    %1007 = arith.addi %1006, %c2_i32_241 : i32
    %1008 = arith.index_cast %1007 : i32 to index
    %1009 = memref.load %arg5[%1008] : memref<54xf32, #tpu.memory_space<smem>>
    %1010 = vector.broadcast %999 : f32 to vector<8x128xf32>
    %1011 = arith.mulf %929, %1010 : vector<8x128xf32>
    %1012 = vector.broadcast %1002 : f32 to vector<8x128xf32>
    %1013 = arith.mulf %930, %1012 : vector<8x128xf32>
    %1014 = arith.addf %1011, %1013 : vector<8x128xf32>
    %1015 = vector.broadcast %1005 : f32 to vector<8x128xf32>
    %1016 = arith.mulf %931, %1015 : vector<8x128xf32>
    %1017 = arith.addf %1014, %1016 : vector<8x128xf32>
    %1018 = arith.addf %928, %1017 : vector<8x128xf32>
    %cst_242 = arith.constant 0.000000e+00 : f32
    %1019 = arith.subf %cst_242, %1009 : f32
    %1020 = vector.broadcast %1019 : f32 to vector<8x128xf32>
    %1021 = arith.cmpf olt, %1018, %1020 : vector<8x128xf32>
    %1022 = arith.extui %1021 : vector<8x128xi1> to vector<8x128xi32>
    %c2_i32_243 = arith.constant 2 : i32
    %1023 = vector.broadcast %c2_i32_243 : i32 to vector<8x128xi32>
    %1024 = arith.shli %1022, %1023 : vector<8x128xi32>
    %1025 = arith.ori %994, %1024 : vector<8x128xi32>
    %c81_i32_244 = arith.constant 81 : i32
    %1026 = arith.muli %897, %c81_i32_244 : i32
    %c9_i32_245 = arith.constant 9 : i32
    %1027 = arith.addi %1026, %c9_i32_245 : i32
    %c0_i32_246 = arith.constant 0 : i32
    %1028 = arith.addi %1027, %c0_i32_246 : i32
    %1029 = arith.index_cast %1028 : i32 to index
    %1030 = memref.load %arg4[%1029] : memref<162xf32, #tpu.memory_space<smem>>
    %c1_i32_247 = arith.constant 1 : i32
    %1031 = arith.addi %1027, %c1_i32_247 : i32
    %1032 = arith.index_cast %1031 : i32 to index
    %1033 = memref.load %arg4[%1032] : memref<162xf32, #tpu.memory_space<smem>>
    %c2_i32_248 = arith.constant 2 : i32
    %1034 = arith.addi %1027, %c2_i32_248 : i32
    %1035 = arith.index_cast %1034 : i32 to index
    %1036 = memref.load %arg4[%1035] : memref<162xf32, #tpu.memory_space<smem>>
    %c27_i32_249 = arith.constant 27 : i32
    %1037 = arith.muli %897, %c27_i32_249 : i32
    %c3_i32_250 = arith.constant 3 : i32
    %1038 = arith.addi %1037, %c3_i32_250 : i32
    %1039 = arith.index_cast %1038 : i32 to index
    %1040 = memref.load %arg5[%1039] : memref<54xf32, #tpu.memory_space<smem>>
    %1041 = vector.broadcast %1030 : f32 to vector<8x128xf32>
    %1042 = arith.mulf %929, %1041 : vector<8x128xf32>
    %1043 = vector.broadcast %1033 : f32 to vector<8x128xf32>
    %1044 = arith.mulf %930, %1043 : vector<8x128xf32>
    %1045 = arith.addf %1042, %1044 : vector<8x128xf32>
    %1046 = vector.broadcast %1036 : f32 to vector<8x128xf32>
    %1047 = arith.mulf %931, %1046 : vector<8x128xf32>
    %1048 = arith.addf %1045, %1047 : vector<8x128xf32>
    %1049 = arith.addf %928, %1048 : vector<8x128xf32>
    %cst_251 = arith.constant 0.000000e+00 : f32
    %1050 = arith.subf %cst_251, %1040 : f32
    %1051 = vector.broadcast %1050 : f32 to vector<8x128xf32>
    %1052 = arith.cmpf olt, %1049, %1051 : vector<8x128xf32>
    %1053 = arith.extui %1052 : vector<8x128xi1> to vector<8x128xi32>
    %c3_i32_252 = arith.constant 3 : i32
    %1054 = vector.broadcast %c3_i32_252 : i32 to vector<8x128xi32>
    %1055 = arith.shli %1053, %1054 : vector<8x128xi32>
    %1056 = arith.ori %1025, %1055 : vector<8x128xi32>
    %c81_i32_253 = arith.constant 81 : i32
    %1057 = arith.muli %897, %c81_i32_253 : i32
    %c12_i32_254 = arith.constant 12 : i32
    %1058 = arith.addi %1057, %c12_i32_254 : i32
    %c0_i32_255 = arith.constant 0 : i32
    %1059 = arith.addi %1058, %c0_i32_255 : i32
    %1060 = arith.index_cast %1059 : i32 to index
    %1061 = memref.load %arg4[%1060] : memref<162xf32, #tpu.memory_space<smem>>
    %c1_i32_256 = arith.constant 1 : i32
    %1062 = arith.addi %1058, %c1_i32_256 : i32
    %1063 = arith.index_cast %1062 : i32 to index
    %1064 = memref.load %arg4[%1063] : memref<162xf32, #tpu.memory_space<smem>>
    %c2_i32_257 = arith.constant 2 : i32
    %1065 = arith.addi %1058, %c2_i32_257 : i32
    %1066 = arith.index_cast %1065 : i32 to index
    %1067 = memref.load %arg4[%1066] : memref<162xf32, #tpu.memory_space<smem>>
    %c27_i32_258 = arith.constant 27 : i32
    %1068 = arith.muli %897, %c27_i32_258 : i32
    %c4_i32_259 = arith.constant 4 : i32
    %1069 = arith.addi %1068, %c4_i32_259 : i32
    %1070 = arith.index_cast %1069 : i32 to index
    %1071 = memref.load %arg5[%1070] : memref<54xf32, #tpu.memory_space<smem>>
    %1072 = vector.broadcast %1061 : f32 to vector<8x128xf32>
    %1073 = arith.mulf %929, %1072 : vector<8x128xf32>
    %1074 = vector.broadcast %1064 : f32 to vector<8x128xf32>
    %1075 = arith.mulf %930, %1074 : vector<8x128xf32>
    %1076 = arith.addf %1073, %1075 : vector<8x128xf32>
    %1077 = vector.broadcast %1067 : f32 to vector<8x128xf32>
    %1078 = arith.mulf %931, %1077 : vector<8x128xf32>
    %1079 = arith.addf %1076, %1078 : vector<8x128xf32>
    %1080 = arith.addf %928, %1079 : vector<8x128xf32>
    %cst_260 = arith.constant 0.000000e+00 : f32
    %1081 = arith.subf %cst_260, %1071 : f32
    %1082 = vector.broadcast %1081 : f32 to vector<8x128xf32>
    %1083 = arith.cmpf olt, %1080, %1082 : vector<8x128xf32>
    %1084 = arith.extui %1083 : vector<8x128xi1> to vector<8x128xi32>
    %c4_i32_261 = arith.constant 4 : i32
    %1085 = vector.broadcast %c4_i32_261 : i32 to vector<8x128xi32>
    %1086 = arith.shli %1084, %1085 : vector<8x128xi32>
    %1087 = arith.ori %1056, %1086 : vector<8x128xi32>
    %c81_i32_262 = arith.constant 81 : i32
    %1088 = arith.muli %897, %c81_i32_262 : i32
    %c15_i32_263 = arith.constant 15 : i32
    %1089 = arith.addi %1088, %c15_i32_263 : i32
    %c0_i32_264 = arith.constant 0 : i32
    %1090 = arith.addi %1089, %c0_i32_264 : i32
    %1091 = arith.index_cast %1090 : i32 to index
    %1092 = memref.load %arg4[%1091] : memref<162xf32, #tpu.memory_space<smem>>
    %c1_i32_265 = arith.constant 1 : i32
    %1093 = arith.addi %1089, %c1_i32_265 : i32
    %1094 = arith.index_cast %1093 : i32 to index
    %1095 = memref.load %arg4[%1094] : memref<162xf32, #tpu.memory_space<smem>>
    %c2_i32_266 = arith.constant 2 : i32
    %1096 = arith.addi %1089, %c2_i32_266 : i32
    %1097 = arith.index_cast %1096 : i32 to index
    %1098 = memref.load %arg4[%1097] : memref<162xf32, #tpu.memory_space<smem>>
    %c27_i32_267 = arith.constant 27 : i32
    %1099 = arith.muli %897, %c27_i32_267 : i32
    %c5_i32_268 = arith.constant 5 : i32
    %1100 = arith.addi %1099, %c5_i32_268 : i32
    %1101 = arith.index_cast %1100 : i32 to index
    %1102 = memref.load %arg5[%1101] : memref<54xf32, #tpu.memory_space<smem>>
    %1103 = vector.broadcast %1092 : f32 to vector<8x128xf32>
    %1104 = arith.mulf %929, %1103 : vector<8x128xf32>
    %1105 = vector.broadcast %1095 : f32 to vector<8x128xf32>
    %1106 = arith.mulf %930, %1105 : vector<8x128xf32>
    %1107 = arith.addf %1104, %1106 : vector<8x128xf32>
    %1108 = vector.broadcast %1098 : f32 to vector<8x128xf32>
    %1109 = arith.mulf %931, %1108 : vector<8x128xf32>
    %1110 = arith.addf %1107, %1109 : vector<8x128xf32>
    %1111 = arith.addf %928, %1110 : vector<8x128xf32>
    %cst_269 = arith.constant 0.000000e+00 : f32
    %1112 = arith.subf %cst_269, %1102 : f32
    %1113 = vector.broadcast %1112 : f32 to vector<8x128xf32>
    %1114 = arith.cmpf olt, %1111, %1113 : vector<8x128xf32>
    %1115 = arith.extui %1114 : vector<8x128xi1> to vector<8x128xi32>
    %c5_i32_270 = arith.constant 5 : i32
    %1116 = vector.broadcast %c5_i32_270 : i32 to vector<8x128xi32>
    %1117 = arith.shli %1115, %1116 : vector<8x128xi32>
    %1118 = arith.ori %1087, %1117 : vector<8x128xi32>
    %c81_i32_271 = arith.constant 81 : i32
    %1119 = arith.muli %897, %c81_i32_271 : i32
    %c18_i32_272 = arith.constant 18 : i32
    %1120 = arith.addi %1119, %c18_i32_272 : i32
    %c0_i32_273 = arith.constant 0 : i32
    %1121 = arith.addi %1120, %c0_i32_273 : i32
    %1122 = arith.index_cast %1121 : i32 to index
    %1123 = memref.load %arg4[%1122] : memref<162xf32, #tpu.memory_space<smem>>
    %c1_i32_274 = arith.constant 1 : i32
    %1124 = arith.addi %1120, %c1_i32_274 : i32
    %1125 = arith.index_cast %1124 : i32 to index
    %1126 = memref.load %arg4[%1125] : memref<162xf32, #tpu.memory_space<smem>>
    %c2_i32_275 = arith.constant 2 : i32
    %1127 = arith.addi %1120, %c2_i32_275 : i32
    %1128 = arith.index_cast %1127 : i32 to index
    %1129 = memref.load %arg4[%1128] : memref<162xf32, #tpu.memory_space<smem>>
    %c27_i32_276 = arith.constant 27 : i32
    %1130 = arith.muli %897, %c27_i32_276 : i32
    %c6_i32_277 = arith.constant 6 : i32
    %1131 = arith.addi %1130, %c6_i32_277 : i32
    %1132 = arith.index_cast %1131 : i32 to index
    %1133 = memref.load %arg5[%1132] : memref<54xf32, #tpu.memory_space<smem>>
    %1134 = vector.broadcast %1123 : f32 to vector<8x128xf32>
    %1135 = arith.mulf %929, %1134 : vector<8x128xf32>
    %1136 = vector.broadcast %1126 : f32 to vector<8x128xf32>
    %1137 = arith.mulf %930, %1136 : vector<8x128xf32>
    %1138 = arith.addf %1135, %1137 : vector<8x128xf32>
    %1139 = vector.broadcast %1129 : f32 to vector<8x128xf32>
    %1140 = arith.mulf %931, %1139 : vector<8x128xf32>
    %1141 = arith.addf %1138, %1140 : vector<8x128xf32>
    %1142 = arith.addf %928, %1141 : vector<8x128xf32>
    %cst_278 = arith.constant 0.000000e+00 : f32
    %1143 = arith.subf %cst_278, %1133 : f32
    %1144 = vector.broadcast %1143 : f32 to vector<8x128xf32>
    %1145 = arith.cmpf olt, %1142, %1144 : vector<8x128xf32>
    %1146 = arith.extui %1145 : vector<8x128xi1> to vector<8x128xi32>
    %c6_i32_279 = arith.constant 6 : i32
    %1147 = vector.broadcast %c6_i32_279 : i32 to vector<8x128xi32>
    %1148 = arith.shli %1146, %1147 : vector<8x128xi32>
    %1149 = arith.ori %1118, %1148 : vector<8x128xi32>
    %c81_i32_280 = arith.constant 81 : i32
    %1150 = arith.muli %897, %c81_i32_280 : i32
    %c21_i32_281 = arith.constant 21 : i32
    %1151 = arith.addi %1150, %c21_i32_281 : i32
    %c0_i32_282 = arith.constant 0 : i32
    %1152 = arith.addi %1151, %c0_i32_282 : i32
    %1153 = arith.index_cast %1152 : i32 to index
    %1154 = memref.load %arg4[%1153] : memref<162xf32, #tpu.memory_space<smem>>
    %c1_i32_283 = arith.constant 1 : i32
    %1155 = arith.addi %1151, %c1_i32_283 : i32
    %1156 = arith.index_cast %1155 : i32 to index
    %1157 = memref.load %arg4[%1156] : memref<162xf32, #tpu.memory_space<smem>>
    %c2_i32_284 = arith.constant 2 : i32
    %1158 = arith.addi %1151, %c2_i32_284 : i32
    %1159 = arith.index_cast %1158 : i32 to index
    %1160 = memref.load %arg4[%1159] : memref<162xf32, #tpu.memory_space<smem>>
    %c27_i32_285 = arith.constant 27 : i32
    %1161 = arith.muli %897, %c27_i32_285 : i32
    %c7_i32_286 = arith.constant 7 : i32
    %1162 = arith.addi %1161, %c7_i32_286 : i32
    %1163 = arith.index_cast %1162 : i32 to index
    %1164 = memref.load %arg5[%1163] : memref<54xf32, #tpu.memory_space<smem>>
    %1165 = vector.broadcast %1154 : f32 to vector<8x128xf32>
    %1166 = arith.mulf %929, %1165 : vector<8x128xf32>
    %1167 = vector.broadcast %1157 : f32 to vector<8x128xf32>
    %1168 = arith.mulf %930, %1167 : vector<8x128xf32>
    %1169 = arith.addf %1166, %1168 : vector<8x128xf32>
    %1170 = vector.broadcast %1160 : f32 to vector<8x128xf32>
    %1171 = arith.mulf %931, %1170 : vector<8x128xf32>
    %1172 = arith.addf %1169, %1171 : vector<8x128xf32>
    %1173 = arith.addf %928, %1172 : vector<8x128xf32>
    %cst_287 = arith.constant 0.000000e+00 : f32
    %1174 = arith.subf %cst_287, %1164 : f32
    %1175 = vector.broadcast %1174 : f32 to vector<8x128xf32>
    %1176 = arith.cmpf olt, %1173, %1175 : vector<8x128xf32>
    %1177 = arith.extui %1176 : vector<8x128xi1> to vector<8x128xi32>
    %c7_i32_288 = arith.constant 7 : i32
    %1178 = vector.broadcast %c7_i32_288 : i32 to vector<8x128xi32>
    %1179 = arith.shli %1177, %1178 : vector<8x128xi32>
    %1180 = arith.ori %1149, %1179 : vector<8x128xi32>
    %c81_i32_289 = arith.constant 81 : i32
    %1181 = arith.muli %897, %c81_i32_289 : i32
    %c24_i32_290 = arith.constant 24 : i32
    %1182 = arith.addi %1181, %c24_i32_290 : i32
    %c0_i32_291 = arith.constant 0 : i32
    %1183 = arith.addi %1182, %c0_i32_291 : i32
    %1184 = arith.index_cast %1183 : i32 to index
    %1185 = memref.load %arg4[%1184] : memref<162xf32, #tpu.memory_space<smem>>
    %c1_i32_292 = arith.constant 1 : i32
    %1186 = arith.addi %1182, %c1_i32_292 : i32
    %1187 = arith.index_cast %1186 : i32 to index
    %1188 = memref.load %arg4[%1187] : memref<162xf32, #tpu.memory_space<smem>>
    %c2_i32_293 = arith.constant 2 : i32
    %1189 = arith.addi %1182, %c2_i32_293 : i32
    %1190 = arith.index_cast %1189 : i32 to index
    %1191 = memref.load %arg4[%1190] : memref<162xf32, #tpu.memory_space<smem>>
    %c27_i32_294 = arith.constant 27 : i32
    %1192 = arith.muli %897, %c27_i32_294 : i32
    %c8_i32_295 = arith.constant 8 : i32
    %1193 = arith.addi %1192, %c8_i32_295 : i32
    %1194 = arith.index_cast %1193 : i32 to index
    %1195 = memref.load %arg5[%1194] : memref<54xf32, #tpu.memory_space<smem>>
    %1196 = vector.broadcast %1185 : f32 to vector<8x128xf32>
    %1197 = arith.mulf %929, %1196 : vector<8x128xf32>
    %1198 = vector.broadcast %1188 : f32 to vector<8x128xf32>
    %1199 = arith.mulf %930, %1198 : vector<8x128xf32>
    %1200 = arith.addf %1197, %1199 : vector<8x128xf32>
    %1201 = vector.broadcast %1191 : f32 to vector<8x128xf32>
    %1202 = arith.mulf %931, %1201 : vector<8x128xf32>
    %1203 = arith.addf %1200, %1202 : vector<8x128xf32>
    %1204 = arith.addf %928, %1203 : vector<8x128xf32>
    %cst_296 = arith.constant 0.000000e+00 : f32
    %1205 = arith.subf %cst_296, %1195 : f32
    %1206 = vector.broadcast %1205 : f32 to vector<8x128xf32>
    %1207 = arith.cmpf olt, %1204, %1206 : vector<8x128xf32>
    %1208 = arith.extui %1207 : vector<8x128xi1> to vector<8x128xi32>
    %c8_i32_297 = arith.constant 8 : i32
    %1209 = vector.broadcast %c8_i32_297 : i32 to vector<8x128xi32>
    %1210 = arith.shli %1208, %1209 : vector<8x128xi32>
    %1211 = arith.ori %1180, %1210 : vector<8x128xi32>
    %c81_i32_298 = arith.constant 81 : i32
    %1212 = arith.muli %897, %c81_i32_298 : i32
    %c27_i32_299 = arith.constant 27 : i32
    %1213 = arith.addi %1212, %c27_i32_299 : i32
    %c0_i32_300 = arith.constant 0 : i32
    %1214 = arith.addi %1213, %c0_i32_300 : i32
    %1215 = arith.index_cast %1214 : i32 to index
    %1216 = memref.load %arg4[%1215] : memref<162xf32, #tpu.memory_space<smem>>
    %c1_i32_301 = arith.constant 1 : i32
    %1217 = arith.addi %1213, %c1_i32_301 : i32
    %1218 = arith.index_cast %1217 : i32 to index
    %1219 = memref.load %arg4[%1218] : memref<162xf32, #tpu.memory_space<smem>>
    %c2_i32_302 = arith.constant 2 : i32
    %1220 = arith.addi %1213, %c2_i32_302 : i32
    %1221 = arith.index_cast %1220 : i32 to index
    %1222 = memref.load %arg4[%1221] : memref<162xf32, #tpu.memory_space<smem>>
    %c27_i32_303 = arith.constant 27 : i32
    %1223 = arith.muli %897, %c27_i32_303 : i32
    %c9_i32_304 = arith.constant 9 : i32
    %1224 = arith.addi %1223, %c9_i32_304 : i32
    %1225 = arith.index_cast %1224 : i32 to index
    %1226 = memref.load %arg5[%1225] : memref<54xf32, #tpu.memory_space<smem>>
    %1227 = vector.broadcast %1216 : f32 to vector<8x128xf32>
    %1228 = arith.mulf %929, %1227 : vector<8x128xf32>
    %1229 = vector.broadcast %1219 : f32 to vector<8x128xf32>
    %1230 = arith.mulf %930, %1229 : vector<8x128xf32>
    %1231 = arith.addf %1228, %1230 : vector<8x128xf32>
    %1232 = vector.broadcast %1222 : f32 to vector<8x128xf32>
    %1233 = arith.mulf %931, %1232 : vector<8x128xf32>
    %1234 = arith.addf %1231, %1233 : vector<8x128xf32>
    %1235 = arith.addf %928, %1234 : vector<8x128xf32>
    %cst_305 = arith.constant 0.000000e+00 : f32
    %1236 = arith.subf %cst_305, %1226 : f32
    %1237 = vector.broadcast %1236 : f32 to vector<8x128xf32>
    %1238 = arith.cmpf olt, %1235, %1237 : vector<8x128xf32>
    %1239 = arith.extui %1238 : vector<8x128xi1> to vector<8x128xi32>
    %c9_i32_306 = arith.constant 9 : i32
    %1240 = vector.broadcast %c9_i32_306 : i32 to vector<8x128xi32>
    %1241 = arith.shli %1239, %1240 : vector<8x128xi32>
    %1242 = arith.ori %1211, %1241 : vector<8x128xi32>
    %c81_i32_307 = arith.constant 81 : i32
    %1243 = arith.muli %897, %c81_i32_307 : i32
    %c30_i32_308 = arith.constant 30 : i32
    %1244 = arith.addi %1243, %c30_i32_308 : i32
    %c0_i32_309 = arith.constant 0 : i32
    %1245 = arith.addi %1244, %c0_i32_309 : i32
    %1246 = arith.index_cast %1245 : i32 to index
    %1247 = memref.load %arg4[%1246] : memref<162xf32, #tpu.memory_space<smem>>
    %c1_i32_310 = arith.constant 1 : i32
    %1248 = arith.addi %1244, %c1_i32_310 : i32
    %1249 = arith.index_cast %1248 : i32 to index
    %1250 = memref.load %arg4[%1249] : memref<162xf32, #tpu.memory_space<smem>>
    %c2_i32_311 = arith.constant 2 : i32
    %1251 = arith.addi %1244, %c2_i32_311 : i32
    %1252 = arith.index_cast %1251 : i32 to index
    %1253 = memref.load %arg4[%1252] : memref<162xf32, #tpu.memory_space<smem>>
    %c27_i32_312 = arith.constant 27 : i32
    %1254 = arith.muli %897, %c27_i32_312 : i32
    %c10_i32_313 = arith.constant 10 : i32
    %1255 = arith.addi %1254, %c10_i32_313 : i32
    %1256 = arith.index_cast %1255 : i32 to index
    %1257 = memref.load %arg5[%1256] : memref<54xf32, #tpu.memory_space<smem>>
    %1258 = vector.broadcast %1247 : f32 to vector<8x128xf32>
    %1259 = arith.mulf %929, %1258 : vector<8x128xf32>
    %1260 = vector.broadcast %1250 : f32 to vector<8x128xf32>
    %1261 = arith.mulf %930, %1260 : vector<8x128xf32>
    %1262 = arith.addf %1259, %1261 : vector<8x128xf32>
    %1263 = vector.broadcast %1253 : f32 to vector<8x128xf32>
    %1264 = arith.mulf %931, %1263 : vector<8x128xf32>
    %1265 = arith.addf %1262, %1264 : vector<8x128xf32>
    %1266 = arith.addf %928, %1265 : vector<8x128xf32>
    %cst_314 = arith.constant 0.000000e+00 : f32
    %1267 = arith.subf %cst_314, %1257 : f32
    %1268 = vector.broadcast %1267 : f32 to vector<8x128xf32>
    %1269 = arith.cmpf olt, %1266, %1268 : vector<8x128xf32>
    %1270 = arith.extui %1269 : vector<8x128xi1> to vector<8x128xi32>
    %c10_i32_315 = arith.constant 10 : i32
    %1271 = vector.broadcast %c10_i32_315 : i32 to vector<8x128xi32>
    %1272 = arith.shli %1270, %1271 : vector<8x128xi32>
    %1273 = arith.ori %1242, %1272 : vector<8x128xi32>
    %c81_i32_316 = arith.constant 81 : i32
    %1274 = arith.muli %897, %c81_i32_316 : i32
    %c33_i32_317 = arith.constant 33 : i32
    %1275 = arith.addi %1274, %c33_i32_317 : i32
    %c0_i32_318 = arith.constant 0 : i32
    %1276 = arith.addi %1275, %c0_i32_318 : i32
    %1277 = arith.index_cast %1276 : i32 to index
    %1278 = memref.load %arg4[%1277] : memref<162xf32, #tpu.memory_space<smem>>
    %c1_i32_319 = arith.constant 1 : i32
    %1279 = arith.addi %1275, %c1_i32_319 : i32
    %1280 = arith.index_cast %1279 : i32 to index
    %1281 = memref.load %arg4[%1280] : memref<162xf32, #tpu.memory_space<smem>>
    %c2_i32_320 = arith.constant 2 : i32
    %1282 = arith.addi %1275, %c2_i32_320 : i32
    %1283 = arith.index_cast %1282 : i32 to index
    %1284 = memref.load %arg4[%1283] : memref<162xf32, #tpu.memory_space<smem>>
    %c27_i32_321 = arith.constant 27 : i32
    %1285 = arith.muli %897, %c27_i32_321 : i32
    %c11_i32_322 = arith.constant 11 : i32
    %1286 = arith.addi %1285, %c11_i32_322 : i32
    %1287 = arith.index_cast %1286 : i32 to index
    %1288 = memref.load %arg5[%1287] : memref<54xf32, #tpu.memory_space<smem>>
    %1289 = vector.broadcast %1278 : f32 to vector<8x128xf32>
    %1290 = arith.mulf %929, %1289 : vector<8x128xf32>
    %1291 = vector.broadcast %1281 : f32 to vector<8x128xf32>
    %1292 = arith.mulf %930, %1291 : vector<8x128xf32>
    %1293 = arith.addf %1290, %1292 : vector<8x128xf32>
    %1294 = vector.broadcast %1284 : f32 to vector<8x128xf32>
    %1295 = arith.mulf %931, %1294 : vector<8x128xf32>
    %1296 = arith.addf %1293, %1295 : vector<8x128xf32>
    %1297 = arith.addf %928, %1296 : vector<8x128xf32>
    %cst_323 = arith.constant 0.000000e+00 : f32
    %1298 = arith.subf %cst_323, %1288 : f32
    %1299 = vector.broadcast %1298 : f32 to vector<8x128xf32>
    %1300 = arith.cmpf olt, %1297, %1299 : vector<8x128xf32>
    %1301 = arith.extui %1300 : vector<8x128xi1> to vector<8x128xi32>
    %c11_i32_324 = arith.constant 11 : i32
    %1302 = vector.broadcast %c11_i32_324 : i32 to vector<8x128xi32>
    %1303 = arith.shli %1301, %1302 : vector<8x128xi32>
    %1304 = arith.ori %1273, %1303 : vector<8x128xi32>
    %c81_i32_325 = arith.constant 81 : i32
    %1305 = arith.muli %897, %c81_i32_325 : i32
    %c36_i32_326 = arith.constant 36 : i32
    %1306 = arith.addi %1305, %c36_i32_326 : i32
    %c0_i32_327 = arith.constant 0 : i32
    %1307 = arith.addi %1306, %c0_i32_327 : i32
    %1308 = arith.index_cast %1307 : i32 to index
    %1309 = memref.load %arg4[%1308] : memref<162xf32, #tpu.memory_space<smem>>
    %c1_i32_328 = arith.constant 1 : i32
    %1310 = arith.addi %1306, %c1_i32_328 : i32
    %1311 = arith.index_cast %1310 : i32 to index
    %1312 = memref.load %arg4[%1311] : memref<162xf32, #tpu.memory_space<smem>>
    %c2_i32_329 = arith.constant 2 : i32
    %1313 = arith.addi %1306, %c2_i32_329 : i32
    %1314 = arith.index_cast %1313 : i32 to index
    %1315 = memref.load %arg4[%1314] : memref<162xf32, #tpu.memory_space<smem>>
    %c27_i32_330 = arith.constant 27 : i32
    %1316 = arith.muli %897, %c27_i32_330 : i32
    %c12_i32_331 = arith.constant 12 : i32
    %1317 = arith.addi %1316, %c12_i32_331 : i32
    %1318 = arith.index_cast %1317 : i32 to index
    %1319 = memref.load %arg5[%1318] : memref<54xf32, #tpu.memory_space<smem>>
    %1320 = vector.broadcast %1309 : f32 to vector<8x128xf32>
    %1321 = arith.mulf %929, %1320 : vector<8x128xf32>
    %1322 = vector.broadcast %1312 : f32 to vector<8x128xf32>
    %1323 = arith.mulf %930, %1322 : vector<8x128xf32>
    %1324 = arith.addf %1321, %1323 : vector<8x128xf32>
    %1325 = vector.broadcast %1315 : f32 to vector<8x128xf32>
    %1326 = arith.mulf %931, %1325 : vector<8x128xf32>
    %1327 = arith.addf %1324, %1326 : vector<8x128xf32>
    %1328 = arith.addf %928, %1327 : vector<8x128xf32>
    %cst_332 = arith.constant 0.000000e+00 : f32
    %1329 = arith.subf %cst_332, %1319 : f32
    %1330 = vector.broadcast %1329 : f32 to vector<8x128xf32>
    %1331 = arith.cmpf olt, %1328, %1330 : vector<8x128xf32>
    %1332 = arith.extui %1331 : vector<8x128xi1> to vector<8x128xi32>
    %c12_i32_333 = arith.constant 12 : i32
    %1333 = vector.broadcast %c12_i32_333 : i32 to vector<8x128xi32>
    %1334 = arith.shli %1332, %1333 : vector<8x128xi32>
    %1335 = arith.ori %1304, %1334 : vector<8x128xi32>
    %c81_i32_334 = arith.constant 81 : i32
    %1336 = arith.muli %897, %c81_i32_334 : i32
    %c39_i32_335 = arith.constant 39 : i32
    %1337 = arith.addi %1336, %c39_i32_335 : i32
    %c0_i32_336 = arith.constant 0 : i32
    %1338 = arith.addi %1337, %c0_i32_336 : i32
    %1339 = arith.index_cast %1338 : i32 to index
    %1340 = memref.load %arg4[%1339] : memref<162xf32, #tpu.memory_space<smem>>
    %c1_i32_337 = arith.constant 1 : i32
    %1341 = arith.addi %1337, %c1_i32_337 : i32
    %1342 = arith.index_cast %1341 : i32 to index
    %1343 = memref.load %arg4[%1342] : memref<162xf32, #tpu.memory_space<smem>>
    %c2_i32_338 = arith.constant 2 : i32
    %1344 = arith.addi %1337, %c2_i32_338 : i32
    %1345 = arith.index_cast %1344 : i32 to index
    %1346 = memref.load %arg4[%1345] : memref<162xf32, #tpu.memory_space<smem>>
    %c27_i32_339 = arith.constant 27 : i32
    %1347 = arith.muli %897, %c27_i32_339 : i32
    %c13_i32_340 = arith.constant 13 : i32
    %1348 = arith.addi %1347, %c13_i32_340 : i32
    %1349 = arith.index_cast %1348 : i32 to index
    %1350 = memref.load %arg5[%1349] : memref<54xf32, #tpu.memory_space<smem>>
    %1351 = vector.broadcast %1340 : f32 to vector<8x128xf32>
    %1352 = arith.mulf %929, %1351 : vector<8x128xf32>
    %1353 = vector.broadcast %1343 : f32 to vector<8x128xf32>
    %1354 = arith.mulf %930, %1353 : vector<8x128xf32>
    %1355 = arith.addf %1352, %1354 : vector<8x128xf32>
    %1356 = vector.broadcast %1346 : f32 to vector<8x128xf32>
    %1357 = arith.mulf %931, %1356 : vector<8x128xf32>
    %1358 = arith.addf %1355, %1357 : vector<8x128xf32>
    %1359 = arith.addf %928, %1358 : vector<8x128xf32>
    %cst_341 = arith.constant 0.000000e+00 : f32
    %1360 = arith.subf %cst_341, %1350 : f32
    %1361 = vector.broadcast %1360 : f32 to vector<8x128xf32>
    %1362 = arith.cmpf olt, %1359, %1361 : vector<8x128xf32>
    %1363 = arith.andi %1362, %8 : vector<8x128xi1>
    %1364 = arith.extui %1363 : vector<8x128xi1> to vector<8x128xi32>
    %c13_i32_342 = arith.constant 13 : i32
    %1365 = vector.broadcast %c13_i32_342 : i32 to vector<8x128xi32>
    %1366 = arith.shli %1364, %1365 : vector<8x128xi32>
    %1367 = arith.ori %1335, %1366 : vector<8x128xi32>
    %c81_i32_343 = arith.constant 81 : i32
    %1368 = arith.muli %897, %c81_i32_343 : i32
    %c42_i32_344 = arith.constant 42 : i32
    %1369 = arith.addi %1368, %c42_i32_344 : i32
    %c0_i32_345 = arith.constant 0 : i32
    %1370 = arith.addi %1369, %c0_i32_345 : i32
    %1371 = arith.index_cast %1370 : i32 to index
    %1372 = memref.load %arg4[%1371] : memref<162xf32, #tpu.memory_space<smem>>
    %c1_i32_346 = arith.constant 1 : i32
    %1373 = arith.addi %1369, %c1_i32_346 : i32
    %1374 = arith.index_cast %1373 : i32 to index
    %1375 = memref.load %arg4[%1374] : memref<162xf32, #tpu.memory_space<smem>>
    %c2_i32_347 = arith.constant 2 : i32
    %1376 = arith.addi %1369, %c2_i32_347 : i32
    %1377 = arith.index_cast %1376 : i32 to index
    %1378 = memref.load %arg4[%1377] : memref<162xf32, #tpu.memory_space<smem>>
    %c27_i32_348 = arith.constant 27 : i32
    %1379 = arith.muli %897, %c27_i32_348 : i32
    %c14_i32_349 = arith.constant 14 : i32
    %1380 = arith.addi %1379, %c14_i32_349 : i32
    %1381 = arith.index_cast %1380 : i32 to index
    %1382 = memref.load %arg5[%1381] : memref<54xf32, #tpu.memory_space<smem>>
    %1383 = vector.broadcast %1372 : f32 to vector<8x128xf32>
    %1384 = arith.mulf %929, %1383 : vector<8x128xf32>
    %1385 = vector.broadcast %1375 : f32 to vector<8x128xf32>
    %1386 = arith.mulf %930, %1385 : vector<8x128xf32>
    %1387 = arith.addf %1384, %1386 : vector<8x128xf32>
    %1388 = vector.broadcast %1378 : f32 to vector<8x128xf32>
    %1389 = arith.mulf %931, %1388 : vector<8x128xf32>
    %1390 = arith.addf %1387, %1389 : vector<8x128xf32>
    %1391 = arith.addf %928, %1390 : vector<8x128xf32>
    %cst_350 = arith.constant 0.000000e+00 : f32
    %1392 = arith.subf %cst_350, %1382 : f32
    %1393 = vector.broadcast %1392 : f32 to vector<8x128xf32>
    %1394 = arith.cmpf olt, %1391, %1393 : vector<8x128xf32>
    %1395 = arith.extui %1394 : vector<8x128xi1> to vector<8x128xi32>
    %c14_i32_351 = arith.constant 14 : i32
    %1396 = vector.broadcast %c14_i32_351 : i32 to vector<8x128xi32>
    %1397 = arith.shli %1395, %1396 : vector<8x128xi32>
    %1398 = arith.ori %1367, %1397 : vector<8x128xi32>
    %c81_i32_352 = arith.constant 81 : i32
    %1399 = arith.muli %897, %c81_i32_352 : i32
    %c45_i32_353 = arith.constant 45 : i32
    %1400 = arith.addi %1399, %c45_i32_353 : i32
    %c0_i32_354 = arith.constant 0 : i32
    %1401 = arith.addi %1400, %c0_i32_354 : i32
    %1402 = arith.index_cast %1401 : i32 to index
    %1403 = memref.load %arg4[%1402] : memref<162xf32, #tpu.memory_space<smem>>
    %c1_i32_355 = arith.constant 1 : i32
    %1404 = arith.addi %1400, %c1_i32_355 : i32
    %1405 = arith.index_cast %1404 : i32 to index
    %1406 = memref.load %arg4[%1405] : memref<162xf32, #tpu.memory_space<smem>>
    %c2_i32_356 = arith.constant 2 : i32
    %1407 = arith.addi %1400, %c2_i32_356 : i32
    %1408 = arith.index_cast %1407 : i32 to index
    %1409 = memref.load %arg4[%1408] : memref<162xf32, #tpu.memory_space<smem>>
    %c27_i32_357 = arith.constant 27 : i32
    %1410 = arith.muli %897, %c27_i32_357 : i32
    %c15_i32_358 = arith.constant 15 : i32
    %1411 = arith.addi %1410, %c15_i32_358 : i32
    %1412 = arith.index_cast %1411 : i32 to index
    %1413 = memref.load %arg5[%1412] : memref<54xf32, #tpu.memory_space<smem>>
    %1414 = vector.broadcast %1403 : f32 to vector<8x128xf32>
    %1415 = arith.mulf %929, %1414 : vector<8x128xf32>
    %1416 = vector.broadcast %1406 : f32 to vector<8x128xf32>
    %1417 = arith.mulf %930, %1416 : vector<8x128xf32>
    %1418 = arith.addf %1415, %1417 : vector<8x128xf32>
    %1419 = vector.broadcast %1409 : f32 to vector<8x128xf32>
    %1420 = arith.mulf %931, %1419 : vector<8x128xf32>
    %1421 = arith.addf %1418, %1420 : vector<8x128xf32>
    %1422 = arith.addf %928, %1421 : vector<8x128xf32>
    %cst_359 = arith.constant 0.000000e+00 : f32
    %1423 = arith.subf %cst_359, %1413 : f32
    %1424 = vector.broadcast %1423 : f32 to vector<8x128xf32>
    %1425 = arith.cmpf olt, %1422, %1424 : vector<8x128xf32>
    %1426 = arith.extui %1425 : vector<8x128xi1> to vector<8x128xi32>
    %c15_i32_360 = arith.constant 15 : i32
    %1427 = vector.broadcast %c15_i32_360 : i32 to vector<8x128xi32>
    %1428 = arith.shli %1426, %1427 : vector<8x128xi32>
    %1429 = arith.ori %1398, %1428 : vector<8x128xi32>
    %c81_i32_361 = arith.constant 81 : i32
    %1430 = arith.muli %897, %c81_i32_361 : i32
    %c48_i32_362 = arith.constant 48 : i32
    %1431 = arith.addi %1430, %c48_i32_362 : i32
    %c0_i32_363 = arith.constant 0 : i32
    %1432 = arith.addi %1431, %c0_i32_363 : i32
    %1433 = arith.index_cast %1432 : i32 to index
    %1434 = memref.load %arg4[%1433] : memref<162xf32, #tpu.memory_space<smem>>
    %c1_i32_364 = arith.constant 1 : i32
    %1435 = arith.addi %1431, %c1_i32_364 : i32
    %1436 = arith.index_cast %1435 : i32 to index
    %1437 = memref.load %arg4[%1436] : memref<162xf32, #tpu.memory_space<smem>>
    %c2_i32_365 = arith.constant 2 : i32
    %1438 = arith.addi %1431, %c2_i32_365 : i32
    %1439 = arith.index_cast %1438 : i32 to index
    %1440 = memref.load %arg4[%1439] : memref<162xf32, #tpu.memory_space<smem>>
    %c27_i32_366 = arith.constant 27 : i32
    %1441 = arith.muli %897, %c27_i32_366 : i32
    %c16_i32_367 = arith.constant 16 : i32
    %1442 = arith.addi %1441, %c16_i32_367 : i32
    %1443 = arith.index_cast %1442 : i32 to index
    %1444 = memref.load %arg5[%1443] : memref<54xf32, #tpu.memory_space<smem>>
    %1445 = vector.broadcast %1434 : f32 to vector<8x128xf32>
    %1446 = arith.mulf %929, %1445 : vector<8x128xf32>
    %1447 = vector.broadcast %1437 : f32 to vector<8x128xf32>
    %1448 = arith.mulf %930, %1447 : vector<8x128xf32>
    %1449 = arith.addf %1446, %1448 : vector<8x128xf32>
    %1450 = vector.broadcast %1440 : f32 to vector<8x128xf32>
    %1451 = arith.mulf %931, %1450 : vector<8x128xf32>
    %1452 = arith.addf %1449, %1451 : vector<8x128xf32>
    %1453 = arith.addf %928, %1452 : vector<8x128xf32>
    %cst_368 = arith.constant 0.000000e+00 : f32
    %1454 = arith.subf %cst_368, %1444 : f32
    %1455 = vector.broadcast %1454 : f32 to vector<8x128xf32>
    %1456 = arith.cmpf olt, %1453, %1455 : vector<8x128xf32>
    %1457 = arith.extui %1456 : vector<8x128xi1> to vector<8x128xi32>
    %c16_i32_369 = arith.constant 16 : i32
    %1458 = vector.broadcast %c16_i32_369 : i32 to vector<8x128xi32>
    %1459 = arith.shli %1457, %1458 : vector<8x128xi32>
    %1460 = arith.ori %1429, %1459 : vector<8x128xi32>
    %c81_i32_370 = arith.constant 81 : i32
    %1461 = arith.muli %897, %c81_i32_370 : i32
    %c51_i32_371 = arith.constant 51 : i32
    %1462 = arith.addi %1461, %c51_i32_371 : i32
    %c0_i32_372 = arith.constant 0 : i32
    %1463 = arith.addi %1462, %c0_i32_372 : i32
    %1464 = arith.index_cast %1463 : i32 to index
    %1465 = memref.load %arg4[%1464] : memref<162xf32, #tpu.memory_space<smem>>
    %c1_i32_373 = arith.constant 1 : i32
    %1466 = arith.addi %1462, %c1_i32_373 : i32
    %1467 = arith.index_cast %1466 : i32 to index
    %1468 = memref.load %arg4[%1467] : memref<162xf32, #tpu.memory_space<smem>>
    %c2_i32_374 = arith.constant 2 : i32
    %1469 = arith.addi %1462, %c2_i32_374 : i32
    %1470 = arith.index_cast %1469 : i32 to index
    %1471 = memref.load %arg4[%1470] : memref<162xf32, #tpu.memory_space<smem>>
    %c27_i32_375 = arith.constant 27 : i32
    %1472 = arith.muli %897, %c27_i32_375 : i32
    %c17_i32_376 = arith.constant 17 : i32
    %1473 = arith.addi %1472, %c17_i32_376 : i32
    %1474 = arith.index_cast %1473 : i32 to index
    %1475 = memref.load %arg5[%1474] : memref<54xf32, #tpu.memory_space<smem>>
    %1476 = vector.broadcast %1465 : f32 to vector<8x128xf32>
    %1477 = arith.mulf %929, %1476 : vector<8x128xf32>
    %1478 = vector.broadcast %1468 : f32 to vector<8x128xf32>
    %1479 = arith.mulf %930, %1478 : vector<8x128xf32>
    %1480 = arith.addf %1477, %1479 : vector<8x128xf32>
    %1481 = vector.broadcast %1471 : f32 to vector<8x128xf32>
    %1482 = arith.mulf %931, %1481 : vector<8x128xf32>
    %1483 = arith.addf %1480, %1482 : vector<8x128xf32>
    %1484 = arith.addf %928, %1483 : vector<8x128xf32>
    %cst_377 = arith.constant 0.000000e+00 : f32
    %1485 = arith.subf %cst_377, %1475 : f32
    %1486 = vector.broadcast %1485 : f32 to vector<8x128xf32>
    %1487 = arith.cmpf olt, %1484, %1486 : vector<8x128xf32>
    %1488 = arith.extui %1487 : vector<8x128xi1> to vector<8x128xi32>
    %c17_i32_378 = arith.constant 17 : i32
    %1489 = vector.broadcast %c17_i32_378 : i32 to vector<8x128xi32>
    %1490 = arith.shli %1488, %1489 : vector<8x128xi32>
    %1491 = arith.ori %1460, %1490 : vector<8x128xi32>
    %c81_i32_379 = arith.constant 81 : i32
    %1492 = arith.muli %897, %c81_i32_379 : i32
    %c54_i32_380 = arith.constant 54 : i32
    %1493 = arith.addi %1492, %c54_i32_380 : i32
    %c0_i32_381 = arith.constant 0 : i32
    %1494 = arith.addi %1493, %c0_i32_381 : i32
    %1495 = arith.index_cast %1494 : i32 to index
    %1496 = memref.load %arg4[%1495] : memref<162xf32, #tpu.memory_space<smem>>
    %c1_i32_382 = arith.constant 1 : i32
    %1497 = arith.addi %1493, %c1_i32_382 : i32
    %1498 = arith.index_cast %1497 : i32 to index
    %1499 = memref.load %arg4[%1498] : memref<162xf32, #tpu.memory_space<smem>>
    %c2_i32_383 = arith.constant 2 : i32
    %1500 = arith.addi %1493, %c2_i32_383 : i32
    %1501 = arith.index_cast %1500 : i32 to index
    %1502 = memref.load %arg4[%1501] : memref<162xf32, #tpu.memory_space<smem>>
    %c27_i32_384 = arith.constant 27 : i32
    %1503 = arith.muli %897, %c27_i32_384 : i32
    %c18_i32_385 = arith.constant 18 : i32
    %1504 = arith.addi %1503, %c18_i32_385 : i32
    %1505 = arith.index_cast %1504 : i32 to index
    %1506 = memref.load %arg5[%1505] : memref<54xf32, #tpu.memory_space<smem>>
    %1507 = vector.broadcast %1496 : f32 to vector<8x128xf32>
    %1508 = arith.mulf %929, %1507 : vector<8x128xf32>
    %1509 = vector.broadcast %1499 : f32 to vector<8x128xf32>
    %1510 = arith.mulf %930, %1509 : vector<8x128xf32>
    %1511 = arith.addf %1508, %1510 : vector<8x128xf32>
    %1512 = vector.broadcast %1502 : f32 to vector<8x128xf32>
    %1513 = arith.mulf %931, %1512 : vector<8x128xf32>
    %1514 = arith.addf %1511, %1513 : vector<8x128xf32>
    %1515 = arith.addf %928, %1514 : vector<8x128xf32>
    %cst_386 = arith.constant 0.000000e+00 : f32
    %1516 = arith.subf %cst_386, %1506 : f32
    %1517 = vector.broadcast %1516 : f32 to vector<8x128xf32>
    %1518 = arith.cmpf olt, %1515, %1517 : vector<8x128xf32>
    %1519 = arith.extui %1518 : vector<8x128xi1> to vector<8x128xi32>
    %c18_i32_387 = arith.constant 18 : i32
    %1520 = vector.broadcast %c18_i32_387 : i32 to vector<8x128xi32>
    %1521 = arith.shli %1519, %1520 : vector<8x128xi32>
    %1522 = arith.ori %1491, %1521 : vector<8x128xi32>
    %c81_i32_388 = arith.constant 81 : i32
    %1523 = arith.muli %897, %c81_i32_388 : i32
    %c57_i32_389 = arith.constant 57 : i32
    %1524 = arith.addi %1523, %c57_i32_389 : i32
    %c0_i32_390 = arith.constant 0 : i32
    %1525 = arith.addi %1524, %c0_i32_390 : i32
    %1526 = arith.index_cast %1525 : i32 to index
    %1527 = memref.load %arg4[%1526] : memref<162xf32, #tpu.memory_space<smem>>
    %c1_i32_391 = arith.constant 1 : i32
    %1528 = arith.addi %1524, %c1_i32_391 : i32
    %1529 = arith.index_cast %1528 : i32 to index
    %1530 = memref.load %arg4[%1529] : memref<162xf32, #tpu.memory_space<smem>>
    %c2_i32_392 = arith.constant 2 : i32
    %1531 = arith.addi %1524, %c2_i32_392 : i32
    %1532 = arith.index_cast %1531 : i32 to index
    %1533 = memref.load %arg4[%1532] : memref<162xf32, #tpu.memory_space<smem>>
    %c27_i32_393 = arith.constant 27 : i32
    %1534 = arith.muli %897, %c27_i32_393 : i32
    %c19_i32_394 = arith.constant 19 : i32
    %1535 = arith.addi %1534, %c19_i32_394 : i32
    %1536 = arith.index_cast %1535 : i32 to index
    %1537 = memref.load %arg5[%1536] : memref<54xf32, #tpu.memory_space<smem>>
    %1538 = vector.broadcast %1527 : f32 to vector<8x128xf32>
    %1539 = arith.mulf %929, %1538 : vector<8x128xf32>
    %1540 = vector.broadcast %1530 : f32 to vector<8x128xf32>
    %1541 = arith.mulf %930, %1540 : vector<8x128xf32>
    %1542 = arith.addf %1539, %1541 : vector<8x128xf32>
    %1543 = vector.broadcast %1533 : f32 to vector<8x128xf32>
    %1544 = arith.mulf %931, %1543 : vector<8x128xf32>
    %1545 = arith.addf %1542, %1544 : vector<8x128xf32>
    %1546 = arith.addf %928, %1545 : vector<8x128xf32>
    %cst_395 = arith.constant 0.000000e+00 : f32
    %1547 = arith.subf %cst_395, %1537 : f32
    %1548 = vector.broadcast %1547 : f32 to vector<8x128xf32>
    %1549 = arith.cmpf olt, %1546, %1548 : vector<8x128xf32>
    %1550 = arith.extui %1549 : vector<8x128xi1> to vector<8x128xi32>
    %c19_i32_396 = arith.constant 19 : i32
    %1551 = vector.broadcast %c19_i32_396 : i32 to vector<8x128xi32>
    %1552 = arith.shli %1550, %1551 : vector<8x128xi32>
    %1553 = arith.ori %1522, %1552 : vector<8x128xi32>
    %c81_i32_397 = arith.constant 81 : i32
    %1554 = arith.muli %897, %c81_i32_397 : i32
    %c60_i32_398 = arith.constant 60 : i32
    %1555 = arith.addi %1554, %c60_i32_398 : i32
    %c0_i32_399 = arith.constant 0 : i32
    %1556 = arith.addi %1555, %c0_i32_399 : i32
    %1557 = arith.index_cast %1556 : i32 to index
    %1558 = memref.load %arg4[%1557] : memref<162xf32, #tpu.memory_space<smem>>
    %c1_i32_400 = arith.constant 1 : i32
    %1559 = arith.addi %1555, %c1_i32_400 : i32
    %1560 = arith.index_cast %1559 : i32 to index
    %1561 = memref.load %arg4[%1560] : memref<162xf32, #tpu.memory_space<smem>>
    %c2_i32_401 = arith.constant 2 : i32
    %1562 = arith.addi %1555, %c2_i32_401 : i32
    %1563 = arith.index_cast %1562 : i32 to index
    %1564 = memref.load %arg4[%1563] : memref<162xf32, #tpu.memory_space<smem>>
    %c27_i32_402 = arith.constant 27 : i32
    %1565 = arith.muli %897, %c27_i32_402 : i32
    %c20_i32_403 = arith.constant 20 : i32
    %1566 = arith.addi %1565, %c20_i32_403 : i32
    %1567 = arith.index_cast %1566 : i32 to index
    %1568 = memref.load %arg5[%1567] : memref<54xf32, #tpu.memory_space<smem>>
    %1569 = vector.broadcast %1558 : f32 to vector<8x128xf32>
    %1570 = arith.mulf %929, %1569 : vector<8x128xf32>
    %1571 = vector.broadcast %1561 : f32 to vector<8x128xf32>
    %1572 = arith.mulf %930, %1571 : vector<8x128xf32>
    %1573 = arith.addf %1570, %1572 : vector<8x128xf32>
    %1574 = vector.broadcast %1564 : f32 to vector<8x128xf32>
    %1575 = arith.mulf %931, %1574 : vector<8x128xf32>
    %1576 = arith.addf %1573, %1575 : vector<8x128xf32>
    %1577 = arith.addf %928, %1576 : vector<8x128xf32>
    %cst_404 = arith.constant 0.000000e+00 : f32
    %1578 = arith.subf %cst_404, %1568 : f32
    %1579 = vector.broadcast %1578 : f32 to vector<8x128xf32>
    %1580 = arith.cmpf olt, %1577, %1579 : vector<8x128xf32>
    %1581 = arith.extui %1580 : vector<8x128xi1> to vector<8x128xi32>
    %c20_i32_405 = arith.constant 20 : i32
    %1582 = vector.broadcast %c20_i32_405 : i32 to vector<8x128xi32>
    %1583 = arith.shli %1581, %1582 : vector<8x128xi32>
    %1584 = arith.ori %1553, %1583 : vector<8x128xi32>
    %c81_i32_406 = arith.constant 81 : i32
    %1585 = arith.muli %897, %c81_i32_406 : i32
    %c63_i32_407 = arith.constant 63 : i32
    %1586 = arith.addi %1585, %c63_i32_407 : i32
    %c0_i32_408 = arith.constant 0 : i32
    %1587 = arith.addi %1586, %c0_i32_408 : i32
    %1588 = arith.index_cast %1587 : i32 to index
    %1589 = memref.load %arg4[%1588] : memref<162xf32, #tpu.memory_space<smem>>
    %c1_i32_409 = arith.constant 1 : i32
    %1590 = arith.addi %1586, %c1_i32_409 : i32
    %1591 = arith.index_cast %1590 : i32 to index
    %1592 = memref.load %arg4[%1591] : memref<162xf32, #tpu.memory_space<smem>>
    %c2_i32_410 = arith.constant 2 : i32
    %1593 = arith.addi %1586, %c2_i32_410 : i32
    %1594 = arith.index_cast %1593 : i32 to index
    %1595 = memref.load %arg4[%1594] : memref<162xf32, #tpu.memory_space<smem>>
    %c27_i32_411 = arith.constant 27 : i32
    %1596 = arith.muli %897, %c27_i32_411 : i32
    %c21_i32_412 = arith.constant 21 : i32
    %1597 = arith.addi %1596, %c21_i32_412 : i32
    %1598 = arith.index_cast %1597 : i32 to index
    %1599 = memref.load %arg5[%1598] : memref<54xf32, #tpu.memory_space<smem>>
    %1600 = vector.broadcast %1589 : f32 to vector<8x128xf32>
    %1601 = arith.mulf %929, %1600 : vector<8x128xf32>
    %1602 = vector.broadcast %1592 : f32 to vector<8x128xf32>
    %1603 = arith.mulf %930, %1602 : vector<8x128xf32>
    %1604 = arith.addf %1601, %1603 : vector<8x128xf32>
    %1605 = vector.broadcast %1595 : f32 to vector<8x128xf32>
    %1606 = arith.mulf %931, %1605 : vector<8x128xf32>
    %1607 = arith.addf %1604, %1606 : vector<8x128xf32>
    %1608 = arith.addf %928, %1607 : vector<8x128xf32>
    %cst_413 = arith.constant 0.000000e+00 : f32
    %1609 = arith.subf %cst_413, %1599 : f32
    %1610 = vector.broadcast %1609 : f32 to vector<8x128xf32>
    %1611 = arith.cmpf olt, %1608, %1610 : vector<8x128xf32>
    %1612 = arith.extui %1611 : vector<8x128xi1> to vector<8x128xi32>
    %c21_i32_414 = arith.constant 21 : i32
    %1613 = vector.broadcast %c21_i32_414 : i32 to vector<8x128xi32>
    %1614 = arith.shli %1612, %1613 : vector<8x128xi32>
    %1615 = arith.ori %1584, %1614 : vector<8x128xi32>
    %c81_i32_415 = arith.constant 81 : i32
    %1616 = arith.muli %897, %c81_i32_415 : i32
    %c66_i32_416 = arith.constant 66 : i32
    %1617 = arith.addi %1616, %c66_i32_416 : i32
    %c0_i32_417 = arith.constant 0 : i32
    %1618 = arith.addi %1617, %c0_i32_417 : i32
    %1619 = arith.index_cast %1618 : i32 to index
    %1620 = memref.load %arg4[%1619] : memref<162xf32, #tpu.memory_space<smem>>
    %c1_i32_418 = arith.constant 1 : i32
    %1621 = arith.addi %1617, %c1_i32_418 : i32
    %1622 = arith.index_cast %1621 : i32 to index
    %1623 = memref.load %arg4[%1622] : memref<162xf32, #tpu.memory_space<smem>>
    %c2_i32_419 = arith.constant 2 : i32
    %1624 = arith.addi %1617, %c2_i32_419 : i32
    %1625 = arith.index_cast %1624 : i32 to index
    %1626 = memref.load %arg4[%1625] : memref<162xf32, #tpu.memory_space<smem>>
    %c27_i32_420 = arith.constant 27 : i32
    %1627 = arith.muli %897, %c27_i32_420 : i32
    %c22_i32_421 = arith.constant 22 : i32
    %1628 = arith.addi %1627, %c22_i32_421 : i32
    %1629 = arith.index_cast %1628 : i32 to index
    %1630 = memref.load %arg5[%1629] : memref<54xf32, #tpu.memory_space<smem>>
    %1631 = vector.broadcast %1620 : f32 to vector<8x128xf32>
    %1632 = arith.mulf %929, %1631 : vector<8x128xf32>
    %1633 = vector.broadcast %1623 : f32 to vector<8x128xf32>
    %1634 = arith.mulf %930, %1633 : vector<8x128xf32>
    %1635 = arith.addf %1632, %1634 : vector<8x128xf32>
    %1636 = vector.broadcast %1626 : f32 to vector<8x128xf32>
    %1637 = arith.mulf %931, %1636 : vector<8x128xf32>
    %1638 = arith.addf %1635, %1637 : vector<8x128xf32>
    %1639 = arith.addf %928, %1638 : vector<8x128xf32>
    %cst_422 = arith.constant 0.000000e+00 : f32
    %1640 = arith.subf %cst_422, %1630 : f32
    %1641 = vector.broadcast %1640 : f32 to vector<8x128xf32>
    %1642 = arith.cmpf olt, %1639, %1641 : vector<8x128xf32>
    %1643 = arith.extui %1642 : vector<8x128xi1> to vector<8x128xi32>
    %c22_i32_423 = arith.constant 22 : i32
    %1644 = vector.broadcast %c22_i32_423 : i32 to vector<8x128xi32>
    %1645 = arith.shli %1643, %1644 : vector<8x128xi32>
    %1646 = arith.ori %1615, %1645 : vector<8x128xi32>
    %c81_i32_424 = arith.constant 81 : i32
    %1647 = arith.muli %897, %c81_i32_424 : i32
    %c69_i32_425 = arith.constant 69 : i32
    %1648 = arith.addi %1647, %c69_i32_425 : i32
    %c0_i32_426 = arith.constant 0 : i32
    %1649 = arith.addi %1648, %c0_i32_426 : i32
    %1650 = arith.index_cast %1649 : i32 to index
    %1651 = memref.load %arg4[%1650] : memref<162xf32, #tpu.memory_space<smem>>
    %c1_i32_427 = arith.constant 1 : i32
    %1652 = arith.addi %1648, %c1_i32_427 : i32
    %1653 = arith.index_cast %1652 : i32 to index
    %1654 = memref.load %arg4[%1653] : memref<162xf32, #tpu.memory_space<smem>>
    %c2_i32_428 = arith.constant 2 : i32
    %1655 = arith.addi %1648, %c2_i32_428 : i32
    %1656 = arith.index_cast %1655 : i32 to index
    %1657 = memref.load %arg4[%1656] : memref<162xf32, #tpu.memory_space<smem>>
    %c27_i32_429 = arith.constant 27 : i32
    %1658 = arith.muli %897, %c27_i32_429 : i32
    %c23_i32_430 = arith.constant 23 : i32
    %1659 = arith.addi %1658, %c23_i32_430 : i32
    %1660 = arith.index_cast %1659 : i32 to index
    %1661 = memref.load %arg5[%1660] : memref<54xf32, #tpu.memory_space<smem>>
    %1662 = vector.broadcast %1651 : f32 to vector<8x128xf32>
    %1663 = arith.mulf %929, %1662 : vector<8x128xf32>
    %1664 = vector.broadcast %1654 : f32 to vector<8x128xf32>
    %1665 = arith.mulf %930, %1664 : vector<8x128xf32>
    %1666 = arith.addf %1663, %1665 : vector<8x128xf32>
    %1667 = vector.broadcast %1657 : f32 to vector<8x128xf32>
    %1668 = arith.mulf %931, %1667 : vector<8x128xf32>
    %1669 = arith.addf %1666, %1668 : vector<8x128xf32>
    %1670 = arith.addf %928, %1669 : vector<8x128xf32>
    %cst_431 = arith.constant 0.000000e+00 : f32
    %1671 = arith.subf %cst_431, %1661 : f32
    %1672 = vector.broadcast %1671 : f32 to vector<8x128xf32>
    %1673 = arith.cmpf olt, %1670, %1672 : vector<8x128xf32>
    %1674 = arith.extui %1673 : vector<8x128xi1> to vector<8x128xi32>
    %c23_i32_432 = arith.constant 23 : i32
    %1675 = vector.broadcast %c23_i32_432 : i32 to vector<8x128xi32>
    %1676 = arith.shli %1674, %1675 : vector<8x128xi32>
    %1677 = arith.ori %1646, %1676 : vector<8x128xi32>
    %c81_i32_433 = arith.constant 81 : i32
    %1678 = arith.muli %897, %c81_i32_433 : i32
    %c72_i32_434 = arith.constant 72 : i32
    %1679 = arith.addi %1678, %c72_i32_434 : i32
    %c0_i32_435 = arith.constant 0 : i32
    %1680 = arith.addi %1679, %c0_i32_435 : i32
    %1681 = arith.index_cast %1680 : i32 to index
    %1682 = memref.load %arg4[%1681] : memref<162xf32, #tpu.memory_space<smem>>
    %c1_i32_436 = arith.constant 1 : i32
    %1683 = arith.addi %1679, %c1_i32_436 : i32
    %1684 = arith.index_cast %1683 : i32 to index
    %1685 = memref.load %arg4[%1684] : memref<162xf32, #tpu.memory_space<smem>>
    %c2_i32_437 = arith.constant 2 : i32
    %1686 = arith.addi %1679, %c2_i32_437 : i32
    %1687 = arith.index_cast %1686 : i32 to index
    %1688 = memref.load %arg4[%1687] : memref<162xf32, #tpu.memory_space<smem>>
    %c27_i32_438 = arith.constant 27 : i32
    %1689 = arith.muli %897, %c27_i32_438 : i32
    %c24_i32_439 = arith.constant 24 : i32
    %1690 = arith.addi %1689, %c24_i32_439 : i32
    %1691 = arith.index_cast %1690 : i32 to index
    %1692 = memref.load %arg5[%1691] : memref<54xf32, #tpu.memory_space<smem>>
    %1693 = vector.broadcast %1682 : f32 to vector<8x128xf32>
    %1694 = arith.mulf %929, %1693 : vector<8x128xf32>
    %1695 = vector.broadcast %1685 : f32 to vector<8x128xf32>
    %1696 = arith.mulf %930, %1695 : vector<8x128xf32>
    %1697 = arith.addf %1694, %1696 : vector<8x128xf32>
    %1698 = vector.broadcast %1688 : f32 to vector<8x128xf32>
    %1699 = arith.mulf %931, %1698 : vector<8x128xf32>
    %1700 = arith.addf %1697, %1699 : vector<8x128xf32>
    %1701 = arith.addf %928, %1700 : vector<8x128xf32>
    %cst_440 = arith.constant 0.000000e+00 : f32
    %1702 = arith.subf %cst_440, %1692 : f32
    %1703 = vector.broadcast %1702 : f32 to vector<8x128xf32>
    %1704 = arith.cmpf olt, %1701, %1703 : vector<8x128xf32>
    %1705 = arith.extui %1704 : vector<8x128xi1> to vector<8x128xi32>
    %c24_i32_441 = arith.constant 24 : i32
    %1706 = vector.broadcast %c24_i32_441 : i32 to vector<8x128xi32>
    %1707 = arith.shli %1705, %1706 : vector<8x128xi32>
    %1708 = arith.ori %1677, %1707 : vector<8x128xi32>
    %c81_i32_442 = arith.constant 81 : i32
    %1709 = arith.muli %897, %c81_i32_442 : i32
    %c75_i32_443 = arith.constant 75 : i32
    %1710 = arith.addi %1709, %c75_i32_443 : i32
    %c0_i32_444 = arith.constant 0 : i32
    %1711 = arith.addi %1710, %c0_i32_444 : i32
    %1712 = arith.index_cast %1711 : i32 to index
    %1713 = memref.load %arg4[%1712] : memref<162xf32, #tpu.memory_space<smem>>
    %c1_i32_445 = arith.constant 1 : i32
    %1714 = arith.addi %1710, %c1_i32_445 : i32
    %1715 = arith.index_cast %1714 : i32 to index
    %1716 = memref.load %arg4[%1715] : memref<162xf32, #tpu.memory_space<smem>>
    %c2_i32_446 = arith.constant 2 : i32
    %1717 = arith.addi %1710, %c2_i32_446 : i32
    %1718 = arith.index_cast %1717 : i32 to index
    %1719 = memref.load %arg4[%1718] : memref<162xf32, #tpu.memory_space<smem>>
    %c27_i32_447 = arith.constant 27 : i32
    %1720 = arith.muli %897, %c27_i32_447 : i32
    %c25_i32_448 = arith.constant 25 : i32
    %1721 = arith.addi %1720, %c25_i32_448 : i32
    %1722 = arith.index_cast %1721 : i32 to index
    %1723 = memref.load %arg5[%1722] : memref<54xf32, #tpu.memory_space<smem>>
    %1724 = vector.broadcast %1713 : f32 to vector<8x128xf32>
    %1725 = arith.mulf %929, %1724 : vector<8x128xf32>
    %1726 = vector.broadcast %1716 : f32 to vector<8x128xf32>
    %1727 = arith.mulf %930, %1726 : vector<8x128xf32>
    %1728 = arith.addf %1725, %1727 : vector<8x128xf32>
    %1729 = vector.broadcast %1719 : f32 to vector<8x128xf32>
    %1730 = arith.mulf %931, %1729 : vector<8x128xf32>
    %1731 = arith.addf %1728, %1730 : vector<8x128xf32>
    %1732 = arith.addf %928, %1731 : vector<8x128xf32>
    %cst_449 = arith.constant 0.000000e+00 : f32
    %1733 = arith.subf %cst_449, %1723 : f32
    %1734 = vector.broadcast %1733 : f32 to vector<8x128xf32>
    %1735 = arith.cmpf olt, %1732, %1734 : vector<8x128xf32>
    %1736 = arith.extui %1735 : vector<8x128xi1> to vector<8x128xi32>
    %c25_i32_450 = arith.constant 25 : i32
    %1737 = vector.broadcast %c25_i32_450 : i32 to vector<8x128xi32>
    %1738 = arith.shli %1736, %1737 : vector<8x128xi32>
    %1739 = arith.ori %1708, %1738 : vector<8x128xi32>
    %c81_i32_451 = arith.constant 81 : i32
    %1740 = arith.muli %897, %c81_i32_451 : i32
    %c78_i32_452 = arith.constant 78 : i32
    %1741 = arith.addi %1740, %c78_i32_452 : i32
    %c0_i32_453 = arith.constant 0 : i32
    %1742 = arith.addi %1741, %c0_i32_453 : i32
    %1743 = arith.index_cast %1742 : i32 to index
    %1744 = memref.load %arg4[%1743] : memref<162xf32, #tpu.memory_space<smem>>
    %c1_i32_454 = arith.constant 1 : i32
    %1745 = arith.addi %1741, %c1_i32_454 : i32
    %1746 = arith.index_cast %1745 : i32 to index
    %1747 = memref.load %arg4[%1746] : memref<162xf32, #tpu.memory_space<smem>>
    %c2_i32_455 = arith.constant 2 : i32
    %1748 = arith.addi %1741, %c2_i32_455 : i32
    %1749 = arith.index_cast %1748 : i32 to index
    %1750 = memref.load %arg4[%1749] : memref<162xf32, #tpu.memory_space<smem>>
    %c27_i32_456 = arith.constant 27 : i32
    %1751 = arith.muli %897, %c27_i32_456 : i32
    %c26_i32_457 = arith.constant 26 : i32
    %1752 = arith.addi %1751, %c26_i32_457 : i32
    %1753 = arith.index_cast %1752 : i32 to index
    %1754 = memref.load %arg5[%1753] : memref<54xf32, #tpu.memory_space<smem>>
    %1755 = vector.broadcast %1744 : f32 to vector<8x128xf32>
    %1756 = arith.mulf %929, %1755 : vector<8x128xf32>
    %1757 = vector.broadcast %1747 : f32 to vector<8x128xf32>
    %1758 = arith.mulf %930, %1757 : vector<8x128xf32>
    %1759 = arith.addf %1756, %1758 : vector<8x128xf32>
    %1760 = vector.broadcast %1750 : f32 to vector<8x128xf32>
    %1761 = arith.mulf %931, %1760 : vector<8x128xf32>
    %1762 = arith.addf %1759, %1761 : vector<8x128xf32>
    %1763 = arith.addf %928, %1762 : vector<8x128xf32>
    %cst_458 = arith.constant 0.000000e+00 : f32
    %1764 = arith.subf %cst_458, %1754 : f32
    %1765 = vector.broadcast %1764 : f32 to vector<8x128xf32>
    %1766 = arith.cmpf olt, %1763, %1765 : vector<8x128xf32>
    %1767 = arith.extui %1766 : vector<8x128xi1> to vector<8x128xi32>
    %c26_i32_459 = arith.constant 26 : i32
    %1768 = vector.broadcast %c26_i32_459 : i32 to vector<8x128xi32>
    %1769 = arith.shli %1767, %1768 : vector<8x128xi32>
    %1770 = arith.ori %1739, %1769 : vector<8x128xi32>
    %1771 = arith.index_cast %897 : i32 to index
    %1772 = memref.load %arg3[%1771] : memref<2xi32, #tpu.memory_space<smem>>
    %1773 = vector.broadcast %1772 : i32 to vector<8x128xi32>
    %1774 = arith.cmpi slt, %3, %1773 : vector<8x128xi32>
    %1775 = vector.broadcast %1772 : i32 to vector<8x128xi32>
    %1776 = arith.cmpi slt, %7, %1775 : vector<8x128xi32>
    %1777 = arith.andi %1774, %1776 : vector<8x128xi1>
    %c0_i32_460 = arith.constant 0 : i32
    %1778 = vector.broadcast %c0_i32_460 : i32 to vector<8x128xi32>
    %1779 = arith.select %1777, %1770, %1778 : vector<8x128xi1>, vector<8x128xi32>
    %c1_461 = arith.constant 1 : index
    %c0_462 = arith.constant 0 : index
    %c0_463 = arith.constant 0 : index
    %1780 = vector.load %arg8[%c1_461, %c0_462, %c0_463] : memref<2x8x128xi32, #tpu.memory_space<vmem>>, vector<1x8x128xi32>
    %1781 = vector.shape_cast %1780 : vector<1x8x128xi32> to vector<8x128xi32>
    %1782 = vector.shape_cast %1779 : vector<8x128xi32> to vector<1x8x128xi32>
    tpu.vector_store %arg8[%c1_461, %c0_462, %c0_463], %1782 {strides = array<i32>} : memref<2x8x128xi32, #tpu.memory_space<vmem>>, vector<1x8x128xi32>,
    return
  }
  func.func @transform_0(%arg0: i32, %arg1: i32, %arg2: i32) -> i32 {
    %c0_i32 = arith.constant 0 : i32
    %c0_i32_0 = arith.constant 0 : i32
    return %c0_i32 : i32
  }
  func.func @transform_1(%arg0: i32, %arg1: i32, %arg2: i32) -> i32 {
    %c0_i32 = arith.constant 0 : i32
    %c0_i32_0 = arith.constant 0 : i32
    return %c0_i32 : i32
  }
  func.func @transform_2(%arg0: i32, %arg1: i32, %arg2: i32) -> i32 {
    %c0_i32 = arith.constant 0 : i32
    %c0_i32_0 = arith.constant 0 : i32
    return %c0_i32 : i32
  }
  func.func @transform_3(%arg0: i32, %arg1: i32, %arg2: i32) -> (i32, i32, i32) {
    %c0_i32 = arith.constant 0 : i32
    %c0_i32_0 = arith.constant 0 : i32
    return %arg0, %arg1, %c0_i32 : i32, i32, i32
  }
  func.func @transform_4(%arg0: i32, %arg1: i32, %arg2: i32) -> (i32, i32, i32) {
    %c0_i32 = arith.constant 0 : i32
    %c0_i32_0 = arith.constant 0 : i32
    return %arg0, %c0_i32, %arg2 : i32, i32, i32
  }
  func.func @transform_5(%arg0: i32, %arg1: i32, %arg2: i32) -> (i32, i32, i32) {
    %c0_i32 = arith.constant 0 : i32
    return %arg0, %arg1, %arg2 : i32, i32, i32
  }
}

</mosaic_0001>

<llo_original>
// kernel: tpu_custom_call.1
$region0: #{tpu_custom_call.1}
  #allocation0 [shape = 'u32[]', space=smem, size = 0x4, offset = 0x4, fixed_abs, tag = 'smem constant byte address 0x4 - core index']
  #allocation1 [shape = 'u32[72,128]{1,0:T(1,128)}', space=vmem, size = 0x9000, scoped, tag = 'internal scratch']
  %s0 = inlined_call_operand.vmem [shape: s32[2], index: 0, kind: input, shape index: {}]
  %s1 = inlined_call_operand.vmem [shape: f32[162], index: 1, kind: input, shape index: {}]
  %s2 = inlined_call_operand.vmem [shape: f32[54], index: 2, kind: input, shape index: {}]
  %s3 = inlined_call_operand.vmem [shape: f32[2,8,4], index: 3, kind: input, shape index: {}]
  %s4 = inlined_call_operand.vmem [shape: f32[2,4,128], index: 4, kind: input, shape index: {}]
  %s5 = inlined_call_operand.hbm [shape: s32[2,8,128], index: 5, kind: output, shape index: {}]
  %s6 = sld [smem:[#allocation0]]
  $region42: #{tpu_custom_call.1} parent=0
    _
  %s8 = ssub.s32 1, %s6
  %s9 = scalar_select 0, %s8, %s6
  $region1: #{tpu_custom_call.1} parent=0
    #allocation2 [shape = 'u8[512]{0}', space=smem, size = 0x200, scoped, tag = 'input window, operand 0, single buffered']
    #allocation3 [shape = 's32[1]{0}', space=sflag, size = 0x4, scoped, tag = 'scoped memory for tpu_custom_call.1']
    #allocation4 [shape = 's32[1]{0}', space=sflag, size = 0x4, scoped, tag = 'scoped memory for tpu_custom_call.1']
    #allocation5 [shape = 'u8[1024]{0}', space=smem, size = 0x400, scoped, tag = 'input window, operand 1, single buffered']
    #allocation6 [shape = 's32[1]{0}', space=sflag, size = 0x4, scoped, tag = 'scoped memory for tpu_custom_call.1']
    #allocation7 [shape = 'u8[512]{0}', space=smem, size = 0x200, scoped, tag = 'input window, operand 2, single buffered']
    #allocation8 [shape = 'u8[8192]{0}', space=vmem, size = 0x2000, scoped, tag = 'output window, operand 0, single buffered']
    %10 = vsyncpa [#allocation4], 0
    %11 = vsyncpa [#allocation6], 0
    %12 = vsyncpa [#allocation3], 0
    // Predicated region
    $region2: #{tpu_custom_call.1} parent=1 // pred_check
      _
    $region3: #{tpu_custom_call.1} parent=1 // pred_check_branch
      %14 = sbr.rel (0) target = $region5
    $region4: #{tpu_custom_call.1} parent=1 // pred_region
      %16 = vsyncadd [#allocation4], 0
      %s18 = sshll.u32 %s0, 4
      %s19 = int_to_ptr.vmem [resolvable:$true] %s18
      %21 = dma.vmem_to_smem %s19, 16, [#allocation2], [#allocation4]
    $region5: #{tpu_custom_call.1} parent=1 // pred_fallthru
      _
    // Predicated region
    $region6: #{tpu_custom_call.1} parent=1 // pred_check
      _
    $region7: #{tpu_custom_call.1} parent=1 // pred_check_branch
      %23 = sbr.rel (0) target = $region9
    $region8: #{tpu_custom_call.1} parent=1 // pred_region
      %25 = vsyncadd [#allocation6], 0
      %s27 = sshll.u32 %s1, 4
      %s28 = int_to_ptr.vmem [resolvable:$true] %s27
      %30 = dma.vmem_to_smem %s28, 32, [#allocation5], [#allocation6]
    $region9: #{tpu_custom_call.1} parent=1 // pred_fallthru
      _
    // Predicated region
    $region10: #{tpu_custom_call.1} parent=1 // pred_check
      _
    $region11: #{tpu_custom_call.1} parent=1 // pred_check_branch
      %32 = sbr.rel (0) target = $region13
    $region12: #{tpu_custom_call.1} parent=1 // pred_region
      %34 = vsyncadd [#allocation6], 0
      %s36 = sshll.u32 %s2, 4
      %s37 = int_to_ptr.vmem [resolvable:$true] %s36
      %39 = dma.vmem_to_smem %s37, 16, [#allocation7], [#allocation6]
    $region13: #{tpu_custom_call.1} parent=1 // pred_fallthru
      _
    // Predicated region
    $region14: #{tpu_custom_call.1} parent=1 // pred_check
      _
    $region15: #{tpu_custom_call.1} parent=1 // pred_check_branch
      %41 = sbr.rel (0) target = $region17
    $region16: #{tpu_custom_call.1} parent=1 // pred_region
      _
    $region17: #{tpu_custom_call.1} parent=1 // pred_fallthru
      _
    // Predicated region
    $region18: #{tpu_custom_call.1} parent=1 // pred_check
      _
    $region19: #{tpu_custom_call.1} parent=1 // pred_check_branch
      %43 = sbr.rel (0) target = $region21
    $region20: #{tpu_custom_call.1} parent=1 // pred_region
      _
    $region21: #{tpu_custom_call.1} parent=1 // pred_fallthru
      _
    // Predicated region
    $region22: #{tpu_custom_call.1} parent=1 // pred_check
      _
    $region23: #{tpu_custom_call.1} parent=1 // pred_check_branch
      %45 = sbr.rel (0) target = $region25
    $region24: #{tpu_custom_call.1} parent=1 // pred_region
      %47 = dma.done [#allocation4], 16
    $region25: #{tpu_custom_call.1} parent=1 // pred_fallthru
      _
    // Predicated region
    $region26: #{tpu_custom_call.1} parent=1 // pred_check
      _
    $region27: #{tpu_custom_call.1} parent=1 // pred_check_branch
      %49 = sbr.rel (0) target = $region29
    $region28: #{tpu_custom_call.1} parent=1 // pred_region
      %51 = dma.done [#allocation6], 32
    $region29: #{tpu_custom_call.1} parent=1 // pred_fallthru
      _
    // Predicated region
    $region30: #{tpu_custom_call.1} parent=1 // pred_check
      _
    $region31: #{tpu_custom_call.1} parent=1 // pred_check_branch
      %53 = sbr.rel (0) target = $region33
    $region32: #{tpu_custom_call.1} parent=1 // pred_region
      %55 = dma.done [#allocation6], 16
    $region33: #{tpu_custom_call.1} parent=1 // pred_fallthru
      _
    %56 = sfence
    %v57 = vlaneseq
    %v58 = vshrl.u32 %v57, 7
    %s59 = smul.u32 0, 8
    %v60 = vstv %s59
    %v61 = vadd.s32 %v58, %v60
    %v62 = vlaneseq
    %v63 = vand.u32 %v62, 127
    %s64 = smul.u32 0, 128
    %v65 = vstv %s64
    %v66 = vadd.s32 %v63, %v65
    %vm67 = vcmp.ne.s32.totalorder %v61, %v66
    %s68 = smul.u32 0, 2
    %v69 = vld [vmem:[%s3] sm:$0xff]
    %v70 = vld [vmem:[%s4] sm:$0xf]
    %v71 = vperm.slane %v70, 0
    %73 = vset.pattern.permute.xlu0 0
    %74 = vperm.xlu0 %73, %v69
    %v75 = vpop.permute.xlu0 %74
    %v77 = vsub.f32 %v71, %v75
    %v78 = vperm.slane %v70, 1
    %79 = vset.pattern.permute.xlu0 1
    %80 = vperm.xlu0 %79, %v69
    %v81 = vpop.permute.xlu0 %80
    %v83 = vsub.f32 %v78, %v81
    %v84 = vperm.slane %v70, 2
    %85 = vset.pattern.permute.xlu0 2
    %86 = vperm.xlu0 %85, %v69
    %v87 = vpop.permute.xlu0 %86
    %v89 = vsub.f32 %v84, %v87
    %90 = vset.pattern.permute.xlu0 3
    %91 = vperm.xlu0 %90, %v69
    %v92 = vpop.permute.xlu0 %91
    %v94 = vperm.slane %v70, 3
    %v95 = vadd.f32 %v92, %v94
    %v96 = vmul.f32 %v77, %v77
    %v97 = vmul.f32 %v83, %v83
    %v98 = vadd.f32 %v96, %v97
    %v99 = vmul.f32 %v89, %v89
    %v100 = vadd.f32 %v98, %v99
    %v101 = vmul.f32 %v95, %v95
    %v102 = vsub.f32 %v100, %v101
    %v103 = vadd.f32 %v77, %v77
    %v104 = vadd.f32 %v83, %v83
    %v105 = vadd.f32 %v89, %v89
    %s106 = smul.u32 0, 162
    %s107 = sld [smem:[#allocation5 + %s106]]
    %s108 = sadd.s32 %s106, 1
    %s109 = sld [smem:[#allocation5 + %s108]]
    %s110 = sadd.s32 %s106, 2
    %s111 = sld [smem:[#allocation5 + %s110]]
    %s112 = smul.u32 0, 54
    %s113 = sld [smem:[#allocation7 + %s112]]
    %v114 = vstv %s107
    %v115 = vmul.f32 %v103, %v114
    %v116 = vstv %s109
    %v117 = vmul.f32 %v104, %v116
    %v118 = vadd.f32 %v115, %v117
    %v119 = vstv %s111
    %v120 = vmul.f32 %v105, %v119
    %v121 = vadd.f32 %v118, %v120
    %v122 = vadd.f32 %v102, %v121
    %s123 = ssub.f32 0.0, %s113
    %v124 = vstv %s123
    %vm125 = vcmp.lt.f32.partialorder %v122, %v124
    %v126 = vsel %vm125, 1, 0
    %s127 = sadd.s32 %s106, 3
    %s128 = sld [smem:[#allocation5 + %s127]]
    %s129 = sadd.s32 %s106, 4
    %s130 = sld [smem:[#allocation5 + %s129]]
    %s131 = sadd.s32 %s106, 5
    %s132 = sld [smem:[#allocation5 + %s131]]
    %s133 = sadd.s32 %s112, 1
    %s134 = sld [smem:[#allocation7 + %s133]]
    %v135 = vstv %s128
    %v136 = vmul.f32 %v103, %v135
    %v137 = vstv %s130
    %v138 = vmul.f32 %v104, %v137
    %v139 = vadd.f32 %v136, %v138
    %v140 = vstv %s132
    %v141 = vmul.f32 %v105, %v140
    %v142 = vadd.f32 %v139, %v141
    %v143 = vadd.f32 %v102, %v142
    %s144 = ssub.f32 0.0, %s134
    %v145 = vstv %s144
    %vm146 = vcmp.lt.f32.partialorder %v143, %v145
    %v147 = vsel %vm146, 1, 0
    %v148 = vshll.u32 %v147, 1
    %v149 = vor.u32 %v126, %v148
    %s150 = sadd.s32 %s106, 6
    %s151 = sld [smem:[#allocation5 + %s150]]
    %s152 = sadd.s32 %s106, 7
    %s153 = sld [smem:[#allocation5 + %s152]]
    %s154 = sadd.s32 %s106, 8
    %s155 = sld [smem:[#allocation5 + %s154]]
    %s156 = sadd.s32 %s112, 2
    %s157 = sld [smem:[#allocation7 + %s156]]
    %v158 = vstv %s151
    %v159 = vmul.f32 %v103, %v158
    %v160 = vstv %s153
    %v161 = vmul.f32 %v104, %v160
    %v162 = vadd.f32 %v159, %v161
    %v163 = vstv %s155
    %v164 = vmul.f32 %v105, %v163
    %v165 = vadd.f32 %v162, %v164
    %v166 = vadd.f32 %v102, %v165
    %s167 = ssub.f32 0.0, %s157
    %v168 = vstv %s167
    %vm169 = vcmp.lt.f32.partialorder %v166, %v168
    %v170 = vsel %vm169, 1, 0
    %v171 = vshll.u32 %v170, 2
    %v172 = vor.u32 %v149, %v171
    %s173 = sadd.s32 %s106, 9
    %s174 = sld [smem:[#allocation5 + %s173]]
    %s175 = sadd.s32 %s106, 10
    %s176 = sld [smem:[#allocation5 + %s175]]
    %s177 = sadd.s32 %s106, 11
    %s178 = sld [smem:[#allocation5 + %s177]]
    %s179 = sadd.s32 %s112, 3
    %s180 = sld [smem:[#allocation7 + %s179]]
    %v181 = vstv %s174
    %v182 = vmul.f32 %v103, %v181
    %v183 = vstv %s176
    %v184 = vmul.f32 %v104, %v183
    %v185 = vadd.f32 %v182, %v184
    %v186 = vstv %s178
    %v187 = vmul.f32 %v105, %v186
    %v188 = vadd.f32 %v185, %v187
    %v189 = vadd.f32 %v102, %v188
    %s190 = ssub.f32 0.0, %s180
    %v191 = vstv %s190
    %vm192 = vcmp.lt.f32.partialorder %v189, %v191
    %v193 = vsel %vm192, 1, 0
    %v194 = vshll.u32 %v193, 3
    %v195 = vor.u32 %v172, %v194
    %s196 = sadd.s32 %s106, 12
    %s197 = sld [smem:[#allocation5 + %s196]]
    %s198 = sadd.s32 %s106, 13
    %s199 = sld [smem:[#allocation5 + %s198]]
    %s200 = sadd.s32 %s106, 14
    %s201 = sld [smem:[#allocation5 + %s200]]
    %s202 = sadd.s32 %s112, 4
    %s203 = sld [smem:[#allocation7 + %s202]]
    %v204 = vstv %s197
    %v205 = vmul.f32 %v103, %v204
    %v206 = vstv %s199
    %v207 = vmul.f32 %v104, %v206
    %v208 = vadd.f32 %v205, %v207
    %v209 = vstv %s201
    %v210 = vmul.f32 %v105, %v209
    %v211 = vadd.f32 %v208, %v210
    %v212 = vadd.f32 %v102, %v211
    %s213 = ssub.f32 0.0, %s203
    %v214 = vstv %s213
    %vm215 = vcmp.lt.f32.partialorder %v212, %v214
    %v216 = vsel %vm215, 1, 0
    %v217 = vshll.u32 %v216, 4
    %v218 = vor.u32 %v195, %v217
    %s219 = sadd.s32 %s106, 15
    %s220 = sld [smem:[#allocation5 + %s219]]
    %s221 = sadd.s32 %s106, 16
    %s222 = sld [smem:[#allocation5 + %s221]]
    %s223 = sadd.s32 %s106, 17
    %s224 = sld [smem:[#allocation5 + %s223]]
    %s225 = sadd.s32 %s112, 5
    %s226 = sld [smem:[#allocation7 + %s225]]
    %v227 = vstv %s220
    %v228 = vmul.f32 %v103, %v227
    %v229 = vstv %s222
    %v230 = vmul.f32 %v104, %v229
    %v231 = vadd.f32 %v228, %v230
    %v232 = vstv %s224
    %v233 = vmul.f32 %v105, %v232
    %v234 = vadd.f32 %v231, %v233
    %v235 = vadd.f32 %v102, %v234
    %s236 = ssub.f32 0.0, %s226
    %v237 = vstv %s236
    %vm238 = vcmp.lt.f32.partialorder %v235, %v237
    %v239 = vsel %vm238, 1, 0
    %v240 = vshll.u32 %v239, 5
    %v241 = vor.u32 %v218, %v240
    %s242 = sadd.s32 %s106, 18
    %s243 = sld [smem:[#allocation5 + %s242]]
    %s244 = sadd.s32 %s106, 19
    %s245 = sld [smem:[#allocation5 + %s244]]
    %s246 = sadd.s32 %s106, 20
    %s247 = sld [smem:[#allocation5 + %s246]]
    %s248 = sadd.s32 %s112, 6
    %s249 = sld [smem:[#allocation7 + %s248]]
    %v250 = vstv %s243
    %v251 = vmul.f32 %v103, %v250
    %v252 = vstv %s245
    %v253 = vmul.f32 %v104, %v252
    %v254 = vadd.f32 %v251, %v253
    %v255 = vstv %s247
    %v256 = vmul.f32 %v105, %v255
    %v257 = vadd.f32 %v254, %v256
    %v258 = vadd.f32 %v102, %v257
    %s259 = ssub.f32 0.0, %s249
    %v260 = vstv %s259
    %vm261 = vcmp.lt.f32.partialorder %v258, %v260
    %v262 = vsel %vm261, 1, 0
    %v263 = vshll.u32 %v262, 6
    %v264 = vor.u32 %v241, %v263
    %s265 = sadd.s32 %s106, 21
    %s266 = sld [smem:[#allocation5 + %s265]]
    %s267 = sadd.s32 %s106, 22
    %s268 = sld [smem:[#allocation5 + %s267]]
    %s269 = sadd.s32 %s106, 23
    %s270 = sld [smem:[#allocation5 + %s269]]
    %s271 = sadd.s32 %s112, 7
    %s272 = sld [smem:[#allocation7 + %s271]]
    %v273 = vstv %s266
    %v274 = vmul.f32 %v103, %v273
    %v275 = vstv %s268
    %v276 = vmul.f32 %v104, %v275
    %v277 = vadd.f32 %v274, %v276
    %v278 = vstv %s270
    %v279 = vmul.f32 %v105, %v278
    %v280 = vadd.f32 %v277, %v279
    %v281 = vadd.f32 %v102, %v280
    %s282 = ssub.f32 0.0, %s272
    %v283 = vstv %s282
    %vm284 = vcmp.lt.f32.partialorder %v281, %v283
    %v285 = vsel %vm284, 1, 0
    %v286 = vshll.u32 %v285, 7
    %v287 = vor.u32 %v264, %v286
    %s288 = sadd.s32 %s106, 24
    %s289 = sld [smem:[#allocation5 + %s288]]
    %s290 = sadd.s32 %s106, 25
    %s291 = sld [smem:[#allocation5 + %s290]]
    %s292 = sadd.s32 %s106, 26
    %s293 = sld [smem:[#allocation5 + %s292]]
    %s294 = sadd.s32 %s112, 8
    %s295 = sld [smem:[#allocation7 + %s294]]
    %v296 = vstv %s289
    %v297 = vmul.f32 %v103, %v296
    %v298 = vstv %s291
    %v299 = vmul.f32 %v104, %v298
    %v300 = vadd.f32 %v297, %v299
    %v301 = vstv %s293
    %v302 = vmul.f32 %v105, %v301
    %v303 = vadd.f32 %v300, %v302
    %v304 = vadd.f32 %v102, %v303
    %s305 = ssub.f32 0.0, %s295
    %v306 = vstv %s305
    %vm307 = vcmp.lt.f32.partialorder %v304, %v306
    %v308 = vsel %vm307, 1, 0
    %v309 = vshll.u32 %v308, 8
    %v310 = vor.u32 %v287, %v309
    %s311 = sadd.s32 %s106, 27
    %s312 = sld [smem:[#allocation5 + %s311]]
    %s313 = sadd.s32 %s106, 28
    %s314 = sld [smem:[#allocation5 + %s313]]
    %s315 = sadd.s32 %s106, 29
    %s316 = sld [smem:[#allocation5 + %s315]]
    %s317 = sadd.s32 %s112, 9
    %s318 = sld [smem:[#allocation7 + %s317]]
    %v319 = vstv %s312
    %v320 = vmul.f32 %v103, %v319
    %v321 = vstv %s314
    %v322 = vmul.f32 %v104, %v321
    %v323 = vadd.f32 %v320, %v322
    %v324 = vstv %s316
    %v325 = vmul.f32 %v105, %v324
    %v326 = vadd.f32 %v323, %v325
    %v327 = vadd.f32 %v102, %v326
    %s328 = ssub.f32 0.0, %s318
    %v329 = vstv %s328
    %vm330 = vcmp.lt.f32.partialorder %v327, %v329
    %v331 = vsel %vm330, 1, 0
    %v332 = vshll.u32 %v331, 9
    %v333 = vor.u32 %v310, %v332
    %s334 = sadd.s32 %s106, 30
    %s335 = sld [smem:[#allocation5 + %s334]]
    %s336 = sadd.s32 %s106, 31
    %s337 = sld [smem:[#allocation5 + %s336]]
    %s338 = sadd.s32 %s106, 32
    %s339 = sld [smem:[#allocation5 + %s338]]
    %s340 = sadd.s32 %s112, 10
    %s341 = sld [smem:[#allocation7 + %s340]]
    %v342 = vstv %s335
    %v343 = vmul.f32 %v103, %v342
    %v344 = vstv %s337
    %v345 = vmul.f32 %v104, %v344
    %v346 = vadd.f32 %v343, %v345
    %v347 = vstv %s339
    %v348 = vmul.f32 %v105, %v347
    %v349 = vadd.f32 %v346, %v348
    %v350 = vadd.f32 %v102, %v349
    %s351 = ssub.f32 0.0, %s341
    %v352 = vstv %s351
    %vm353 = vcmp.lt.f32.partialorder %v350, %v352
    %v354 = vsel %vm353, 1, 0
    %v355 = vshll.u32 %v354, 10
    %v356 = vor.u32 %v333, %v355
    %s357 = sadd.s32 %s106, 33
    %s358 = sld [smem:[#allocation5 + %s357]]
    %s359 = sadd.s32 %s106, 34
    %s360 = sld [smem:[#allocation5 + %s359]]
    %s361 = sadd.s32 %s106, 35
    %s362 = sld [smem:[#allocation5 + %s361]]
    %s363 = sadd.s32 %s112, 11
    %s364 = sld [smem:[#allocation7 + %s363]]
    %v365 = vstv %s358
    %v366 = vmul.f32 %v103, %v365
    %v367 = vstv %s360
    %v368 = vmul.f32 %v104, %v367
    %v369 = vadd.f32 %v366, %v368
    %v370 = vstv %s362
    %v371 = vmul.f32 %v105, %v370
    %v372 = vadd.f32 %v369, %v371
    %v373 = vadd.f32 %v102, %v372
    %s374 = ssub.f32 0.0, %s364
    %v375 = vstv %s374
    %vm376 = vcmp.lt.f32.partialorder %v373, %v375
    %v377 = vsel %vm376, 1, 0
    %v378 = vshll.u32 %v377, 11
    %v379 = vor.u32 %v356, %v378
    %s380 = sadd.s32 %s106, 36
    %s381 = sld [smem:[#allocation5 + %s380]]
    %s382 = sadd.s32 %s106, 37
    %s383 = sld [smem:[#allocation5 + %s382]]
    %s384 = sadd.s32 %s106, 38
    %s385 = sld [smem:[#allocation5 + %s384]]
    %s386 = sadd.s32 %s112, 12
    %s387 = sld [smem:[#allocation7 + %s386]]
    %v388 = vstv %s381
    %v389 = vmul.f32 %v103, %v388
    %v390 = vstv %s383
    %v391 = vmul.f32 %v104, %v390
    %v392 = vadd.f32 %v389, %v391
    %v393 = vstv %s385
    %v394 = vmul.f32 %v105, %v393
    %v395 = vadd.f32 %v392, %v394
    %v396 = vadd.f32 %v102, %v395
    %s397 = ssub.f32 0.0, %s387
    %v398 = vstv %s397
    %vm399 = vcmp.lt.f32.partialorder %v396, %v398
    %v400 = vsel %vm399, 1, 0
    %v401 = vshll.u32 %v400, 12
    %v402 = vor.u32 %v379, %v401
    %s403 = sadd.s32 %s106, 39
    %s404 = sld [smem:[#allocation5 + %s403]]
    %s405 = sadd.s32 %s106, 40
    %s406 = sld [smem:[#allocation5 + %s405]]
    %s407 = sadd.s32 %s106, 41
    %s408 = sld [smem:[#allocation5 + %s407]]
    %s409 = sadd.s32 %s112, 13
    %s410 = sld [smem:[#allocation7 + %s409]]
    %v411 = vstv %s404
    %v412 = vmul.f32 %v103, %v411
    %v413 = vstv %s406
    %v414 = vmul.f32 %v104, %v413
    %v415 = vadd.f32 %v412, %v414
    %v416 = vstv %s408
    %v417 = vmul.f32 %v105, %v416
    %v418 = vadd.f32 %v415, %v417
    %v419 = vadd.f32 %v102, %v418
    %s420 = ssub.f32 0.0, %s410
    %v421 = vstv %s420
    %vm422 = vcmp.lt.f32.partialorder %v419, %v421
    %vm423 = vmand %vm422, %vm67
    %v424 = vsel %vm423, 1, 0
    %v425 = vshll.u32 %v424, 13
    %v426 = vor.u32 %v402, %v425
    %s427 = sadd.s32 %s106, 42
    %s428 = sld [smem:[#allocation5 + %s427]]
    %s429 = sadd.s32 %s106, 43
    %s430 = sld [smem:[#allocation5 + %s429]]
    %s431 = sadd.s32 %s106, 44
    %s432 = sld [smem:[#allocation5 + %s431]]
    %s433 = sadd.s32 %s112, 14
    %s434 = sld [smem:[#allocation7 + %s433]]
    %v435 = vstv %s428
    %v436 = vmul.f32 %v103, %v435
    %v437 = vstv %s430
    %v438 = vmul.f32 %v104, %v437
    %v439 = vadd.f32 %v436, %v438
    %v440 = vstv %s432
    %v441 = vmul.f32 %v105, %v440
    %v442 = vadd.f32 %v439, %v441
    %v443 = vadd.f32 %v102, %v442
    %s444 = ssub.f32 0.0, %s434
    %v445 = vstv %s444
    %vm446 = vcmp.lt.f32.partialorder %v443, %v445
    %v447 = vsel %vm446, 1, 0
    %v448 = vshll.u32 %v447, 14
    %v449 = vor.u32 %v426, %v448
    %s450 = sadd.s32 %s106, 45
    %s451 = sld [smem:[#allocation5 + %s450]]
    %s452 = sadd.s32 %s106, 46
    %s453 = sld [smem:[#allocation5 + %s452]]
    %s454 = sadd.s32 %s106, 47
    %s455 = sld [smem:[#allocation5 + %s454]]
    %s456 = sadd.s32 %s112, 15
    %s457 = sld [smem:[#allocation7 + %s456]]
    %v458 = vstv %s451
    %v459 = vmul.f32 %v103, %v458
    %v460 = vstv %s453
    %v461 = vmul.f32 %v104, %v460
    %v462 = vadd.f32 %v459, %v461
    %v463 = vstv %s455
    %v464 = vmul.f32 %v105, %v463
    %v465 = vadd.f32 %v462, %v464
    %v466 = vadd.f32 %v102, %v465
    %s467 = ssub.f32 0.0, %s457
    %v468 = vstv %s467
    %vm469 = vcmp.lt.f32.partialorder %v466, %v468
    %v470 = vsel %vm469, 1, 0
    %v471 = vshll.u32 %v470, 15
    %v472 = vor.u32 %v449, %v471
    %s473 = sadd.s32 %s106, 48
    %s474 = sld [smem:[#allocation5 + %s473]]
    %s475 = sadd.s32 %s106, 49
    %s476 = sld [smem:[#allocation5 + %s475]]
    %s477 = sadd.s32 %s106, 50
    %s478 = sld [smem:[#allocation5 + %s477]]
    %s479 = sadd.s32 %s112, 16
    %s480 = sld [smem:[#allocation7 + %s479]]
    %v481 = vstv %s474
    %v482 = vmul.f32 %v103, %v481
    %v483 = vstv %s476
    %v484 = vmul.f32 %v104, %v483
    %v485 = vadd.f32 %v482, %v484
    %v486 = vstv %s478
    %v487 = vmul.f32 %v105, %v486
    %v488 = vadd.f32 %v485, %v487
    %v489 = vadd.f32 %v102, %v488
    %s490 = ssub.f32 0.0, %s480
    %v491 = vstv %s490
    %vm492 = vcmp.lt.f32.partialorder %v489, %v491
    %v493 = vsel %vm492, 1, 0
    %v494 = vshll.u32 %v493, 16
    %v495 = vor.u32 %v472, %v494
    %s496 = sadd.s32 %s106, 51
    %s497 = sld [smem:[#allocation5 + %s496]]
    %s498 = sadd.s32 %s106, 52
    %s499 = sld [smem:[#allocation5 + %s498]]
    %s500 = sadd.s32 %s106, 53
    %s501 = sld [smem:[#allocation5 + %s500]]
    %s502 = sadd.s32 %s112, 17
    %s503 = sld [smem:[#allocation7 + %s502]]
    %v504 = vstv %s497
    %v505 = vmul.f32 %v103, %v504
    %v506 = vstv %s499
    %v507 = vmul.f32 %v104, %v506
    %v508 = vadd.f32 %v505, %v507
    %v509 = vstv %s501
    %v510 = vmul.f32 %v105, %v509
    %v511 = vadd.f32 %v508, %v510
    %v512 = vadd.f32 %v102, %v511
    %s513 = ssub.f32 0.0, %s503
    %v514 = vstv %s513
    %vm515 = vcmp.lt.f32.partialorder %v512, %v514
    %v516 = vsel %vm515, 1, 0
    %v517 = vshll.u32 %v516, 17
    %v518 = vor.u32 %v495, %v517
    %s519 = sadd.s32 %s106, 54
    %s520 = sld [smem:[#allocation5 + %s519]]
    %s521 = sadd.s32 %s106, 55
    %s522 = sld [smem:[#allocation5 + %s521]]
    %s523 = sadd.s32 %s106, 56
    %s524 = sld [smem:[#allocation5 + %s523]]
    %s525 = sadd.s32 %s112, 18
    %s526 = sld [smem:[#allocation7 + %s525]]
    %v527 = vstv %s520
    %v528 = vmul.f32 %v103, %v527
    %v529 = vstv %s522
    %v530 = vmul.f32 %v104, %v529
    %v531 = vadd.f32 %v528, %v530
    %v532 = vstv %s524
    %v533 = vmul.f32 %v105, %v532
    %v534 = vadd.f32 %v531, %v533
    %v535 = vadd.f32 %v102, %v534
    %s536 = ssub.f32 0.0, %s526
    %v537 = vstv %s536
    %vm538 = vcmp.lt.f32.partialorder %v535, %v537
    %v539 = vsel %vm538, 1, 0
    %v540 = vshll.u32 %v539, 18
    %v541 = vor.u32 %v518, %v540
    %s542 = sadd.s32 %s106, 57
    %s543 = sld [smem:[#allocation5 + %s542]]
    %s544 = sadd.s32 %s106, 58
    %s545 = sld [smem:[#allocation5 + %s544]]
    %s546 = sadd.s32 %s106, 59
    %s547 = sld [smem:[#allocation5 + %s546]]
    %s548 = sadd.s32 %s112, 19
    %s549 = sld [smem:[#allocation7 + %s548]]
    %v550 = vstv %s543
    %v551 = vmul.f32 %v103, %v550
    %v552 = vstv %s545
    %v553 = vmul.f32 %v104, %v552
    %v554 = vadd.f32 %v551, %v553
    %v555 = vstv %s547
    %v556 = vmul.f32 %v105, %v555
    %v557 = vadd.f32 %v554, %v556
    %v558 = vadd.f32 %v102, %v557
    %s559 = ssub.f32 0.0, %s549
    %v560 = vstv %s559
    %vm561 = vcmp.lt.f32.partialorder %v558, %v560
    %v562 = vsel %vm561, 1, 0
    %v563 = vshll.u32 %v562, 19
    %v564 = vor.u32 %v541, %v563
    %s565 = sadd.s32 %s106, 60
    %s566 = sld [smem:[#allocation5 + %s565]]
    %s567 = sadd.s32 %s106, 61
    %s568 = sld [smem:[#allocation5 + %s567]]
    %s569 = sadd.s32 %s106, 62
    %s570 = sld [smem:[#allocation5 + %s569]]
    %s571 = sadd.s32 %s112, 20
    %s572 = sld [smem:[#allocation7 + %s571]]
    %v573 = vstv %s566
    %v574 = vmul.f32 %v103, %v573
    %v575 = vstv %s568
    %v576 = vmul.f32 %v104, %v575
    %v577 = vadd.f32 %v574, %v576
    %v578 = vstv %s570
    %v579 = vmul.f32 %v105, %v578
    %v580 = vadd.f32 %v577, %v579
    %v581 = vadd.f32 %v102, %v580
    %s582 = ssub.f32 0.0, %s572
    %v583 = vstv %s582
    %vm584 = vcmp.lt.f32.partialorder %v581, %v583
    %v585 = vsel %vm584, 1, 0
    %v586 = vshll.u32 %v585, 20
    %v587 = vor.u32 %v564, %v586
    %s588 = sadd.s32 %s106, 63
    %s589 = sld [smem:[#allocation5 + %s588]]
    %s590 = sadd.s32 %s106, 64
    %s591 = sld [smem:[#allocation5 + %s590]]
    %s592 = sadd.s32 %s106, 65
    %s593 = sld [smem:[#allocation5 + %s592]]
    %s594 = sadd.s32 %s112, 21
    %s595 = sld [smem:[#allocation7 + %s594]]
    %v596 = vstv %s589
    %v597 = vmul.f32 %v103, %v596
    %v598 = vstv %s591
    %v599 = vmul.f32 %v104, %v598
    %v600 = vadd.f32 %v597, %v599
    %v601 = vstv %s593
    %v602 = vmul.f32 %v105, %v601
    %v603 = vadd.f32 %v600, %v602
    %v604 = vadd.f32 %v102, %v603
    %s605 = ssub.f32 0.0, %s595
    %v606 = vstv %s605
    %vm607 = vcmp.lt.f32.partialorder %v604, %v606
    %v608 = vsel %vm607, 1, 0
    %v609 = vshll.u32 %v608, 21
    %v610 = vor.u32 %v587, %v609
    %s611 = sadd.s32 %s106, 66
    %s612 = sld [smem:[#allocation5 + %s611]]
    %s613 = sadd.s32 %s106, 67
    %s614 = sld [smem:[#allocation5 + %s613]]
    %s615 = sadd.s32 %s106, 68
    %s616 = sld [smem:[#allocation5 + %s615]]
    %s617 = sadd.s32 %s112, 22
    %s618 = sld [smem:[#allocation7 + %s617]]
    %v619 = vstv %s612
    %v620 = vmul.f32 %v103, %v619
    %v621 = vstv %s614
    %v622 = vmul.f32 %v104, %v621
    %v623 = vadd.f32 %v620, %v622
    %v624 = vstv %s616
    %v625 = vmul.f32 %v105, %v624
    %v626 = vadd.f32 %v623, %v625
    %v627 = vadd.f32 %v102, %v626
    %s628 = ssub.f32 0.0, %s618
    %v629 = vstv %s628
    %vm630 = vcmp.lt.f32.partialorder %v627, %v629
    %v631 = vsel %vm630, 1, 0
    %v632 = vshll.u32 %v631, 22
    %v633 = vor.u32 %v610, %v632
    %s634 = sadd.s32 %s106, 69
    %s635 = sld [smem:[#allocation5 + %s634]]
    %s636 = sadd.s32 %s106, 70
    %s637 = sld [smem:[#allocation5 + %s636]]
    %s638 = sadd.s32 %s106, 71
    %s639 = sld [smem:[#allocation5 + %s638]]
    %s640 = sadd.s32 %s112, 23
    %s641 = sld [smem:[#allocation7 + %s640]]
    %v642 = vstv %s635
    %v643 = vmul.f32 %v103, %v642
    %v644 = vstv %s637
    %v645 = vmul.f32 %v104, %v644
    %v646 = vadd.f32 %v643, %v645
    %v647 = vstv %s639
    %v648 = vmul.f32 %v105, %v647
    %v649 = vadd.f32 %v646, %v648
    %v650 = vadd.f32 %v102, %v649
    %s651 = ssub.f32 0.0, %s641
    %v652 = vstv %s651
    %vm653 = vcmp.lt.f32.partialorder %v650, %v652
    %v654 = vsel %vm653, 1, 0
    %v655 = vshll.u32 %v654, 23
    %v656 = vor.u32 %v633, %v655
    %s657 = sadd.s32 %s106, 72
    %s658 = sld [smem:[#allocation5 + %s657]]
    %s659 = sadd.s32 %s106, 73
    %s660 = sld [smem:[#allocation5 + %s659]]
    %s661 = sadd.s32 %s106, 74
    %s662 = sld [smem:[#allocation5 + %s661]]
    %s663 = sadd.s32 %s112, 24
    %s664 = sld [smem:[#allocation7 + %s663]]
    %v665 = vstv %s658
    %v666 = vmul.f32 %v103, %v665
    %v667 = vstv %s660
    %v668 = vmul.f32 %v104, %v667
    %v669 = vadd.f32 %v666, %v668
    %v670 = vstv %s662
    %v671 = vmul.f32 %v105, %v670
    %v672 = vadd.f32 %v669, %v671
    %v673 = vadd.f32 %v102, %v672
    %s674 = ssub.f32 0.0, %s664
    %v675 = vstv %s674
    %vm676 = vcmp.lt.f32.partialorder %v673, %v675
    %v677 = vsel %vm676, 1, 0
    %v678 = vshll.u32 %v677, 24
    %v679 = vor.u32 %v656, %v678
    %s680 = sadd.s32 %s106, 75
    %s681 = sld [smem:[#allocation5 + %s680]]
    %s682 = sadd.s32 %s106, 76
    %s683 = sld [smem:[#allocation5 + %s682]]
    %s684 = sadd.s32 %s106, 77
    %s685 = sld [smem:[#allocation5 + %s684]]
    %s686 = sadd.s32 %s112, 25
    %s687 = sld [smem:[#allocation7 + %s686]]
    %v688 = vstv %s681
    %v689 = vmul.f32 %v103, %v688
    %v690 = vstv %s683
    %v691 = vmul.f32 %v104, %v690
    %v692 = vadd.f32 %v689, %v691
    %v693 = vstv %s685
    %v694 = vmul.f32 %v105, %v693
    %v695 = vadd.f32 %v692, %v694
    %v696 = vadd.f32 %v102, %v695
    %s697 = ssub.f32 0.0, %s687
    %v698 = vstv %s697
    %vm699 = vcmp.lt.f32.partialorder %v696, %v698
    %v700 = vsel %vm699, 1, 0
    %v701 = vshll.u32 %v700, 25
    %v702 = vor.u32 %v679, %v701
    %s703 = sadd.s32 %s106, 78
    %s704 = sld [smem:[#allocation5 + %s703]]
    %s705 = sadd.s32 %s106, 79
    %s706 = sld [smem:[#allocation5 + %s705]]
    %s707 = sadd.s32 %s106, 80
    %s708 = sld [smem:[#allocation5 + %s707]]
    %s709 = sadd.s32 %s112, 26
    %s710 = sld [smem:[#allocation7 + %s709]]
    %v711 = vstv %s704
    %v712 = vmul.f32 %v103, %v711
    %v713 = vstv %s706
    %v714 = vmul.f32 %v104, %v713
    %v715 = vadd.f32 %v712, %v714
    %v716 = vstv %s708
    %v717 = vmul.f32 %v105, %v716
    %v718 = vadd.f32 %v715, %v717
    %v719 = vadd.f32 %v102, %v718
    %s720 = ssub.f32 0.0, %s710
    %v721 = vstv %s720
    %vm722 = vcmp.lt.f32.partialorder %v719, %v721
    %v723 = vsel %vm722, 1, 0
    %v724 = vshll.u32 %v723, 26
    %v725 = vor.u32 %v702, %v724
    %s726 = sld [smem:[#allocation2 + %s68]]
    %v727 = vstv %s726
    %vm728 = vcmp.lt.s32.totalorder %v61, %v727
    %vm729 = vcmp.lt.s32.totalorder %v66, %v727
    %vm730 = vmand %vm728, %vm729
    %v731 = vsel %vm730, %v725, 0
    %732 = vst [vmem:[#allocation8] sm:$0xff] %v731
    %s733 = sadd.s32 %s68, 1
    %s734 = scalar_lea.vmem %s3, 8
    %v735 = vld [vmem:[%s734] sm:$0xff]
    %s736 = scalar_lea.vmem %s4, 4
    %v737 = vld [vmem:[%s736] sm:$0xf]
    %v738 = vperm.slane %v737, 0
    %740 = vset.pattern.permute.xlu0 0
    %741 = vperm.xlu0 %740, %v735
    %v742 = vpop.permute.xlu0 %741
    %v744 = vsub.f32 %v738, %v742
    %v745 = vperm.slane %v737, 1
    %746 = vset.pattern.permute.xlu0 1
    %747 = vperm.xlu0 %746, %v735
    %v748 = vpop.permute.xlu0 %747
    %v750 = vsub.f32 %v745, %v748
    %v751 = vperm.slane %v737, 2
    %752 = vset.pattern.permute.xlu0 2
    %753 = vperm.xlu0 %752, %v735
    %v754 = vpop.permute.xlu0 %753
    %v756 = vsub.f32 %v751, %v754
    %757 = vset.pattern.permute.xlu0 3
    %758 = vperm.xlu0 %757, %v735
    %v759 = vpop.permute.xlu0 %758
    %v761 = vperm.slane %v737, 3
    %v762 = vadd.f32 %v759, %v761
    %v763 = vmul.f32 %v744, %v744
    %v764 = vmul.f32 %v750, %v750
    %v765 = vadd.f32 %v763, %v764
    %v766 = vmul.f32 %v756, %v756
    %v767 = vadd.f32 %v765, %v766
    %v768 = vmul.f32 %v762, %v762
    %v769 = vsub.f32 %v767, %v768
    %v770 = vadd.f32 %v744, %v744
    %v771 = vadd.f32 %v750, %v750
    %v772 = vadd.f32 %v756, %v756
    %s773 = smul.u32 %s733, 81
    %s774 = sld [smem:[#allocation5 + %s773]]
    %s775 = sadd.s32 %s773, 1
    %s776 = sld [smem:[#allocation5 + %s775]]
    %s777 = sadd.s32 %s773, 2
    %s778 = sld [smem:[#allocation5 + %s777]]
    %s779 = smul.u32 %s733, 27
    %s780 = sld [smem:[#allocation7 + %s779]]
    %v781 = vstv %s774
    %v782 = vmul.f32 %v770, %v781
    %v783 = vstv %s776
    %v784 = vmul.f32 %v771, %v783
    %v785 = vadd.f32 %v782, %v784
    %v786 = vstv %s778
    %v787 = vmul.f32 %v772, %v786
    %v788 = vadd.f32 %v785, %v787
    %v789 = vadd.f32 %v769, %v788
    %s790 = ssub.f32 0.0, %s780
    %v791 = vstv %s790
    %vm792 = vcmp.lt.f32.partialorder %v789, %v791
    %v793 = vsel %vm792, 1, 0
    %s794 = sadd.s32 %s773, 3
    %s795 = sld [smem:[#allocation5 + %s794]]
    %s796 = sadd.s32 %s773, 4
    %s797 = sld [smem:[#allocation5 + %s796]]
    %s798 = sadd.s32 %s773, 5
    %s799 = sld [smem:[#allocation5 + %s798]]
    %s800 = sadd.s32 %s779, 1
    %s801 = sld [smem:[#allocation7 + %s800]]
    %v802 = vstv %s795
    %v803 = vmul.f32 %v770, %v802
    %v804 = vstv %s797
    %v805 = vmul.f32 %v771, %v804
    %v806 = vadd.f32 %v803, %v805
    %v807 = vstv %s799
    %v808 = vmul.f32 %v772, %v807
    %v809 = vadd.f32 %v806, %v808
    %v810 = vadd.f32 %v769, %v809
    %s811 = ssub.f32 0.0, %s801
    %v812 = vstv %s811
    %vm813 = vcmp.lt.f32.partialorder %v810, %v812
    %v814 = vsel %vm813, 1, 0
    %v815 = vshll.u32 %v814, 1
    %v816 = vor.u32 %v793, %v815
    %s817 = sadd.s32 %s773, 6
    %s818 = sld [smem:[#allocation5 + %s817]]
    %s819 = sadd.s32 %s773, 7
    %s820 = sld [smem:[#allocation5 + %s819]]
    %s821 = sadd.s32 %s773, 8
    %s822 = sld [smem:[#allocation5 + %s821]]
    %s823 = sadd.s32 %s779, 2
    %s824 = sld [smem:[#allocation7 + %s823]]
    %v825 = vstv %s818
    %v826 = vmul.f32 %v770, %v825
    %v827 = vstv %s820
    %v828 = vmul.f32 %v771, %v827
    %v829 = vadd.f32 %v826, %v828
    %v830 = vstv %s822
    %v831 = vmul.f32 %v772, %v830
    %v832 = vadd.f32 %v829, %v831
    %v833 = vadd.f32 %v769, %v832
    %s834 = ssub.f32 0.0, %s824
    %v835 = vstv %s834
    %vm836 = vcmp.lt.f32.partialorder %v833, %v835
    %v837 = vsel %vm836, 1, 0
    %v838 = vshll.u32 %v837, 2
    %v839 = vor.u32 %v816, %v838
    %s840 = sadd.s32 %s773, 9
    %s841 = sld [smem:[#allocation5 + %s840]]
    %s842 = sadd.s32 %s773, 10
    %s843 = sld [smem:[#allocation5 + %s842]]
    %s844 = sadd.s32 %s773, 11
    %s845 = sld [smem:[#allocation5 + %s844]]
    %s846 = sadd.s32 %s779, 3
    %s847 = sld [smem:[#allocation7 + %s846]]
    %v848 = vstv %s841
    %v849 = vmul.f32 %v770, %v848
    %v850 = vstv %s843
    %v851 = vmul.f32 %v771, %v850
    %v852 = vadd.f32 %v849, %v851
    %v853 = vstv %s845
    %v854 = vmul.f32 %v772, %v853
    %v855 = vadd.f32 %v852, %v854
    %v856 = vadd.f32 %v769, %v855
    %s857 = ssub.f32 0.0, %s847
    %v858 = vstv %s857
    %vm859 = vcmp.lt.f32.partialorder %v856, %v858
    %v860 = vsel %vm859, 1, 0
    %v861 = vshll.u32 %v860, 3
    %v862 = vor.u32 %v839, %v861
    %s863 = sadd.s32 %s773, 12
    %s864 = sld [smem:[#allocation5 + %s863]]
    %s865 = sadd.s32 %s773, 13
    %s866 = sld [smem:[#allocation5 + %s865]]
    %s867 = sadd.s32 %s773, 14
    %s868 = sld [smem:[#allocation5 + %s867]]
    %s869 = sadd.s32 %s779, 4
    %s870 = sld [smem:[#allocation7 + %s869]]
    %v871 = vstv %s864
    %v872 = vmul.f32 %v770, %v871
    %v873 = vstv %s866
    %v874 = vmul.f32 %v771, %v873
    %v875 = vadd.f32 %v872, %v874
    %v876 = vstv %s868
    %v877 = vmul.f32 %v772, %v876
    %v878 = vadd.f32 %v875, %v877
    %v879 = vadd.f32 %v769, %v878
    %s880 = ssub.f32 0.0, %s870
    %v881 = vstv %s880
    %vm882 = vcmp.lt.f32.partialorder %v879, %v881
    %v883 = vsel %vm882, 1, 0
    %v884 = vshll.u32 %v883, 4
    %v885 = vor.u32 %v862, %v884
    %s886 = sadd.s32 %s773, 15
    %s887 = sld [smem:[#allocation5 + %s886]]
    %s888 = sadd.s32 %s773, 16
    %s889 = sld [smem:[#allocation5 + %s888]]
    %s890 = sadd.s32 %s773, 17
    %s891 = sld [smem:[#allocation5 + %s890]]
    %s892 = sadd.s32 %s779, 5
    %s893 = sld [smem:[#allocation7 + %s892]]
    %v894 = vstv %s887
    %v895 = vmul.f32 %v770, %v894
    %v896 = vstv %s889
    %v897 = vmul.f32 %v771, %v896
    %v898 = vadd.f32 %v895, %v897
    %v899 = vstv %s891
    %v900 = vmul.f32 %v772, %v899
    %v901 = vadd.f32 %v898, %v900
    %v902 = vadd.f32 %v769, %v901
    %s903 = ssub.f32 0.0, %s893
    %v904 = vstv %s903
    %vm905 = vcmp.lt.f32.partialorder %v902, %v904
    %v906 = vsel %vm905, 1, 0
    %v907 = vshll.u32 %v906, 5
    %v908 = vor.u32 %v885, %v907
    %s909 = sadd.s32 %s773, 18
    %s910 = sld [smem:[#allocation5 + %s909]]
    %s911 = sadd.s32 %s773, 19
    %s912 = sld [smem:[#allocation5 + %s911]]
    %s913 = sadd.s32 %s773, 20
    %s914 = sld [smem:[#allocation5 + %s913]]
    %s915 = sadd.s32 %s779, 6
    %s916 = sld [smem:[#allocation7 + %s915]]
    %v917 = vstv %s910
    %v918 = vmul.f32 %v770, %v917
    %v919 = vstv %s912
    %v920 = vmul.f32 %v771, %v919
    %v921 = vadd.f32 %v918, %v920
    %v922 = vstv %s914
    %v923 = vmul.f32 %v772, %v922
    %v924 = vadd.f32 %v921, %v923
    %v925 = vadd.f32 %v769, %v924
    %s926 = ssub.f32 0.0, %s916
    %v927 = vstv %s926
    %vm928 = vcmp.lt.f32.partialorder %v925, %v927
    %v929 = vsel %vm928, 1, 0
    %v930 = vshll.u32 %v929, 6
    %v931 = vor.u32 %v908, %v930
    %s932 = sadd.s32 %s773, 21
    %s933 = sld [smem:[#allocation5 + %s932]]
    %s934 = sadd.s32 %s773, 22
    %s935 = sld [smem:[#allocation5 + %s934]]
    %s936 = sadd.s32 %s773, 23
    %s937 = sld [smem:[#allocation5 + %s936]]
    %s938 = sadd.s32 %s779, 7
    %s939 = sld [smem:[#allocation7 + %s938]]
    %v940 = vstv %s933
    %v941 = vmul.f32 %v770, %v940
    %v942 = vstv %s935
    %v943 = vmul.f32 %v771, %v942
    %v944 = vadd.f32 %v941, %v943
    %v945 = vstv %s937
    %v946 = vmul.f32 %v772, %v945
    %v947 = vadd.f32 %v944, %v946
    %v948 = vadd.f32 %v769, %v947
    %s949 = ssub.f32 0.0, %s939
    %v950 = vstv %s949
    %vm951 = vcmp.lt.f32.partialorder %v948, %v950
    %v952 = vsel %vm951, 1, 0
    %v953 = vshll.u32 %v952, 7
    %v954 = vor.u32 %v931, %v953
    %s955 = sadd.s32 %s773, 24
    %s956 = sld [smem:[#allocation5 + %s955]]
    %s957 = sadd.s32 %s773, 25
    %s958 = sld [smem:[#allocation5 + %s957]]
    %s959 = sadd.s32 %s773, 26
    %s960 = sld [smem:[#allocation5 + %s959]]
    %s961 = sadd.s32 %s779, 8
    %s962 = sld [smem:[#allocation7 + %s961]]
    %v963 = vstv %s956
    %v964 = vmul.f32 %v770, %v963
    %v965 = vstv %s958
    %v966 = vmul.f32 %v771, %v965
    %v967 = vadd.f32 %v964, %v966
    %v968 = vstv %s960
    %v969 = vmul.f32 %v772, %v968
    %v970 = vadd.f32 %v967, %v969
    %v971 = vadd.f32 %v769, %v970
    %s972 = ssub.f32 0.0, %s962
    %v973 = vstv %s972
    %vm974 = vcmp.lt.f32.partialorder %v971, %v973
    %v975 = vsel %vm974, 1, 0
    %v976 = vshll.u32 %v975, 8
    %v977 = vor.u32 %v954, %v976
    %s978 = sadd.s32 %s773, 27
    %s979 = sld [smem:[#allocation5 + %s978]]
    %s980 = sadd.s32 %s773, 28
    %s981 = sld [smem:[#allocation5 + %s980]]
    %s982 = sadd.s32 %s773, 29
    %s983 = sld [smem:[#allocation5 + %s982]]
    %s984 = sadd.s32 %s779, 9
    %s985 = sld [smem:[#allocation7 + %s984]]
    %v986 = vstv %s979
    %v987 = vmul.f32 %v770, %v986
    %v988 = vstv %s981
    %v989 = vmul.f32 %v771, %v988
    %v990 = vadd.f32 %v987, %v989
    %v991 = vstv %s983
    %v992 = vmul.f32 %v772, %v991
    %v993 = vadd.f32 %v990, %v992
    %v994 = vadd.f32 %v769, %v993
    %s995 = ssub.f32 0.0, %s985
    %v996 = vstv %s995
    %vm997 = vcmp.lt.f32.partialorder %v994, %v996
    %v998 = vsel %vm997, 1, 0
    %v999 = vshll.u32 %v998, 9
    %v1000 = vor.u32 %v977, %v999
    %s1001 = sadd.s32 %s773, 30
    %s1002 = sld [smem:[#allocation5 + %s1001]]
    %s1003 = sadd.s32 %s773, 31
    %s1004 = sld [smem:[#allocation5 + %s1003]]
    %s1005 = sadd.s32 %s773, 32
    %s1006 = sld [smem:[#allocation5 + %s1005]]
    %s1007 = sadd.s32 %s779, 10
    %s1008 = sld [smem:[#allocation7 + %s1007]]
    %v1009 = vstv %s1002
    %v1010 = vmul.f32 %v770, %v1009
    %v1011 = vstv %s1004
    %v1012 = vmul.f32 %v771, %v1011
    %v1013 = vadd.f32 %v1010, %v1012
    %v1014 = vstv %s1006
    %v1015 = vmul.f32 %v772, %v1014
    %v1016 = vadd.f32 %v1013, %v1015
    %v1017 = vadd.f32 %v769, %v1016
    %s1018 = ssub.f32 0.0, %s1008
    %v1019 = vstv %s1018
    %vm1020 = vcmp.lt.f32.partialorder %v1017, %v1019
    %v1021 = vsel %vm1020, 1, 0
    %v1022 = vshll.u32 %v1021, 10
    %v1023 = vor.u32 %v1000, %v1022
    %s1024 = sadd.s32 %s773, 33
    %s1025 = sld [smem:[#allocation5 + %s1024]]
    %s1026 = sadd.s32 %s773, 34
    %s1027 = sld [smem:[#allocation5 + %s1026]]
    %s1028 = sadd.s32 %s773, 35
    %s1029 = sld [smem:[#allocation5 + %s1028]]
    %s1030 = sadd.s32 %s779, 11
    %s1031 = sld [smem:[#allocation7 + %s1030]]
    %v1032 = vstv %s1025
    %v1033 = vmul.f32 %v770, %v1032
    %v1034 = vstv %s1027
    %v1035 = vmul.f32 %v771, %v1034
    %v1036 = vadd.f32 %v1033, %v1035
    %v1037 = vstv %s1029
    %v1038 = vmul.f32 %v772, %v1037
    %v1039 = vadd.f32 %v1036, %v1038
    %v1040 = vadd.f32 %v769, %v1039
    %s1041 = ssub.f32 0.0, %s1031
    %v1042 = vstv %s1041
    %vm1043 = vcmp.lt.f32.partialorder %v1040, %v1042
    %v1044 = vsel %vm1043, 1, 0
    %v1045 = vshll.u32 %v1044, 11
    %v1046 = vor.u32 %v1023, %v1045
    %s1047 = sadd.s32 %s773, 36
    %s1048 = sld [smem:[#allocation5 + %s1047]]
    %s1049 = sadd.s32 %s773, 37
    %s1050 = sld [smem:[#allocation5 + %s1049]]
    %s1051 = sadd.s32 %s773, 38
    %s1052 = sld [smem:[#allocation5 + %s1051]]
    %s1053 = sadd.s32 %s779, 12
    %s1054 = sld [smem:[#allocation7 + %s1053]]
    %v1055 = vstv %s1048
    %v1056 = vmul.f32 %v770, %v1055
    %v1057 = vstv %s1050
    %v1058 = vmul.f32 %v771, %v1057
    %v1059 = vadd.f32 %v1056, %v1058
    %v1060 = vstv %s1052
    %v1061 = vmul.f32 %v772, %v1060
    %v1062 = vadd.f32 %v1059, %v1061
    %v1063 = vadd.f32 %v769, %v1062
    %s1064 = ssub.f32 0.0, %s1054
    %v1065 = vstv %s1064
    %vm1066 = vcmp.lt.f32.partialorder %v1063, %v1065
    %v1067 = vsel %vm1066, 1, 0
    %v1068 = vshll.u32 %v1067, 12
    %v1069 = vor.u32 %v1046, %v1068
    %s1070 = sadd.s32 %s773, 39
    %s1071 = sld [smem:[#allocation5 + %s1070]]
    %s1072 = sadd.s32 %s773, 40
    %s1073 = sld [smem:[#allocation5 + %s1072]]
    %s1074 = sadd.s32 %s773, 41
    %s1075 = sld [smem:[#allocation5 + %s1074]]
    %s1076 = sadd.s32 %s779, 13
    %s1077 = sld [smem:[#allocation7 + %s1076]]
    %v1078 = vstv %s1071
    %v1079 = vmul.f32 %v770, %v1078
    %v1080 = vstv %s1073
    %v1081 = vmul.f32 %v771, %v1080
    %v1082 = vadd.f32 %v1079, %v1081
    %v1083 = vstv %s1075
    %v1084 = vmul.f32 %v772, %v1083
    %v1085 = vadd.f32 %v1082, %v1084
    %v1086 = vadd.f32 %v769, %v1085
    %s1087 = ssub.f32 0.0, %s1077
    %v1088 = vstv %s1087
    %vm1089 = vcmp.lt.f32.partialorder %v1086, %v1088
    %vm1090 = vmand %vm1089, %vm67
    %v1091 = vsel %vm1090, 1, 0
    %v1092 = vshll.u32 %v1091, 13
    %v1093 = vor.u32 %v1069, %v1092
    %s1094 = sadd.s32 %s773, 42
    %s1095 = sld [smem:[#allocation5 + %s1094]]
    %s1096 = sadd.s32 %s773, 43
    %s1097 = sld [smem:[#allocation5 + %s1096]]
    %s1098 = sadd.s32 %s773, 44
    %s1099 = sld [smem:[#allocation5 + %s1098]]
    %s1100 = sadd.s32 %s779, 14
    %s1101 = sld [smem:[#allocation7 + %s1100]]
    %v1102 = vstv %s1095
    %v1103 = vmul.f32 %v770, %v1102
    %v1104 = vstv %s1097
    %v1105 = vmul.f32 %v771, %v1104
    %v1106 = vadd.f32 %v1103, %v1105
    %v1107 = vstv %s1099
    %v1108 = vmul.f32 %v772, %v1107
    %v1109 = vadd.f32 %v1106, %v1108
    %v1110 = vadd.f32 %v769, %v1109
    %s1111 = ssub.f32 0.0, %s1101
    %v1112 = vstv %s1111
    %vm1113 = vcmp.lt.f32.partialorder %v1110, %v1112
    %v1114 = vsel %vm1113, 1, 0
    %v1115 = vshll.u32 %v1114, 14
    %v1116 = vor.u32 %v1093, %v1115
    %s1117 = sadd.s32 %s773, 45
    %s1118 = sld [smem:[#allocation5 + %s1117]]
    %s1119 = sadd.s32 %s773, 46
    %s1120 = sld [smem:[#allocation5 + %s1119]]
    %s1121 = sadd.s32 %s773, 47
    %s1122 = sld [smem:[#allocation5 + %s1121]]
    %s1123 = sadd.s32 %s779, 15
    %s1124 = sld [smem:[#allocation7 + %s1123]]
    %v1125 = vstv %s1118
    %v1126 = vmul.f32 %v770, %v1125
    %v1127 = vstv %s1120
    %v1128 = vmul.f32 %v771, %v1127
    %v1129 = vadd.f32 %v1126, %v1128
    %v1130 = vstv %s1122
    %v1131 = vmul.f32 %v772, %v1130
    %v1132 = vadd.f32 %v1129, %v1131
    %v1133 = vadd.f32 %v769, %v1132
    %s1134 = ssub.f32 0.0, %s1124
    %v1135 = vstv %s1134
    %vm1136 = vcmp.lt.f32.partialorder %v1133, %v1135
    %v1137 = vsel %vm1136, 1, 0
    %v1138 = vshll.u32 %v1137, 15
    %v1139 = vor.u32 %v1116, %v1138
    %s1140 = sadd.s32 %s773, 48
    %s1141 = sld [smem:[#allocation5 + %s1140]]
    %s1142 = sadd.s32 %s773, 49
    %s1143 = sld [smem:[#allocation5 + %s1142]]
    %s1144 = sadd.s32 %s773, 50
    %s1145 = sld [smem:[#allocation5 + %s1144]]
    %s1146 = sadd.s32 %s779, 16
    %s1147 = sld [smem:[#allocation7 + %s1146]]
    %v1148 = vstv %s1141
    %v1149 = vmul.f32 %v770, %v1148
    %v1150 = vstv %s1143
    %v1151 = vmul.f32 %v771, %v1150
    %v1152 = vadd.f32 %v1149, %v1151
    %v1153 = vstv %s1145
    %v1154 = vmul.f32 %v772, %v1153
    %v1155 = vadd.f32 %v1152, %v1154
    %v1156 = vadd.f32 %v769, %v1155
    %s1157 = ssub.f32 0.0, %s1147
    %v1158 = vstv %s1157
    %vm1159 = vcmp.lt.f32.partialorder %v1156, %v1158
    %v1160 = vsel %vm1159, 1, 0
    %v1161 = vshll.u32 %v1160, 16
    %v1162 = vor.u32 %v1139, %v1161
    %s1163 = sadd.s32 %s773, 51
    %s1164 = sld [smem:[#allocation5 + %s1163]]
    %s1165 = sadd.s32 %s773, 52
    %s1166 = sld [smem:[#allocation5 + %s1165]]
    %s1167 = sadd.s32 %s773, 53
    %s1168 = sld [smem:[#allocation5 + %s1167]]
    %s1169 = sadd.s32 %s779, 17
    %s1170 = sld [smem:[#allocation7 + %s1169]]
    %v1171 = vstv %s1164
    %v1172 = vmul.f32 %v770, %v1171
    %v1173 = vstv %s1166
    %v1174 = vmul.f32 %v771, %v1173
    %v1175 = vadd.f32 %v1172, %v1174
    %v1176 = vstv %s1168
    %v1177 = vmul.f32 %v772, %v1176
    %v1178 = vadd.f32 %v1175, %v1177
    %v1179 = vadd.f32 %v769, %v1178
    %s1180 = ssub.f32 0.0, %s1170
    %v1181 = vstv %s1180
    %vm1182 = vcmp.lt.f32.partialorder %v1179, %v1181
    %v1183 = vsel %vm1182, 1, 0
    %v1184 = vshll.u32 %v1183, 17
    %v1185 = vor.u32 %v1162, %v1184
    %s1186 = sadd.s32 %s773, 54
    %s1187 = sld [smem:[#allocation5 + %s1186]]
    %s1188 = sadd.s32 %s773, 55
    %s1189 = sld [smem:[#allocation5 + %s1188]]
    %s1190 = sadd.s32 %s773, 56
    %s1191 = sld [smem:[#allocation5 + %s1190]]
    %s1192 = sadd.s32 %s779, 18
    %s1193 = sld [smem:[#allocation7 + %s1192]]
    %v1194 = vstv %s1187
    %v1195 = vmul.f32 %v770, %v1194
    %v1196 = vstv %s1189
    %v1197 = vmul.f32 %v771, %v1196
    %v1198 = vadd.f32 %v1195, %v1197
    %v1199 = vstv %s1191
    %v1200 = vmul.f32 %v772, %v1199
    %v1201 = vadd.f32 %v1198, %v1200
    %v1202 = vadd.f32 %v769, %v1201
    %s1203 = ssub.f32 0.0, %s1193
    %v1204 = vstv %s1203
    %vm1205 = vcmp.lt.f32.partialorder %v1202, %v1204
    %v1206 = vsel %vm1205, 1, 0
    %v1207 = vshll.u32 %v1206, 18
    %v1208 = vor.u32 %v1185, %v1207
    %s1209 = sadd.s32 %s773, 57
    %s1210 = sld [smem:[#allocation5 + %s1209]]
    %s1211 = sadd.s32 %s773, 58
    %s1212 = sld [smem:[#allocation5 + %s1211]]
    %s1213 = sadd.s32 %s773, 59
    %s1214 = sld [smem:[#allocation5 + %s1213]]
    %s1215 = sadd.s32 %s779, 19
    %s1216 = sld [smem:[#allocation7 + %s1215]]
    %v1217 = vstv %s1210
    %v1218 = vmul.f32 %v770, %v1217
    %v1219 = vstv %s1212
    %v1220 = vmul.f32 %v771, %v1219
    %v1221 = vadd.f32 %v1218, %v1220
    %v1222 = vstv %s1214
    %v1223 = vmul.f32 %v772, %v1222
    %v1224 = vadd.f32 %v1221, %v1223
    %v1225 = vadd.f32 %v769, %v1224
    %s1226 = ssub.f32 0.0, %s1216
    %v1227 = vstv %s1226
    %vm1228 = vcmp.lt.f32.partialorder %v1225, %v1227
    %v1229 = vsel %vm1228, 1, 0
    %v1230 = vshll.u32 %v1229, 19
    %v1231 = vor.u32 %v1208, %v1230
    %s1232 = sadd.s32 %s773, 60
    %s1233 = sld [smem:[#allocation5 + %s1232]]
    %s1234 = sadd.s32 %s773, 61
    %s1235 = sld [smem:[#allocation5 + %s1234]]
    %s1236 = sadd.s32 %s773, 62
    %s1237 = sld [smem:[#allocation5 + %s1236]]
    %s1238 = sadd.s32 %s779, 20
    %s1239 = sld [smem:[#allocation7 + %s1238]]
    %v1240 = vstv %s1233
    %v1241 = vmul.f32 %v770, %v1240
    %v1242 = vstv %s1235
    %v1243 = vmul.f32 %v771, %v1242
    %v1244 = vadd.f32 %v1241, %v1243
    %v1245 = vstv %s1237
    %v1246 = vmul.f32 %v772, %v1245
    %v1247 = vadd.f32 %v1244, %v1246
    %v1248 = vadd.f32 %v769, %v1247
    %s1249 = ssub.f32 0.0, %s1239
    %v1250 = vstv %s1249
    %vm1251 = vcmp.lt.f32.partialorder %v1248, %v1250
    %v1252 = vsel %vm1251, 1, 0
    %v1253 = vshll.u32 %v1252, 20
    %v1254 = vor.u32 %v1231, %v1253
    %s1255 = sadd.s32 %s773, 63
    %s1256 = sld [smem:[#allocation5 + %s1255]]
    %s1257 = sadd.s32 %s773, 64
    %s1258 = sld [smem:[#allocation5 + %s1257]]
    %s1259 = sadd.s32 %s773, 65
    %s1260 = sld [smem:[#allocation5 + %s1259]]
    %s1261 = sadd.s32 %s779, 21
    %s1262 = sld [smem:[#allocation7 + %s1261]]
    %v1263 = vstv %s1256
    %v1264 = vmul.f32 %v770, %v1263
    %v1265 = vstv %s1258
    %v1266 = vmul.f32 %v771, %v1265
    %v1267 = vadd.f32 %v1264, %v1266
    %v1268 = vstv %s1260
    %v1269 = vmul.f32 %v772, %v1268
    %v1270 = vadd.f32 %v1267, %v1269
    %v1271 = vadd.f32 %v769, %v1270
    %s1272 = ssub.f32 0.0, %s1262
    %v1273 = vstv %s1272
    %vm1274 = vcmp.lt.f32.partialorder %v1271, %v1273
    %v1275 = vsel %vm1274, 1, 0
    %v1276 = vshll.u32 %v1275, 21
    %v1277 = vor.u32 %v1254, %v1276
    %s1278 = sadd.s32 %s773, 66
    %s1279 = sld [smem:[#allocation5 + %s1278]]
    %s1280 = sadd.s32 %s773, 67
    %s1281 = sld [smem:[#allocation5 + %s1280]]
    %s1282 = sadd.s32 %s773, 68
    %s1283 = sld [smem:[#allocation5 + %s1282]]
    %s1284 = sadd.s32 %s779, 22
    %s1285 = sld [smem:[#allocation7 + %s1284]]
    %v1286 = vstv %s1279
    %v1287 = vmul.f32 %v770, %v1286
    %v1288 = vstv %s1281
    %v1289 = vmul.f32 %v771, %v1288
    %v1290 = vadd.f32 %v1287, %v1289
    %v1291 = vstv %s1283
    %v1292 = vmul.f32 %v772, %v1291
    %v1293 = vadd.f32 %v1290, %v1292
    %v1294 = vadd.f32 %v769, %v1293
    %s1295 = ssub.f32 0.0, %s1285
    %v1296 = vstv %s1295
    %vm1297 = vcmp.lt.f32.partialorder %v1294, %v1296
    %v1298 = vsel %vm1297, 1, 0
    %v1299 = vshll.u32 %v1298, 22
    %v1300 = vor.u32 %v1277, %v1299
    %s1301 = sadd.s32 %s773, 69
    %s1302 = sld [smem:[#allocation5 + %s1301]]
    %s1303 = sadd.s32 %s773, 70
    %s1304 = sld [smem:[#allocation5 + %s1303]]
    %s1305 = sadd.s32 %s773, 71
    %s1306 = sld [smem:[#allocation5 + %s1305]]
    %s1307 = sadd.s32 %s779, 23
    %s1308 = sld [smem:[#allocation7 + %s1307]]
    %v1309 = vstv %s1302
    %v1310 = vmul.f32 %v770, %v1309
    %v1311 = vstv %s1304
    %v1312 = vmul.f32 %v771, %v1311
    %v1313 = vadd.f32 %v1310, %v1312
    %v1314 = vstv %s1306
    %v1315 = vmul.f32 %v772, %v1314
    %v1316 = vadd.f32 %v1313, %v1315
    %v1317 = vadd.f32 %v769, %v1316
    %s1318 = ssub.f32 0.0, %s1308
    %v1319 = vstv %s1318
    %vm1320 = vcmp.lt.f32.partialorder %v1317, %v1319
    %v1321 = vsel %vm1320, 1, 0
    %v1322 = vshll.u32 %v1321, 23
    %v1323 = vor.u32 %v1300, %v1322
    %s1324 = sadd.s32 %s773, 72
    %s1325 = sld [smem:[#allocation5 + %s1324]]
    %s1326 = sadd.s32 %s773, 73
    %s1327 = sld [smem:[#allocation5 + %s1326]]
    %s1328 = sadd.s32 %s773, 74
    %s1329 = sld [smem:[#allocation5 + %s1328]]
    %s1330 = sadd.s32 %s779, 24
    %s1331 = sld [smem:[#allocation7 + %s1330]]
    %v1332 = vstv %s1325
    %v1333 = vmul.f32 %v770, %v1332
    %v1334 = vstv %s1327
    %v1335 = vmul.f32 %v771, %v1334
    %v1336 = vadd.f32 %v1333, %v1335
    %v1337 = vstv %s1329
    %v1338 = vmul.f32 %v772, %v1337
    %v1339 = vadd.f32 %v1336, %v1338
    %v1340 = vadd.f32 %v769, %v1339
    %s1341 = ssub.f32 0.0, %s1331
    %v1342 = vstv %s1341
    %vm1343 = vcmp.lt.f32.partialorder %v1340, %v1342
    %v1344 = vsel %vm1343, 1, 0
    %v1345 = vshll.u32 %v1344, 24
    %v1346 = vor.u32 %v1323, %v1345
    %s1347 = sadd.s32 %s773, 75
    %s1348 = sld [smem:[#allocation5 + %s1347]]
    %s1349 = sadd.s32 %s773, 76
    %s1350 = sld [smem:[#allocation5 + %s1349]]
    %s1351 = sadd.s32 %s773, 77
    %s1352 = sld [smem:[#allocation5 + %s1351]]
    %s1353 = sadd.s32 %s779, 25
    %s1354 = sld [smem:[#allocation7 + %s1353]]
    %v1355 = vstv %s1348
    %v1356 = vmul.f32 %v770, %v1355
    %v1357 = vstv %s1350
    %v1358 = vmul.f32 %v771, %v1357
    %v1359 = vadd.f32 %v1356, %v1358
    %v1360 = vstv %s1352
    %v1361 = vmul.f32 %v772, %v1360
    %v1362 = vadd.f32 %v1359, %v1361
    %v1363 = vadd.f32 %v769, %v1362
    %s1364 = ssub.f32 0.0, %s1354
    %v1365 = vstv %s1364
    %vm1366 = vcmp.lt.f32.partialorder %v1363, %v1365
    %v1367 = vsel %vm1366, 1, 0
    %v1368 = vshll.u32 %v1367, 25
    %v1369 = vor.u32 %v1346, %v1368
    %s1370 = sadd.s32 %s773, 78
    %s1371 = sld [smem:[#allocation5 + %s1370]]
    %s1372 = sadd.s32 %s773, 79
    %s1373 = sld [smem:[#allocation5 + %s1372]]
    %s1374 = sadd.s32 %s773, 80
    %s1375 = sld [smem:[#allocation5 + %s1374]]
    %s1376 = sadd.s32 %s779, 26
    %s1377 = sld [smem:[#allocation7 + %s1376]]
    %v1378 = vstv %s1371
    %v1379 = vmul.f32 %v770, %v1378
    %v1380 = vstv %s1373
    %v1381 = vmul.f32 %v771, %v1380
    %v1382 = vadd.f32 %v1379, %v1381
    %v1383 = vstv %s1375
    %v1384 = vmul.f32 %v772, %v1383
    %v1385 = vadd.f32 %v1382, %v1384
    %v1386 = vadd.f32 %v769, %v1385
    %s1387 = ssub.f32 0.0, %s1377
    %v1388 = vstv %s1387
    %vm1389 = vcmp.lt.f32.partialorder %v1386, %v1388
    %v1390 = vsel %vm1389, 1, 0
    %v1391 = vshll.u32 %v1390, 26
    %v1392 = vor.u32 %v1369, %v1391
    %s1393 = sld [smem:[#allocation2 + %s733]]
    %v1394 = vstv %s1393
    %vm1395 = vcmp.lt.s32.totalorder %v61, %v1394
    %vm1396 = vcmp.lt.s32.totalorder %v66, %v1394
    %vm1397 = vmand %vm1395, %vm1396
    %v1398 = vsel %vm1397, %v1392, 0
    %s1399 = scalar_lea.vmem [#allocation8], 8
    %1400 = vst [vmem:[%s1399] sm:$0xff] %v1398
    // Predicated region
    $region34: #{tpu_custom_call.1} parent=1 // pred_check
      _
    $region35: #{tpu_custom_call.1} parent=1 // pred_check_branch
      %1402 = sbr.rel (0) target = $region37
    $region36: #{tpu_custom_call.1} parent=1 // pred_region
      %1404 = vsyncadd [#allocation3], 0
      %s1405 = sshll.u32 [#allocation8], 4
      %s1406 = int_to_ptr.vmem [resolvable:$true] %s1405
      %s1407 = sshll.u32 %s5, 4
      %s1408 = int_to_ptr.hbm [resolvable:$true] %s1407
      %1413 = dma.vmem_to_hbm [thread:$0]  %s1406, 256, %s1408, [#allocation3], 128, 128, 8
    $region37: #{tpu_custom_call.1} parent=1 // pred_fallthru
      _
    // Predicated region
    $region38: #{tpu_custom_call.1} parent=1 // pred_check
      _
    $region39: #{tpu_custom_call.1} parent=1 // pred_check_branch
      %1415 = sbr.rel (0) target = $region41
    $region40: #{tpu_custom_call.1} parent=1 // pred_region
      %1417 = dma.done [#allocation3], 256
    $region41: #{tpu_custom_call.1} parent=1 // pred_fallthru
      _
    %1418 = vsyncpa [#allocation3], 1
    %1419 = vsyncpa [#allocation4], 1
    %1420 = vsyncpa [#allocation6], 1

</llo_original>
